<compile_context>
chip_gen: v7x
topology: tpu7x:2x2x1
jax: 0.10.0
libtpu: 0.0.40
codegen_flags: <defaults>
</compile_context>

<pallas_src>
import functools

import jax
import jax.numpy as jnp
from jax.experimental import pallas as pl
from jax.experimental.pallas import tpu as pltpu


def _make_kernel(kh, kw, stride, tr, wo, c_in, c_out_pad):
    """Builds the fused conv+BN+ReLU kernel for static shape parameters."""

    def kernel(x_ref, w_ref, shift_ref, o_ref):
        # x_ref:     (H_tot, W_tot, C_in)       padded NHWC image of one batch element (VMEM)
        # w_ref:     (KH*KW, C_in, C_out_pad)   BN-scale-folded weights, one slice per tap
        # shift_ref: (1, C_out_pad)             folded BN shift (f32)
        # o_ref:     (TR, Wo, C_out_pad)        one tile of output rows (f32)
        r = pl.program_id(1)
        base = r * (tr * stride)               # first padded-input row for this row tile

        acc = None
        for i in range(kh):                    # static python loops -> fully unrolled
            for j in range(kw):
                if stride == 1:
                    tap = x_ref[pl.ds(base + i, tr), pl.ds(j, wo), :]
                else:
                    tap = x_ref[pl.ds(base + i, tr, stride=stride),
                                pl.ds(j, wo, stride=stride), :]
                patch = tap.reshape(tr * wo, c_in)
                contrib = jnp.dot(patch, w_ref[i * kw + j],
                                  preferred_element_type=jnp.float32)
                acc = contrib if acc is None else acc + contrib

        y = jnp.maximum(acc + shift_ref[...], 0.0)
        o_ref[...] = y.reshape(tr, wo, c_out_pad).astype(o_ref.dtype)

    return kernel


@functools.partial(jax.jit, static_argnames=("stride", "pad", "eps", "compute_dtype"))
def basic_conv2d(x, weight, gamma, beta, running_mean, running_var,
                 *, stride=1, pad=1, eps=1e-3, compute_dtype=jnp.bfloat16):
    """Fused Conv2d(bias=False) + BatchNorm2d(eval, eps) + ReLU.

    x:      (N, C_in, H, W)          float32 (NCHW, PyTorch layout)
    weight: (C_out, C_in, KH, KW)    float32 (PyTorch layout)
    returns (N, C_out, H_out, W_out) float32
    """
    n, c_in, h, w = x.shape
    c_out, _, kh, kw = weight.shape
    ho = (h + 2 * pad - kh) // stride + 1
    wo = (w + 2 * pad - kw) // stride + 1

    # --- tiling choices -------------------------------------------------------------
    lanes = 128
    c_out_pad = -(-c_out // lanes) * lanes                 # lane-dense output channels
    target_rows = 1024                                     # ~output pixels per grid step
    tr = max(1, min(ho, target_rows // max(wo, 1)))        # output rows per grid step
    n_rt = -(-ho // tr)                                    # number of row tiles
    ho_pad = n_rt * tr                                     # padded output rows

    # --- input: NCHW -> NHWC, compute dtype, spatial zero-padding --------------------
    x_nhwc = jnp.transpose(x, (0, 2, 3, 1)).astype(compute_dtype)
    h_tot = max(h + 2 * pad, (ho_pad - 1) * stride + kh)   # covers padded output rows
    w_tot = w + 2 * pad
    x_p = jnp.pad(x_nhwc, ((0, 0), (pad, h_tot - h - pad), (pad, pad), (0, 0)))

    # --- weights: fold BN scale, rearrange to per-tap slices, pad channels -----------
    scale = gamma / jnp.sqrt(running_var + eps)            # (C_out,) f32
    shift = beta - running_mean * scale                    # (C_out,) f32
    w_taps = jnp.transpose(weight, (2, 3, 1, 0)) * scale[None, None, None, :]  # (KH,KW,Cin,Cout)
    w_taps = jnp.pad(w_taps, ((0, 0), (0, 0), (0, 0), (0, c_out_pad - c_out)))
    w_taps = w_taps.astype(compute_dtype).reshape(kh * kw, c_in, c_out_pad)
    shift_p = jnp.pad(shift, (0, c_out_pad - c_out)).reshape(1, c_out_pad).astype(jnp.float32)

    kernel = _make_kernel(kh, kw, stride, tr, wo, c_in, c_out_pad)

    out = pl.pallas_call(
        kernel,
        out_shape=jax.ShapeDtypeStruct((n, ho_pad, wo, c_out_pad), jnp.float32),
        grid=(n, n_rt),
        in_specs=[
            # Whole padded image of batch element b; constant across the row-tile axis
            # so it is only DMA'd when b changes.
            pl.BlockSpec((None, h_tot, w_tot, c_in), lambda b, r: (b, 0, 0, 0)),
            pl.BlockSpec((kh * kw, c_in, c_out_pad), lambda b, r: (0, 0, 0)),
            pl.BlockSpec((1, c_out_pad), lambda b, r: (0, 0)),
        ],
        out_specs=pl.BlockSpec((None, tr, wo, c_out_pad), lambda b, r: (b, r, 0, 0)),
        compiler_params=pltpu.CompilerParams(
            dimension_semantics=("parallel", "parallel"),
            vmem_limit_bytes=48 * 1024 * 1024,
        ),
    )(x_p, w_taps, shift_p)

    # Drop row / channel padding, NHWC -> NCHW only at the module boundary.
    out = out[:, :ho, :, :c_out]
    return jnp.transpose(out, (0, 3, 1, 2))


if __name__ == "__main__":
    # Small deterministic example consistent with BasicConv2d(in=4, out=8, kernel_size=3, padding=1)
    key = jax.random.PRNGKey(0)
    k_x, k_w, k_g, k_b, k_m, k_v = jax.random.split(key, 6)

    N, C_IN, H, W = 2, 4, 16, 16
    C_OUT, KH, KW = 8, 3, 3

    x = jax.random.normal(k_x, (N, C_IN, H, W), dtype=jnp.float32)
    weight = jax.random.normal(k_w, (C_OUT, C_IN, KH, KW), dtype=jnp.float32) * 0.1
    gamma = jax.random.uniform(k_g, (C_OUT,), jnp.float32, minval=0.5, maxval=1.5)
    beta = jax.random.normal(k_b, (C_OUT,), dtype=jnp.float32) * 0.1
    running_mean = jax.random.normal(k_m, (C_OUT,), dtype=jnp.float32) * 0.1
    running_var = jax.random.uniform(k_v, (C_OUT,), jnp.float32, minval=0.5, maxval=1.5)

    # Pure-JAX reference (f32 conv + BN eval + relu), matching the PyTorch module.
    ref_conv = jax.lax.conv_general_dilated(
        x, weight, window_strides=(1, 1), padding=((1, 1), (1, 1)),
        dimension_numbers=("NCHW", "OIHW", "NCHW"))
    s = gamma / jnp.sqrt(running_var + 1e-3)
    ref = jnp.maximum(ref_conv * s[None, :, None, None]
                      + (beta - running_mean * s)[None, :, None, None], 0.0)

    # f32 compute path: tight numerical check of the fused kernel.
    out_f32 = basic_conv2d(x, weight, gamma, beta, running_mean, running_var,
                           stride=1, pad=1, compute_dtype=jnp.float32)
    jax.block_until_ready(out_f32)
    assert out_f32.shape == (N, C_OUT, H, W)
    assert jnp.allclose(out_f32, ref, atol=1e-4, rtol=1e-4)

    # Default bf16 compute path (MXU-friendly, halves HBM/VMEM bytes): looser tolerance.
    out_bf16 = basic_conv2d(x, weight, gamma, beta, running_mean, running_var,
                            stride=1, pad=1)
    jax.block_until_ready(out_bf16)
    assert out_bf16.shape == (N, C_OUT, H, W)
    assert jnp.allclose(out_bf16, ref, atol=3e-2, rtol=3e-2)

    print("KERNEL_OK")
</pallas_src>

<mosaic_0001>
module attributes {stable_mosaic.version = 11 : i64} {
  func.func @kernel(%arg0: i32, %arg1: i32, %arg2: memref<1x18x18x4xf32, #tpu.memory_space<vmem>>, %arg3: memref<9x4x128xf32, #tpu.memory_space<vmem>>, %arg4: memref<1x128xf32, #tpu.memory_space<vmem>>, %arg5: memref<1x16x16x128xf32, #tpu.memory_space<vmem>>) attributes {dimension_semantics = [#tpu.dimension_semantics<parallel>, #tpu.dimension_semantics<parallel>], iteration_bounds = array<i64: 2, 1>, scalar_prefetch = 0 : i64, scratch_operands = 0 : i64, tpu.core_type = #tpu.core_type<tc>, window_params = [{transform_indices = @transform_0, window_bounds = array<i64: 1, 18, 18, 4>}, {pipeline_mode = #tpu.pipeline_mode<synchronous>, transform_indices = @transform_1, window_bounds = array<i64: 9, 4, 128>}, {pipeline_mode = #tpu.pipeline_mode<synchronous>, transform_indices = @transform_2, window_bounds = array<i64: 1, 128>}, {transform_indices = @transform_3, window_bounds = array<i64: 1, 16, 16, 128>}]} {
    %c16_i32 = arith.constant 16 : i32
    %0 = arith.muli %arg1, %c16_i32 : i32
    %c0_i32 = arith.constant 0 : i32
    %1 = arith.addi %0, %c0_i32 : i32
    %c0 = arith.constant 0 : index
    %2 = arith.index_cast %1 : i32 to index
    %c0_0 = arith.constant 0 : index
    %c0_1 = arith.constant 0 : index
    %3 = vector.load %arg2[%c0, %2, %c0_0, %c0_1] : memref<1x18x18x4xf32, #tpu.memory_space<vmem>>, vector<1x16x16x4xf32>
    %4 = vector.shape_cast %3 : vector<1x16x16x4xf32> to vector<16x16x4xf32>
    %5 = vector.shape_cast %4 : vector<16x16x4xf32> to vector<256x4xf32>
    %c0_2 = arith.constant 0 : index
    %c0_3 = arith.constant 0 : index
    %c0_4 = arith.constant 0 : index
    %6 = vector.load %arg3[%c0_2, %c0_3, %c0_4] : memref<9x4x128xf32, #tpu.memory_space<vmem>>, vector<1x4x128xf32>
    %7 = vector.shape_cast %6 : vector<1x4x128xf32> to vector<4x128xf32>
    %cst = arith.constant dense<0.000000e+00> : vector<256x128xf32>
    %8 = tpu.matmul %5, %7, %cst {dimension_numbers = #tpu.dot_dimension_numbers<[1], [0], [0], [1], [0, 0, 1, 1], [], []>} : vector<256x4xf32>, vector<4x128xf32>, vector<256x128xf32> -> vector<256x128xf32>
    %c0_i32_5 = arith.constant 0 : i32
    %9 = arith.addi %0, %c0_i32_5 : i32
    %c0_6 = arith.constant 0 : index
    %10 = arith.index_cast %9 : i32 to index
    %c1 = arith.constant 1 : index
    %c0_7 = arith.constant 0 : index
    %11 = vector.load %arg2[%c0_6, %10, %c1, %c0_7] : memref<1x18x18x4xf32, #tpu.memory_space<vmem>>, vector<1x16x16x4xf32>
    %12 = vector.shape_cast %11 : vector<1x16x16x4xf32> to vector<16x16x4xf32>
    %13 = vector.shape_cast %12 : vector<16x16x4xf32> to vector<256x4xf32>
    %c1_8 = arith.constant 1 : index
    %c0_9 = arith.constant 0 : index
    %c0_10 = arith.constant 0 : index
    %14 = vector.load %arg3[%c1_8, %c0_9, %c0_10] : memref<9x4x128xf32, #tpu.memory_space<vmem>>, vector<1x4x128xf32>
    %15 = vector.shape_cast %14 : vector<1x4x128xf32> to vector<4x128xf32>
    %cst_11 = arith.constant dense<0.000000e+00> : vector<256x128xf32>
    %16 = tpu.matmul %13, %15, %cst_11 {dimension_numbers = #tpu.dot_dimension_numbers<[1], [0], [0], [1], [0, 0, 1, 1], [], []>} : vector<256x4xf32>, vector<4x128xf32>, vector<256x128xf32> -> vector<256x128xf32>
    %17 = arith.addf %8, %16 : vector<256x128xf32>
    %c0_i32_12 = arith.constant 0 : i32
    %18 = arith.addi %0, %c0_i32_12 : i32
    %c0_13 = arith.constant 0 : index
    %19 = arith.index_cast %18 : i32 to index
    %c2 = arith.constant 2 : index
    %c0_14 = arith.constant 0 : index
    %20 = vector.load %arg2[%c0_13, %19, %c2, %c0_14] : memref<1x18x18x4xf32, #tpu.memory_space<vmem>>, vector<1x16x16x4xf32>
    %21 = vector.shape_cast %20 : vector<1x16x16x4xf32> to vector<16x16x4xf32>
    %22 = vector.shape_cast %21 : vector<16x16x4xf32> to vector<256x4xf32>
    %c2_15 = arith.constant 2 : index
    %c0_16 = arith.constant 0 : index
    %c0_17 = arith.constant 0 : index
    %23 = vector.load %arg3[%c2_15, %c0_16, %c0_17] : memref<9x4x128xf32, #tpu.memory_space<vmem>>, vector<1x4x128xf32>
    %24 = vector.shape_cast %23 : vector<1x4x128xf32> to vector<4x128xf32>
    %cst_18 = arith.constant dense<0.000000e+00> : vector<256x128xf32>
    %25 = tpu.matmul %22, %24, %cst_18 {dimension_numbers = #tpu.dot_dimension_numbers<[1], [0], [0], [1], [0, 0, 1, 1], [], []>} : vector<256x4xf32>, vector<4x128xf32>, vector<256x128xf32> -> vector<256x128xf32>
    %26 = arith.addf %17, %25 : vector<256x128xf32>
    %c1_i32 = arith.constant 1 : i32
    %27 = arith.addi %0, %c1_i32 : i32
    %c0_19 = arith.constant 0 : index
    %28 = arith.index_cast %27 : i32 to index
    %c0_20 = arith.constant 0 : index
    %c0_21 = arith.constant 0 : index
    %29 = vector.load %arg2[%c0_19, %28, %c0_20, %c0_21] : memref<1x18x18x4xf32, #tpu.memory_space<vmem>>, vector<1x16x16x4xf32>
    %30 = vector.shape_cast %29 : vector<1x16x16x4xf32> to vector<16x16x4xf32>
    %31 = vector.shape_cast %30 : vector<16x16x4xf32> to vector<256x4xf32>
    %c3 = arith.constant 3 : index
    %c0_22 = arith.constant 0 : index
    %c0_23 = arith.constant 0 : index
    %32 = vector.load %arg3[%c3, %c0_22, %c0_23] : memref<9x4x128xf32, #tpu.memory_space<vmem>>, vector<1x4x128xf32>
    %33 = vector.shape_cast %32 : vector<1x4x128xf32> to vector<4x128xf32>
    %cst_24 = arith.constant dense<0.000000e+00> : vector<256x128xf32>
    %34 = tpu.matmul %31, %33, %cst_24 {dimension_numbers = #tpu.dot_dimension_numbers<[1], [0], [0], [1], [0, 0, 1, 1], [], []>} : vector<256x4xf32>, vector<4x128xf32>, vector<256x128xf32> -> vector<256x128xf32>
    %35 = arith.addf %26, %34 : vector<256x128xf32>
    %c1_i32_25 = arith.constant 1 : i32
    %36 = arith.addi %0, %c1_i32_25 : i32
    %c0_26 = arith.constant 0 : index
    %37 = arith.index_cast %36 : i32 to index
    %c1_27 = arith.constant 1 : index
    %c0_28 = arith.constant 0 : index
    %38 = vector.load %arg2[%c0_26, %37, %c1_27, %c0_28] : memref<1x18x18x4xf32, #tpu.memory_space<vmem>>, vector<1x16x16x4xf32>
    %39 = vector.shape_cast %38 : vector<1x16x16x4xf32> to vector<16x16x4xf32>
    %40 = vector.shape_cast %39 : vector<16x16x4xf32> to vector<256x4xf32>
    %c4 = arith.constant 4 : index
    %c0_29 = arith.constant 0 : index
    %c0_30 = arith.constant 0 : index
    %41 = vector.load %arg3[%c4, %c0_29, %c0_30] : memref<9x4x128xf32, #tpu.memory_space<vmem>>, vector<1x4x128xf32>
    %42 = vector.shape_cast %41 : vector<1x4x128xf32> to vector<4x128xf32>
    %cst_31 = arith.constant dense<0.000000e+00> : vector<256x128xf32>
    %43 = tpu.matmul %40, %42, %cst_31 {dimension_numbers = #tpu.dot_dimension_numbers<[1], [0], [0], [1], [0, 0, 1, 1], [], []>} : vector<256x4xf32>, vector<4x128xf32>, vector<256x128xf32> -> vector<256x128xf32>
    %44 = arith.addf %35, %43 : vector<256x128xf32>
    %c1_i32_32 = arith.constant 1 : i32
    %45 = arith.addi %0, %c1_i32_32 : i32
    %c0_33 = arith.constant 0 : index
    %46 = arith.index_cast %45 : i32 to index
    %c2_34 = arith.constant 2 : index
    %c0_35 = arith.constant 0 : index
    %47 = vector.load %arg2[%c0_33, %46, %c2_34, %c0_35] : memref<1x18x18x4xf32, #tpu.memory_space<vmem>>, vector<1x16x16x4xf32>
    %48 = vector.shape_cast %47 : vector<1x16x16x4xf32> to vector<16x16x4xf32>
    %49 = vector.shape_cast %48 : vector<16x16x4xf32> to vector<256x4xf32>
    %c5 = arith.constant 5 : index
    %c0_36 = arith.constant 0 : index
    %c0_37 = arith.constant 0 : index
    %50 = vector.load %arg3[%c5, %c0_36, %c0_37] : memref<9x4x128xf32, #tpu.memory_space<vmem>>, vector<1x4x128xf32>
    %51 = vector.shape_cast %50 : vector<1x4x128xf32> to vector<4x128xf32>
    %cst_38 = arith.constant dense<0.000000e+00> : vector<256x128xf32>
    %52 = tpu.matmul %49, %51, %cst_38 {dimension_numbers = #tpu.dot_dimension_numbers<[1], [0], [0], [1], [0, 0, 1, 1], [], []>} : vector<256x4xf32>, vector<4x128xf32>, vector<256x128xf32> -> vector<256x128xf32>
    %53 = arith.addf %44, %52 : vector<256x128xf32>
    %c2_i32 = arith.constant 2 : i32
    %54 = arith.addi %0, %c2_i32 : i32
    %c0_39 = arith.constant 0 : index
    %55 = arith.index_cast %54 : i32 to index
    %c0_40 = arith.constant 0 : index
    %c0_41 = arith.constant 0 : index
    %56 = vector.load %arg2[%c0_39, %55, %c0_40, %c0_41] : memref<1x18x18x4xf32, #tpu.memory_space<vmem>>, vector<1x16x16x4xf32>
    %57 = vector.shape_cast %56 : vector<1x16x16x4xf32> to vector<16x16x4xf32>
    %58 = vector.shape_cast %57 : vector<16x16x4xf32> to vector<256x4xf32>
    %c6 = arith.constant 6 : index
    %c0_42 = arith.constant 0 : index
    %c0_43 = arith.constant 0 : index
    %59 = vector.load %arg3[%c6, %c0_42, %c0_43] : memref<9x4x128xf32, #tpu.memory_space<vmem>>, vector<1x4x128xf32>
    %60 = vector.shape_cast %59 : vector<1x4x128xf32> to vector<4x128xf32>
    %cst_44 = arith.constant dense<0.000000e+00> : vector<256x128xf32>
    %61 = tpu.matmul %58, %60, %cst_44 {dimension_numbers = #tpu.dot_dimension_numbers<[1], [0], [0], [1], [0, 0, 1, 1], [], []>} : vector<256x4xf32>, vector<4x128xf32>, vector<256x128xf32> -> vector<256x128xf32>
    %62 = arith.addf %53, %61 : vector<256x128xf32>
    %c2_i32_45 = arith.constant 2 : i32
    %63 = arith.addi %0, %c2_i32_45 : i32
    %c0_46 = arith.constant 0 : index
    %64 = arith.index_cast %63 : i32 to index
    %c1_47 = arith.constant 1 : index
    %c0_48 = arith.constant 0 : index
    %65 = vector.load %arg2[%c0_46, %64, %c1_47, %c0_48] : memref<1x18x18x4xf32, #tpu.memory_space<vmem>>, vector<1x16x16x4xf32>
    %66 = vector.shape_cast %65 : vector<1x16x16x4xf32> to vector<16x16x4xf32>
    %67 = vector.shape_cast %66 : vector<16x16x4xf32> to vector<256x4xf32>
    %c7 = arith.constant 7 : index
    %c0_49 = arith.constant 0 : index
    %c0_50 = arith.constant 0 : index
    %68 = vector.load %arg3[%c7, %c0_49, %c0_50] : memref<9x4x128xf32, #tpu.memory_space<vmem>>, vector<1x4x128xf32>
    %69 = vector.shape_cast %68 : vector<1x4x128xf32> to vector<4x128xf32>
    %cst_51 = arith.constant dense<0.000000e+00> : vector<256x128xf32>
    %70 = tpu.matmul %67, %69, %cst_51 {dimension_numbers = #tpu.dot_dimension_numbers<[1], [0], [0], [1], [0, 0, 1, 1], [], []>} : vector<256x4xf32>, vector<4x128xf32>, vector<256x128xf32> -> vector<256x128xf32>
    %71 = arith.addf %62, %70 : vector<256x128xf32>
    %c2_i32_52 = arith.constant 2 : i32
    %72 = arith.addi %0, %c2_i32_52 : i32
    %c0_53 = arith.constant 0 : index
    %73 = arith.index_cast %72 : i32 to index
    %c2_54 = arith.constant 2 : index
    %c0_55 = arith.constant 0 : index
    %74 = vector.load %arg2[%c0_53, %73, %c2_54, %c0_55] : memref<1x18x18x4xf32, #tpu.memory_space<vmem>>, vector<1x16x16x4xf32>
    %75 = vector.shape_cast %74 : vector<1x16x16x4xf32> to vector<16x16x4xf32>
    %76 = vector.shape_cast %75 : vector<16x16x4xf32> to vector<256x4xf32>
    %c8 = arith.constant 8 : index
    %c0_56 = arith.constant 0 : index
    %c0_57 = arith.constant 0 : index
    %77 = vector.load %arg3[%c8, %c0_56, %c0_57] : memref<9x4x128xf32, #tpu.memory_space<vmem>>, vector<1x4x128xf32>
    %78 = vector.shape_cast %77 : vector<1x4x128xf32> to vector<4x128xf32>
    %cst_58 = arith.constant dense<0.000000e+00> : vector<256x128xf32>
    %79 = tpu.matmul %76, %78, %cst_58 {dimension_numbers = #tpu.dot_dimension_numbers<[1], [0], [0], [1], [0, 0, 1, 1], [], []>} : vector<256x4xf32>, vector<4x128xf32>, vector<256x128xf32> -> vector<256x128xf32>
    %80 = arith.addf %71, %79 : vector<256x128xf32>
    %c0_59 = arith.constant 0 : index
    %c0_60 = arith.constant 0 : index
    %81 = vector.load %arg4[%c0_59, %c0_60] : memref<1x128xf32, #tpu.memory_space<vmem>>, vector<1x128xf32>
    %82 = vector.broadcast %81 : vector<1x128xf32> to vector<256x128xf32>
    %83 = arith.addf %80, %82 : vector<256x128xf32>
    %cst_61 = arith.constant 0.000000e+00 : f32
    %84 = vector.broadcast %cst_61 : f32 to vector<256x128xf32>
    %85 = arith.maximumf %83, %84 : vector<256x128xf32>
    %86 = vector.shape_cast %85 : vector<256x128xf32> to vector<16x16x128xf32>
    %c0_62 = arith.constant 0 : index
    %c0_63 = arith.constant 0 : index
    %c0_64 = arith.constant 0 : index
    %c0_65 = arith.constant 0 : index
    %87 = vector.load %arg5[%c0_62, %c0_63, %c0_64, %c0_65] : memref<1x16x16x128xf32, #tpu.memory_space<vmem>>, vector<1x16x16x128xf32>
    %88 = vector.shape_cast %87 : vector<1x16x16x128xf32> to vector<16x16x128xf32>
    %89 = vector.shape_cast %86 : vector<16x16x128xf32> to vector<1x16x16x128xf32>
    tpu.vector_store %arg5[%c0_62, %c0_63, %c0_64, %c0_65], %89 {strides = array<i32>} : memref<1x16x16x128xf32, #tpu.memory_space<vmem>>, vector<1x16x16x128xf32>,
    return
  }
  func.func @transform_0(%arg0: i32, %arg1: i32) -> (i32, i32, i32, i32) {
    %c0_i32 = arith.constant 0 : i32
    %c0_i32_0 = arith.constant 0 : i32
    %c0_i32_1 = arith.constant 0 : i32
    %c0_i32_2 = arith.constant 0 : i32
    return %arg0, %c0_i32, %c0_i32_0, %c0_i32_1 : i32, i32, i32, i32
  }
  func.func @transform_1(%arg0: i32, %arg1: i32) -> (i32, i32, i32) {
    %c0_i32 = arith.constant 0 : i32
    %c0_i32_0 = arith.constant 0 : i32
    %c0_i32_1 = arith.constant 0 : i32
    %c0_i32_2 = arith.constant 0 : i32
    return %c0_i32, %c0_i32_0, %c0_i32_1 : i32, i32, i32
  }
  func.func @transform_2(%arg0: i32, %arg1: i32) -> (i32, i32) {
    %c0_i32 = arith.constant 0 : i32
    %c0_i32_0 = arith.constant 0 : i32
    %c0_i32_1 = arith.constant 0 : i32
    return %c0_i32, %c0_i32_0 : i32, i32
  }
  func.func @transform_3(%arg0: i32, %arg1: i32) -> (i32, i32, i32, i32) {
    %c0_i32 = arith.constant 0 : i32
    %c0_i32_0 = arith.constant 0 : i32
    %c0_i32_1 = arith.constant 0 : i32
    return %arg0, %arg1, %c0_i32, %c0_i32_0 : i32, i32, i32, i32
  }
}

</mosaic_0001>

<llo_original>
// kernel: basic_conv2d.1
$region0: #{basic_conv2d.1}
  #allocation0 [shape = 'u32[]', space=smem, size = 0x4, offset = 0x4, fixed_abs, tag = 'smem constant byte address 0x4 - core index']
  #allocation1 [shape = 'u32[144,128]{1,0:T(1,128)}', space=vmem, size = 0x12000, scoped, tag = 'internal scratch']
  %s0 = inlined_call_operand.vmem [shape: f32[2,18,18,4], index: 0, kind: input, shape index: {}]
  %s1 = inlined_call_operand.vmem [shape: f32[9,4,128], index: 1, kind: input, shape index: {}]
  %s2 = inlined_call_operand.vmem [shape: f32[1,128], index: 2, kind: input, shape index: {}]
  %s3 = inlined_call_operand.vmem [shape: f32[2,16,16,128], index: 3, kind: output, shape index: {}]
  %s4 = sld [smem:[#allocation0]]
  $region45: #{basic_conv2d.1} parent=0
    _
  %s6 = ssub.s32 1, %s4
  %s7 = scalar_select 0, %s6, %s4
  loop: start=0, step=1, limit=4
  $region2: #{basic_conv2d.1} parent=0 // loop_pre_header
    _
  $region3: #{basic_conv2d.1} parent=0 // loop_header
    %s9 = sphi 0, %s13
    %p10 = scmp.ge.s32.totalorder %s9, 4
    %s16 = sphi 0, %s28
    %s17 = sphi 0, %s24
    %s18 = sphi 0, %s16
    %s19 = sphi 0, %s17
    %s20 = sphi 0, %s18
    %s21 = sphi 0, %s19
    %s31 = sphi 0, %s33
    %s34 = sphi 0, %s31
    %s35 = sphi 0, %s34
    %s51 = sphi 0, %s35
    %s55 = sphi 0, %s55
    %s57 = sphi 0, %s55
    %s58 = sphi 0, %s57
    %s72 = sphi 0, %s58
    %s76 = sphi 0, %s76
    %s78 = sphi 0, %s76
    %s79 = sphi 0, %s78
    %s93 = sphi 0, %s79
    %s101 = sphi 0, %s103
    %s104 = sphi 0, %s101
    %s105 = sphi 0, %s104
    %s121 = sphi 0, %s105
  $region4: #{basic_conv2d.1} parent=0 // loop_header_branch
    %12 = sbr.rel (%p10) target = $region8
  $region5: #{basic_conv2d.1} parent=0 // loop_body
    %s14 = ssub.s32 %s9, 1
    %s15 = ssub.s32 %s9, 2
    %s22 = sadd.s32 1, %s17
    %p23 = scmp.ge.s32.totalorder %s22, 1
    %s24 = scalar_select %p23, 0, %s22
    %s25 = sadd.s32 1, %s16
    %s26 = scalar_select %p23, %s25, %s16
    %p27 = scmp.ge.s32.totalorder %s26, 2
    %s28 = scalar_select %p27, 0, %s26
    %s29 = ssub.s32 %s16, %s28
    %p30 = scmp.eq.s32.totalorder %s29, 0
    %s32 = sadd.s32 %s31, 1
    %s33 = scalar_select %p30, %s31, %s32
    %p36 = pneg %p30
    %p37 = scmp.eq.s32.totalorder %s9, 1
    %p38 = por %p36, %p37
    %p39 = scmp.ne.s32.totalorder %s31, %s34
    %p40 = scmp.eq.s32.totalorder %s9, 0
    %p41 = por %p39, %p40
    %p42 = scmp.ne.s32.totalorder %s31, %s34
    %p43 = scmp.eq.s32.totalorder %s14, 1
    %p44 = por %p42, %p43
    %p45 = scmp.ne.s32.totalorder %s34, %s35
    %p46 = scmp.eq.s32.totalorder %s14, 0
    %p47 = por %p45, %p46
    %p48 = scmp.ne.s32.totalorder %s34, %s35
    %p49 = scmp.eq.s32.totalorder %s15, 1
    %p50 = por %p48, %p49
    %p52 = scmp.ne.s32.totalorder %s35, %s51
    %p53 = scmp.eq.s32.totalorder %s15, 0
    %p54 = por %p52, %p53
    %s56 = sadd.s32 %s55, 1
    %p59 = scmp.eq.s32.totalorder %s9, 1
    %p60 = scmp.ne.s32.totalorder %s55, %s57
    %p61 = scmp.eq.s32.totalorder %s9, 0
    %p62 = por %p60, %p61
    %p63 = scmp.ne.s32.totalorder %s55, %s57
    %p64 = scmp.eq.s32.totalorder %s14, 1
    %p65 = por %p63, %p64
    %p66 = scmp.ne.s32.totalorder %s57, %s58
    %p67 = scmp.eq.s32.totalorder %s14, 0
    %p68 = por %p66, %p67
    %p69 = scmp.ne.s32.totalorder %s57, %s58
    %p70 = scmp.eq.s32.totalorder %s15, 1
    %p71 = por %p69, %p70
    %p73 = scmp.ne.s32.totalorder %s58, %s72
    %p74 = scmp.eq.s32.totalorder %s15, 0
    %p75 = por %p73, %p74
    %s77 = sadd.s32 %s76, 1
    %p80 = scmp.eq.s32.totalorder %s9, 1
    %p81 = scmp.ne.s32.totalorder %s76, %s78
    %p82 = scmp.eq.s32.totalorder %s9, 0
    %p83 = por %p81, %p82
    %p84 = scmp.ne.s32.totalorder %s76, %s78
    %p85 = scmp.eq.s32.totalorder %s14, 1
    %p86 = por %p84, %p85
    %p87 = scmp.ne.s32.totalorder %s78, %s79
    %p88 = scmp.eq.s32.totalorder %s14, 0
    %p89 = por %p87, %p88
    %p90 = scmp.ne.s32.totalorder %s78, %s79
    %p91 = scmp.eq.s32.totalorder %s15, 1
    %p92 = por %p90, %p91
    %p94 = scmp.ne.s32.totalorder %s79, %s93
    %p95 = scmp.eq.s32.totalorder %s15, 0
    %p96 = por %p94, %p95
    %s97 = ssub.s32 %s16, %s28
    %s98 = ssub.s32 %s17, %s24
    %s99 = sor.u32 %s97, %s98
    %p100 = scmp.eq.s32.totalorder %s99, 0
    %s102 = sadd.s32 %s101, 1
    %s103 = scalar_select %p100, %s101, %s102
    %p106 = pneg %p100
    %p107 = scmp.eq.s32.totalorder %s9, 1
    %p108 = por %p106, %p107
    %p109 = scmp.ne.s32.totalorder %s101, %s104
    %p110 = scmp.eq.s32.totalorder %s9, 0
    %p111 = por %p109, %p110
    %p112 = scmp.ne.s32.totalorder %s101, %s104
    %p113 = scmp.eq.s32.totalorder %s14, 1
    %p114 = por %p112, %p113
    %p115 = scmp.ne.s32.totalorder %s104, %s105
    %p116 = scmp.eq.s32.totalorder %s14, 0
    %p117 = por %p115, %p116
    %p118 = scmp.ne.s32.totalorder %s104, %s105
    %p119 = scmp.eq.s32.totalorder %s15, 1
    %p120 = por %p118, %p119
    %p122 = scmp.ne.s32.totalorder %s105, %s121
    %p123 = scmp.eq.s32.totalorder %s15, 0
    %p124 = por %p122, %p123
    %p125 = scmp.le.s32.totalorder 1, %s9
    %p126 = scmp.lt.s32.totalorder %s9, 3
    %p127 = pnand %p125, %p126
    %p128 = pneg %p127
    // Predicated region
    $region9: #{basic_conv2d.1} parent=5 // pred_check
      _
    $region10: #{basic_conv2d.1} parent=5 // pred_check_branch
      %130 = sbr.rel (%p127) target = $region12
    $region11: #{basic_conv2d.1} parent=5 // pred_region
      %s131 = ssub.s32 %s9, 1
      // Predicated region
      $region13: #{basic_conv2d.1} parent=11 // pred_check
        %p132 = pneg %p68
      $region14: #{basic_conv2d.1} parent=11 // pred_check_branch
        %134 = sbr.rel (%p132) target = $region16
      $region15: #{basic_conv2d.1} parent=11 // pred_region
        _
      $region16: #{basic_conv2d.1} parent=11 // pred_fallthru
        _
      // Predicated region
      $region17: #{basic_conv2d.1} parent=11 // pred_check
        %p135 = pneg %p89
      $region18: #{basic_conv2d.1} parent=11 // pred_check_branch
        %137 = sbr.rel (%p135) target = $region20
      $region19: #{basic_conv2d.1} parent=11 // pred_region
        _
      $region20: #{basic_conv2d.1} parent=11 // pred_fallthru
        _
    $region12: #{basic_conv2d.1} parent=5 // pred_fallthru
      _
    %p138 = scmp.lt.s32.totalorder %s9, 2
    // Predicated region
    $region21: #{basic_conv2d.1} parent=5 // pred_check
      %p139 = pneg %p138
    $region22: #{basic_conv2d.1} parent=5 // pred_check_branch
      %141 = sbr.rel (%p139) target = $region24
    $region23: #{basic_conv2d.1} parent=5 // pred_region
      // Predicated region
      $region25: #{basic_conv2d.1} parent=23 // pred_check
        %p142 = pneg %p41
      $region26: #{basic_conv2d.1} parent=23 // pred_check_branch
        %144 = sbr.rel (%p142) target = $region28
      $region27: #{basic_conv2d.1} parent=23 // pred_region
        %p145 = scmp.lt.s32.totalorder %s16, 1
        %s146 = scalar_select %p145, %s16, 1
        %s147 = smul.addr %s146, 54
        %s148 = smul.addr %s147, 8
        %s149 = scalar_lea.vmem %s0, %s148
      $region28: #{basic_conv2d.1} parent=23 // pred_fallthru
        _
    $region24: #{basic_conv2d.1} parent=5 // pred_fallthru
      _
    %p150 = scmp.le.s32.totalorder 1, %s9
    %p151 = scmp.lt.s32.totalorder %s9, 3
    %p152 = pnand %p150, %p151
    %p153 = pneg %p152
    // Predicated region
    $region29: #{basic_conv2d.1} parent=5 // pred_check
      _
    $region30: #{basic_conv2d.1} parent=5 // pred_check_branch
      %155 = sbr.rel (%p152) target = $region32
    $region31: #{basic_conv2d.1} parent=5 // pred_region
      %s156 = ssub.s32 %s9, 1
      %p157 = scmp.lt.s32.totalorder %s18, 1
      %s158 = scalar_select %p157, %s18, 1
      %s159 = smul.addr %s158, 54
      %s160 = smul.addr %s159, 8
      %s161 = scalar_lea.vmem %s0, %s160
      %p162 = pneg %p47
      %p163 = pneg %p44
      %p164 = pneg %p68
      %p165 = pneg %p65
      %p166 = pneg %p89
      %p167 = pneg %p86
      %p168 = pneg %p117
      %p169 = pneg %p114
      %s170 = smul.u32 16, %s19
      %p171 = scmp.lt.s32.totalorder %s18, 1
      %s172 = scalar_select %p171, %s18, 1
      %p173 = scmp.lt.s32.totalorder %s170, 15
      %s174 = scalar_select %p173, %s170, 15
      %s175 = smul.addr %s174, 2
      %s176 = smul.addr %s172, 32
      %s177 = sadd.s32 %s175, %s176
      %s178 = smul.addr %s177, 8
      %s179 = scalar_lea.vmem %s3, %s178
      %p180 = scmp.lt.s32.totalorder %s18, 1
      %s181 = scalar_select %p180, %s18, 1
      %s182 = smul.addr %s181, 54
      %s183 = smul.addr %s182, 8
      %s184 = scalar_lea.vmem %s0, %s183
      %s185 = smul.u32 16, %s19
      %p186 = scmp.lt.s32.totalorder %s18, 1
      %s187 = scalar_select %p186, %s18, 1
      %p188 = scmp.lt.s32.totalorder %s185, 15
      %s189 = scalar_select %p188, %s185, 15
      %s190 = smul.addr %s189, 2
      %s191 = smul.addr %s187, 32
      %s192 = sadd.s32 %s190, %s191
      %s193 = smul.addr %s192, 8
      %s194 = scalar_lea.vmem %s3, %s193
      %s195 = smul.u32 16, %s19
      %s196 = smul.u32 %s19, 16
      %s197 = smul.u32 %s196, 24
      %s198 = scalar_lea.vmem %s184, %s197
      %v199 = vld [vmem:[%s198] sm:$0xff]
      %v200 = vld [vmem:[%s198 + $0x8] sm:$0xff]
      %v201 = vld [vmem:[%s198 + $0x18] sm:$0xff]
      %v202 = vld [vmem:[%s198 + $0x20] sm:$0xff]
      %v203 = vld [vmem:[%s198 + $0x30] sm:$0xff]
      %v204 = vld [vmem:[%s198 + $0x38] sm:$0xff]
      %v205 = vld [vmem:[%s198 + $0x48] sm:$0xff]
      %v206 = vld [vmem:[%s198 + $0x50] sm:$0xff]
      %v207 = vld [vmem:[%s198 + $0x60] sm:$0xff]
      %v208 = vld [vmem:[%s198 + $0x68] sm:$0xff]
      %v209 = vld [vmem:[%s198 + $0x78] sm:$0xff]
      %v210 = vld [vmem:[%s198 + $0x80] sm:$0xff]
      %v211 = vld [vmem:[%s198 + $0x90] sm:$0xff]
      %v212 = vld [vmem:[%s198 + $0x98] sm:$0xff]
      %v213 = vld [vmem:[%s198 + $0xa8] sm:$0xff]
      %v214 = vld [vmem:[%s198 + $0xb0] sm:$0xff]
      %v215 = vld [vmem:[%s198 + $0xc0] sm:$0xff]
      %v216 = vld [vmem:[%s198 + $0xc8] sm:$0xff]
      %v217 = vld [vmem:[%s198 + $0xd8] sm:$0xff]
      %v218 = vld [vmem:[%s198 + $0xe0] sm:$0xff]
      %v219 = vld [vmem:[%s198 + $0xf0] sm:$0xff]
      %v220 = vld [vmem:[%s198 + $0xf8] sm:$0xff]
      %v221 = vld [vmem:[%s198 + $0x108] sm:$0xff]
      %v222 = vld [vmem:[%s198 + $0x110] sm:$0xff]
      %v223 = vld [vmem:[%s198 + $0x120] sm:$0xff]
      %v224 = vld [vmem:[%s198 + $0x128] sm:$0xff]
      %v225 = vld [vmem:[%s198 + $0x138] sm:$0xff]
      %v226 = vld [vmem:[%s198 + $0x140] sm:$0xff]
      %v227 = vld [vmem:[%s198 + $0x150] sm:$0xff]
      %v228 = vld [vmem:[%s198 + $0x158] sm:$0xff]
      %v229 = vld [vmem:[%s198 + $0x168] sm:$0xff]
      %v230 = vld [vmem:[%s198 + $0x170] sm:$0xff]
      %v231 = vld [vmem:[%s1] sm:$0xf]
      %v232 = vld [vmem:[%s198 + $0x1] sm:$0xff]
      %v233 = vld [vmem:[%s198 + $0x9] sm:$0xff]
      %v234 = vld [vmem:[%s198 + $0x19] sm:$0xff]
      %v235 = vld [vmem:[%s198 + $0x21] sm:$0xff]
      %v236 = vld [vmem:[%s198 + $0x31] sm:$0xff]
      %v237 = vld [vmem:[%s198 + $0x39] sm:$0xff]
      %v238 = vld [vmem:[%s198 + $0x49] sm:$0xff]
      %v239 = vld [vmem:[%s198 + $0x51] sm:$0xff]
      %v240 = vld [vmem:[%s198 + $0x61] sm:$0xff]
      %v241 = vld [vmem:[%s198 + $0x69] sm:$0xff]
      %v242 = vld [vmem:[%s198 + $0x79] sm:$0xff]
      %v243 = vld [vmem:[%s198 + $0x81] sm:$0xff]
      %v244 = vld [vmem:[%s198 + $0x91] sm:$0xff]
      %v245 = vld [vmem:[%s198 + $0x99] sm:$0xff]
      %v246 = vld [vmem:[%s198 + $0xa9] sm:$0xff]
      %v247 = vld [vmem:[%s198 + $0xb1] sm:$0xff]
      %v248 = vld [vmem:[%s198 + $0xc1] sm:$0xff]
      %v249 = vld [vmem:[%s198 + $0xc9] sm:$0xff]
      %v250 = vld [vmem:[%s198 + $0xd9] sm:$0xff]
      %v251 = vld [vmem:[%s198 + $0xe1] sm:$0xff]
      %v252 = vld [vmem:[%s198 + $0xf1] sm:$0xff]
      %v253 = vld [vmem:[%s198 + $0xf9] sm:$0xff]
      %v254 = vld [vmem:[%s198 + $0x109] sm:$0xff]
      %v255 = vld [vmem:[%s198 + $0x111] sm:$0xff]
      %v256 = vld [vmem:[%s198 + $0x121] sm:$0xff]
      %v257 = vld [vmem:[%s198 + $0x129] sm:$0xff]
      %v258 = vld [vmem:[%s198 + $0x139] sm:$0xff]
      %v259 = vld [vmem:[%s198 + $0x141] sm:$0xff]
      %v260 = vld [vmem:[%s198 + $0x151] sm:$0xff]
      %v261 = vld [vmem:[%s198 + $0x159] sm:$0xff]
      %v262 = vld [vmem:[%s198 + $0x169] sm:$0xff]
      %v263 = vld [vmem:[%s198 + $0x171] sm:$0xff]
      %s264 = scalar_lea.vmem %s1, 4
      %v265 = vld [vmem:[%s264] sm:$0xf]
      %vm266 = vcmask 31744
      %v268 = vsel %vm266, %v232, 0
      %v271 = vsel %vm266, %v233, 0
      %v274 = vsel %vm266, %v234, 0
      %v277 = vsel %vm266, %v235, 0
      %v280 = vsel %vm266, %v236, 0
      %v283 = vsel %vm266, %v237, 0
      %v286 = vsel %vm266, %v238, 0
      %v289 = vsel %vm266, %v239, 0
      %v292 = vsel %vm266, %v240, 0
      %v295 = vsel %vm266, %v241, 0
      %v298 = vsel %vm266, %v242, 0
      %v301 = vsel %vm266, %v243, 0
      %v304 = vsel %vm266, %v244, 0
      %v307 = vsel %vm266, %v245, 0
      %v310 = vsel %vm266, %v246, 0
      %v313 = vsel %vm266, %v247, 0
      %v316 = vsel %vm266, %v248, 0
      %v319 = vsel %vm266, %v249, 0
      %v322 = vsel %vm266, %v250, 0
      %v325 = vsel %vm266, %v251, 0
      %v328 = vsel %vm266, %v252, 0
      %v331 = vsel %vm266, %v253, 0
      %v334 = vsel %vm266, %v254, 0
      %v337 = vsel %vm266, %v255, 0
      %v340 = vsel %vm266, %v256, 0
      %v343 = vsel %vm266, %v257, 0
      %v346 = vsel %vm266, %v258, 0
      %v349 = vsel %vm266, %v259, 0
      %v352 = vsel %vm266, %v260, 0
      %v355 = vsel %vm266, %v261, 0
      %v358 = vsel %vm266, %v262, 0
      %v361 = vsel %vm266, %v263, 0
      %vm363 = vcmask 1043456
      %v365 = vsel %vm363, %v265, 0
      %367 = vmatprep.subr.mxu0 0.0
      %368 = vmatpush1.msra.mxu0 %v365
      %369 = vmatprep.subr.mxu0 0.0
      %370 = vmatpush1.msra.mxu0 0.0
      %371 = vmatprep.subr.mxu0 0.0
      %372 = vmatpush1.msra.mxu0 0.0
      %373 = vmatprep.subr.mxu0 0.0
      %374 = vmatpush1.msra.mxu0 0.0
      %375 = vmatprep.subr.mxu0 0.0
      %376 = vmatpush1.msra.mxu0 0.0
      %377 = vmatprep.subr.mxu0 0.0
      %378 = vmatpush1.msra.mxu0 0.0
      %379 = vmatprep.subr.mxu0 0.0
      %380 = vmatpush1.msra.mxu0 0.0
      %381 = vmatprep.subr.mxu0 0.0
      %382 = vmatpush1.msra.mxu0 0.0
      %383 = vmatprep.subr.mxu0 0.0
      %384 = vmatpush1.msra.mxu0 0.0
      %385 = vmatprep.subr.mxu0 0.0
      %386 = vmatpush1.msra.mxu0 0.0
      %387 = vmatprep.subr.mxu0 0.0
      %388 = vmatpush1.msra.mxu0 0.0
      %389 = vmatprep.subr.mxu0 0.0
      %390 = vmatpush1.msra.mxu0 0.0
      %391 = vmatprep.subr.mxu0 0.0
      %392 = vmatpush1.msra.mxu0 0.0
      %393 = vmatprep.subr.mxu0 0.0
      %394 = vmatpush1.msra.mxu0 0.0
      %395 = vmatprep.subr.mxu0 0.0
      %396 = vmatpush1.msra.mxu0 0.0
      %397 = vmatprep.subr.mxu0 0.0
      %398 = vmatpush1.msra.mxu0 0.0
      %399 = vmatprep.subr.mxu0 0.0
      %400 = vmatpush1.msra.mxu0 0.0
      %401 = vmatprep.subr.mxu0 0.0
      %402 = vmatpush1.msra.mxu0 0.0
      %403 = vmatprep.subr.mxu0 0.0
      %404 = vmatpush1.msra.mxu0 0.0
      %405 = vmatprep.subr.mxu0 0.0
      %406 = vmatpush1.msra.mxu0 0.0
      %407 = vmatprep.subr.mxu0 0.0
      %408 = vmatpush1.msra.mxu0 0.0
      %409 = vmatprep.subr.mxu0 0.0
      %410 = vmatpush1.msra.mxu0 0.0
      %411 = vmatprep.subr.mxu0 0.0
      %412 = vmatpush1.msra.mxu0 0.0
      %413 = vmatprep.subr.mxu0 0.0
      %414 = vmatpush1.msra.mxu0 0.0
      %415 = vmatprep.subr.mxu0 0.0
      %416 = vmatpush1.msra.mxu0 0.0
      %417 = vmatprep.subr.mxu0 0.0
      %418 = vmatpush1.msra.mxu0 0.0
      %419 = vmatprep.subr.mxu0 0.0
      %420 = vmatpush1.msra.mxu0 0.0
      %421 = vmatprep.subr.mxu0 0.0
      %422 = vmatpush1.msra.mxu0 0.0
      %423 = vmatprep.subr.mxu0 0.0
      %424 = vmatpush1.msra.mxu0 0.0
      %425 = vmatprep.subr.mxu0 0.0
      %426 = vmatpush1.msra.mxu0 0.0
      %427 = vmatprep.subr.mxu0 0.0
      %428 = vmatpush1.msra.mxu0 0.0
      %429 = vmatprep.subr.mxu0 0.0
      %430 = vmatpush1.msra.mxu0 0.0
      %431 = vmatprep.mubr.f32.mxu0 0.0
      %432 = vmatmul.mubr.f32.gmra.mrb[0].mxu0 %v268
      %v433 = vpop.f32.mrb[0].mxu0
      %v434 = vadd.f32 0.0, %v433
      %v435 = vpop.f32.mrb[0].mxu0
      %436 = vmatprep.mubr.f32.mxu0 0.0
      %437 = vmatmul.mubr.f32.gmra.mrb[0].mxu0 %v271
      %v438 = vpop.f32.mrb[0].mxu0
      %v439 = vadd.f32 0.0, %v438
      %v440 = vpop.f32.mrb[0].mxu0
      %441 = vmatprep.mubr.f32.mxu0 0.0
      %442 = vmatmul.mubr.f32.gmra.mrb[0].mxu0 %v274
      %v443 = vpop.f32.mrb[0].mxu0
      %v444 = vadd.f32 0.0, %v443
      %v445 = vpop.f32.mrb[0].mxu0
      %446 = vmatprep.mubr.f32.mxu0 0.0
      %447 = vmatmul.mubr.f32.gmra.mrb[0].mxu0 %v277
      %v448 = vpop.f32.mrb[0].mxu0
      %v449 = vadd.f32 0.0, %v448
      %v450 = vpop.f32.mrb[0].mxu0
      %451 = vmatprep.mubr.f32.mxu0 0.0
      %452 = vmatmul.mubr.f32.gmra.mrb[0].mxu0 %v280
      %v453 = vpop.f32.mrb[0].mxu0
      %v454 = vadd.f32 0.0, %v453
      %v455 = vpop.f32.mrb[0].mxu0
      %456 = vmatprep.mubr.f32.mxu0 0.0
      %457 = vmatmul.mubr.f32.gmra.mrb[0].mxu0 %v283
      %v458 = vpop.f32.mrb[0].mxu0
      %v459 = vadd.f32 0.0, %v458
      %v460 = vpop.f32.mrb[0].mxu0
      %461 = vmatprep.mubr.f32.mxu0 0.0
      %462 = vmatmul.mubr.f32.gmra.mrb[0].mxu0 %v286
      %v463 = vpop.f32.mrb[0].mxu0
      %v464 = vadd.f32 0.0, %v463
      %v465 = vpop.f32.mrb[0].mxu0
      %466 = vmatprep.mubr.f32.mxu0 0.0
      %467 = vmatmul.mubr.f32.gmra.mrb[0].mxu0 %v289
      %v468 = vpop.f32.mrb[0].mxu0
      %v469 = vadd.f32 0.0, %v468
      %v470 = vpop.f32.mrb[0].mxu0
      %471 = vmatprep.mubr.f32.mxu0 0.0
      %472 = vmatmul.mubr.f32.gmra.mrb[0].mxu0 %v292
      %v473 = vpop.f32.mrb[0].mxu0
      %v474 = vadd.f32 0.0, %v473
      %v475 = vpop.f32.mrb[0].mxu0
      %476 = vmatprep.mubr.f32.mxu0 0.0
      %477 = vmatmul.mubr.f32.gmra.mrb[0].mxu0 %v295
      %v478 = vpop.f32.mrb[0].mxu0
      %v479 = vadd.f32 0.0, %v478
      %v480 = vpop.f32.mrb[0].mxu0
      %481 = vmatprep.mubr.f32.mxu0 0.0
      %482 = vmatmul.mubr.f32.gmra.mrb[0].mxu0 %v298
      %v483 = vpop.f32.mrb[0].mxu0
      %v484 = vadd.f32 0.0, %v483
      %v485 = vpop.f32.mrb[0].mxu0
      %486 = vmatprep.mubr.f32.mxu0 0.0
      %487 = vmatmul.mubr.f32.gmra.mrb[0].mxu0 %v301
      %v488 = vpop.f32.mrb[0].mxu0
      %v489 = vadd.f32 0.0, %v488
      %v490 = vpop.f32.mrb[0].mxu0
      %491 = vmatprep.mubr.f32.mxu0 0.0
      %492 = vmatmul.mubr.f32.gmra.mrb[0].mxu0 %v304
      %v493 = vpop.f32.mrb[0].mxu0
      %v494 = vadd.f32 0.0, %v493
      %v495 = vpop.f32.mrb[0].mxu0
      %496 = vmatprep.mubr.f32.mxu0 0.0
      %497 = vmatmul.mubr.f32.gmra.mrb[0].mxu0 %v307
      %v498 = vpop.f32.mrb[0].mxu0
      %v499 = vadd.f32 0.0, %v498
      %v500 = vpop.f32.mrb[0].mxu0
      %501 = vmatprep.mubr.f32.mxu0 0.0
      %502 = vmatmul.mubr.f32.gmra.mrb[0].mxu0 %v310
      %v503 = vpop.f32.mrb[0].mxu0
      %v504 = vadd.f32 0.0, %v503
      %v505 = vpop.f32.mrb[0].mxu0
      %506 = vmatprep.mubr.f32.mxu0 0.0
      %507 = vmatmul.mubr.f32.gmra.mrb[0].mxu0 %v313
      %v508 = vpop.f32.mrb[0].mxu0
      %v509 = vadd.f32 0.0, %v508
      %v510 = vpop.f32.mrb[0].mxu0
      %511 = vmatprep.mubr.f32.mxu0 0.0
      %512 = vmatmul.mubr.f32.gmra.mrb[0].mxu0 %v316
      %v513 = vpop.f32.mrb[0].mxu0
      %v514 = vadd.f32 0.0, %v513
      %v515 = vpop.f32.mrb[0].mxu0
      %516 = vmatprep.mubr.f32.mxu0 0.0
      %517 = vmatmul.mubr.f32.gmra.mrb[0].mxu0 %v319
      %v518 = vpop.f32.mrb[0].mxu0
      %v519 = vadd.f32 0.0, %v518
      %v520 = vpop.f32.mrb[0].mxu0
      %521 = vmatprep.mubr.f32.mxu0 0.0
      %522 = vmatmul.mubr.f32.gmra.mrb[0].mxu0 %v322
      %v523 = vpop.f32.mrb[0].mxu0
      %v524 = vadd.f32 0.0, %v523
      %v525 = vpop.f32.mrb[0].mxu0
      %526 = vmatprep.mubr.f32.mxu0 0.0
      %527 = vmatmul.mubr.f32.gmra.mrb[0].mxu0 %v325
      %v528 = vpop.f32.mrb[0].mxu0
      %v529 = vadd.f32 0.0, %v528
      %v530 = vpop.f32.mrb[0].mxu0
      %531 = vmatprep.mubr.f32.mxu0 0.0
      %532 = vmatmul.mubr.f32.gmra.mrb[0].mxu0 %v328
      %v533 = vpop.f32.mrb[0].mxu0
      %v534 = vadd.f32 0.0, %v533
      %v535 = vpop.f32.mrb[0].mxu0
      %536 = vmatprep.mubr.f32.mxu0 0.0
      %537 = vmatmul.mubr.f32.gmra.mrb[0].mxu0 %v331
      %v538 = vpop.f32.mrb[0].mxu0
      %v539 = vadd.f32 0.0, %v538
      %v540 = vpop.f32.mrb[0].mxu0
      %541 = vmatprep.mubr.f32.mxu0 0.0
      %542 = vmatmul.mubr.f32.gmra.mrb[0].mxu0 %v334
      %v543 = vpop.f32.mrb[0].mxu0
      %v544 = vadd.f32 0.0, %v543
      %v545 = vpop.f32.mrb[0].mxu0
      %546 = vmatprep.mubr.f32.mxu0 0.0
      %547 = vmatmul.mubr.f32.gmra.mrb[0].mxu0 %v337
      %v548 = vpop.f32.mrb[0].mxu0
      %v549 = vadd.f32 0.0, %v548
      %v550 = vpop.f32.mrb[0].mxu0
      %551 = vmatprep.mubr.f32.mxu0 0.0
      %552 = vmatmul.mubr.f32.gmra.mrb[0].mxu0 %v340
      %v553 = vpop.f32.mrb[0].mxu0
      %v554 = vadd.f32 0.0, %v553
      %v555 = vpop.f32.mrb[0].mxu0
      %556 = vmatprep.mubr.f32.mxu0 0.0
      %557 = vmatmul.mubr.f32.gmra.mrb[0].mxu0 %v343
      %v558 = vpop.f32.mrb[0].mxu0
      %v559 = vadd.f32 0.0, %v558
      %v560 = vpop.f32.mrb[0].mxu0
      %561 = vmatprep.mubr.f32.mxu0 0.0
      %562 = vmatmul.mubr.f32.gmra.mrb[0].mxu0 %v346
      %v563 = vpop.f32.mrb[0].mxu0
      %v564 = vadd.f32 0.0, %v563
      %v565 = vpop.f32.mrb[0].mxu0
      %566 = vmatprep.mubr.f32.mxu0 0.0
      %567 = vmatmul.mubr.f32.gmra.mrb[0].mxu0 %v349
      %v568 = vpop.f32.mrb[0].mxu0
      %v569 = vadd.f32 0.0, %v568
      %v570 = vpop.f32.mrb[0].mxu0
      %571 = vmatprep.mubr.f32.mxu0 0.0
      %572 = vmatmul.mubr.f32.gmra.mrb[0].mxu0 %v352
      %v573 = vpop.f32.mrb[0].mxu0
      %v574 = vadd.f32 0.0, %v573
      %v575 = vpop.f32.mrb[0].mxu0
      %576 = vmatprep.mubr.f32.mxu0 0.0
      %577 = vmatmul.mubr.f32.gmra.mrb[0].mxu0 %v355
      %v578 = vpop.f32.mrb[0].mxu0
      %v579 = vadd.f32 0.0, %v578
      %v580 = vpop.f32.mrb[0].mxu0
      %581 = vmatprep.mubr.f32.mxu0 0.0
      %582 = vmatmul.mubr.f32.gmra.mrb[0].mxu0 %v358
      %v583 = vpop.f32.mrb[0].mxu0
      %v584 = vadd.f32 0.0, %v583
      %v585 = vpop.f32.mrb[0].mxu0
      %586 = vmatprep.mubr.f32.mxu0 0.0
      %587 = vmatmul.mubr.f32.gmra.mrb[0].mxu0 %v361
      %v588 = vpop.f32.mrb[0].mxu0
      %v589 = vadd.f32 0.0, %v588
      %v590 = vpop.f32.mrb[0].mxu0
      %591 = vdwg.mxu0
      %v593 = vsel %vm266, %v199, 0
      %v596 = vsel %vm266, %v200, 0
      %v599 = vsel %vm266, %v201, 0
      %v602 = vsel %vm266, %v202, 0
      %v605 = vsel %vm266, %v203, 0
      %v608 = vsel %vm266, %v204, 0
      %v611 = vsel %vm266, %v205, 0
      %v614 = vsel %vm266, %v206, 0
      %v617 = vsel %vm266, %v207, 0
      %v620 = vsel %vm266, %v208, 0
      %v623 = vsel %vm266, %v209, 0
      %v626 = vsel %vm266, %v210, 0
      %v629 = vsel %vm266, %v211, 0
      %v632 = vsel %vm266, %v212, 0
      %v635 = vsel %vm266, %v213, 0
      %v638 = vsel %vm266, %v214, 0
      %v641 = vsel %vm266, %v215, 0
      %v644 = vsel %vm266, %v216, 0
      %v647 = vsel %vm266, %v217, 0
      %v650 = vsel %vm266, %v218, 0
      %v653 = vsel %vm266, %v219, 0
      %v656 = vsel %vm266, %v220, 0
      %v659 = vsel %vm266, %v221, 0
      %v662 = vsel %vm266, %v222, 0
      %v665 = vsel %vm266, %v223, 0
      %v668 = vsel %vm266, %v224, 0
      %v671 = vsel %vm266, %v225, 0
      %v674 = vsel %vm266, %v226, 0
      %v677 = vsel %vm266, %v227, 0
      %v680 = vsel %vm266, %v228, 0
      %v683 = vsel %vm266, %v229, 0
      %v686 = vsel %vm266, %v230, 0
      %v689 = vsel %vm363, %v231, 0
      %691 = vmatprep.subr.mxu0 0.0
      %692 = vmatpush1.msra.mxu0 %v689
      %693 = vmatprep.subr.mxu0 0.0
      %694 = vmatpush1.msra.mxu0 0.0
      %695 = vmatprep.subr.mxu0 0.0
      %696 = vmatpush1.msra.mxu0 0.0
      %697 = vmatprep.subr.mxu0 0.0
      %698 = vmatpush1.msra.mxu0 0.0
      %699 = vmatprep.subr.mxu0 0.0
      %700 = vmatpush1.msra.mxu0 0.0
      %701 = vmatprep.subr.mxu0 0.0
      %702 = vmatpush1.msra.mxu0 0.0
      %703 = vmatprep.subr.mxu0 0.0
      %704 = vmatpush1.msra.mxu0 0.0
      %705 = vmatprep.subr.mxu0 0.0
      %706 = vmatpush1.msra.mxu0 0.0
      %707 = vmatprep.subr.mxu0 0.0
      %708 = vmatpush1.msra.mxu0 0.0
      %709 = vmatprep.subr.mxu0 0.0
      %710 = vmatpush1.msra.mxu0 0.0
      %711 = vmatprep.subr.mxu0 0.0
      %712 = vmatpush1.msra.mxu0 0.0
      %713 = vmatprep.subr.mxu0 0.0
      %714 = vmatpush1.msra.mxu0 0.0
      %715 = vmatprep.subr.mxu0 0.0
      %716 = vmatpush1.msra.mxu0 0.0
      %717 = vmatprep.subr.mxu0 0.0
      %718 = vmatpush1.msra.mxu0 0.0
      %719 = vmatprep.subr.mxu0 0.0
      %720 = vmatpush1.msra.mxu0 0.0
      %721 = vmatprep.subr.mxu0 0.0
      %722 = vmatpush1.msra.mxu0 0.0
      %723 = vmatprep.subr.mxu0 0.0
      %724 = vmatpush1.msra.mxu0 0.0
      %725 = vmatprep.subr.mxu0 0.0
      %726 = vmatpush1.msra.mxu0 0.0
      %727 = vmatprep.subr.mxu0 0.0
      %728 = vmatpush1.msra.mxu0 0.0
      %729 = vmatprep.subr.mxu0 0.0
      %730 = vmatpush1.msra.mxu0 0.0
      %731 = vmatprep.subr.mxu0 0.0
      %732 = vmatpush1.msra.mxu0 0.0
      %733 = vmatprep.subr.mxu0 0.0
      %734 = vmatpush1.msra.mxu0 0.0
      %735 = vmatprep.subr.mxu0 0.0
      %736 = vmatpush1.msra.mxu0 0.0
      %737 = vmatprep.subr.mxu0 0.0
      %738 = vmatpush1.msra.mxu0 0.0
      %739 = vmatprep.subr.mxu0 0.0
      %740 = vmatpush1.msra.mxu0 0.0
      %741 = vmatprep.subr.mxu0 0.0
      %742 = vmatpush1.msra.mxu0 0.0
      %743 = vmatprep.subr.mxu0 0.0
      %744 = vmatpush1.msra.mxu0 0.0
      %745 = vmatprep.subr.mxu0 0.0
      %746 = vmatpush1.msra.mxu0 0.0
      %747 = vmatprep.subr.mxu0 0.0
      %748 = vmatpush1.msra.mxu0 0.0
      %749 = vmatprep.subr.mxu0 0.0
      %750 = vmatpush1.msra.mxu0 0.0
      %751 = vmatprep.subr.mxu0 0.0
      %752 = vmatpush1.msra.mxu0 0.0
      %753 = vmatprep.subr.mxu0 0.0
      %754 = vmatpush1.msra.mxu0 0.0
      %755 = vmatprep.mubr.f32.mxu0 0.0
      %756 = vmatmul.mubr.f32.gmra.mrb[0].mxu0 %v593
      %v757 = vpop.f32.mrb[0].mxu0
      %v758 = vadd.f32 %v434, %v757
      %v759 = vpop.f32.mrb[0].mxu0
      %760 = vmatprep.mubr.f32.mxu0 0.0
      %761 = vmatmul.mubr.f32.gmra.mrb[0].mxu0 %v596
      %v762 = vpop.f32.mrb[0].mxu0
      %v763 = vadd.f32 %v439, %v762
      %v764 = vpop.f32.mrb[0].mxu0
      %765 = vmatprep.mubr.f32.mxu0 0.0
      %766 = vmatmul.mubr.f32.gmra.mrb[0].mxu0 %v599
      %v767 = vpop.f32.mrb[0].mxu0
      %v768 = vadd.f32 %v444, %v767
      %v769 = vpop.f32.mrb[0].mxu0
      %770 = vmatprep.mubr.f32.mxu0 0.0
      %771 = vmatmul.mubr.f32.gmra.mrb[0].mxu0 %v602
      %v772 = vpop.f32.mrb[0].mxu0
      %v773 = vadd.f32 %v449, %v772
      %v774 = vpop.f32.mrb[0].mxu0
      %775 = vmatprep.mubr.f32.mxu0 0.0
      %776 = vmatmul.mubr.f32.gmra.mrb[0].mxu0 %v605
      %v777 = vpop.f32.mrb[0].mxu0
      %v778 = vadd.f32 %v454, %v777
      %v779 = vpop.f32.mrb[0].mxu0
      %780 = vmatprep.mubr.f32.mxu0 0.0
      %781 = vmatmul.mubr.f32.gmra.mrb[0].mxu0 %v608
      %v782 = vpop.f32.mrb[0].mxu0
      %v783 = vadd.f32 %v459, %v782
      %v784 = vpop.f32.mrb[0].mxu0
      %785 = vmatprep.mubr.f32.mxu0 0.0
      %786 = vmatmul.mubr.f32.gmra.mrb[0].mxu0 %v611
      %v787 = vpop.f32.mrb[0].mxu0
      %v788 = vadd.f32 %v464, %v787
      %v789 = vpop.f32.mrb[0].mxu0
      %790 = vmatprep.mubr.f32.mxu0 0.0
      %791 = vmatmul.mubr.f32.gmra.mrb[0].mxu0 %v614
      %v792 = vpop.f32.mrb[0].mxu0
      %v793 = vadd.f32 %v469, %v792
      %v794 = vpop.f32.mrb[0].mxu0
      %795 = vmatprep.mubr.f32.mxu0 0.0
      %796 = vmatmul.mubr.f32.gmra.mrb[0].mxu0 %v617
      %v797 = vpop.f32.mrb[0].mxu0
      %v798 = vadd.f32 %v474, %v797
      %v799 = vpop.f32.mrb[0].mxu0
      %800 = vmatprep.mubr.f32.mxu0 0.0
      %801 = vmatmul.mubr.f32.gmra.mrb[0].mxu0 %v620
      %v802 = vpop.f32.mrb[0].mxu0
      %v803 = vadd.f32 %v479, %v802
      %v804 = vpop.f32.mrb[0].mxu0
      %805 = vmatprep.mubr.f32.mxu0 0.0
      %806 = vmatmul.mubr.f32.gmra.mrb[0].mxu0 %v623
      %v807 = vpop.f32.mrb[0].mxu0
      %v808 = vadd.f32 %v484, %v807
      %v809 = vpop.f32.mrb[0].mxu0
      %810 = vmatprep.mubr.f32.mxu0 0.0
      %811 = vmatmul.mubr.f32.gmra.mrb[0].mxu0 %v626
      %v812 = vpop.f32.mrb[0].mxu0
      %v813 = vadd.f32 %v489, %v812
      %v814 = vpop.f32.mrb[0].mxu0
      %815 = vmatprep.mubr.f32.mxu0 0.0
      %816 = vmatmul.mubr.f32.gmra.mrb[0].mxu0 %v629
      %v817 = vpop.f32.mrb[0].mxu0
      %v818 = vadd.f32 %v494, %v817
      %v819 = vpop.f32.mrb[0].mxu0
      %820 = vmatprep.mubr.f32.mxu0 0.0
      %821 = vmatmul.mubr.f32.gmra.mrb[0].mxu0 %v632
      %v822 = vpop.f32.mrb[0].mxu0
      %v823 = vadd.f32 %v499, %v822
      %v824 = vpop.f32.mrb[0].mxu0
      %825 = vmatprep.mubr.f32.mxu0 0.0
      %826 = vmatmul.mubr.f32.gmra.mrb[0].mxu0 %v635
      %v827 = vpop.f32.mrb[0].mxu0
      %v828 = vadd.f32 %v504, %v827
      %v829 = vpop.f32.mrb[0].mxu0
      %830 = vmatprep.mubr.f32.mxu0 0.0
      %831 = vmatmul.mubr.f32.gmra.mrb[0].mxu0 %v638
      %v832 = vpop.f32.mrb[0].mxu0
      %v833 = vadd.f32 %v509, %v832
      %v834 = vpop.f32.mrb[0].mxu0
      %835 = vmatprep.mubr.f32.mxu0 0.0
      %836 = vmatmul.mubr.f32.gmra.mrb[0].mxu0 %v641
      %v837 = vpop.f32.mrb[0].mxu0
      %v838 = vadd.f32 %v514, %v837
      %v839 = vpop.f32.mrb[0].mxu0
      %840 = vmatprep.mubr.f32.mxu0 0.0
      %841 = vmatmul.mubr.f32.gmra.mrb[0].mxu0 %v644
      %v842 = vpop.f32.mrb[0].mxu0
      %v843 = vadd.f32 %v519, %v842
      %v844 = vpop.f32.mrb[0].mxu0
      %845 = vmatprep.mubr.f32.mxu0 0.0
      %846 = vmatmul.mubr.f32.gmra.mrb[0].mxu0 %v647
      %v847 = vpop.f32.mrb[0].mxu0
      %v848 = vadd.f32 %v524, %v847
      %v849 = vpop.f32.mrb[0].mxu0
      %850 = vmatprep.mubr.f32.mxu0 0.0
      %851 = vmatmul.mubr.f32.gmra.mrb[0].mxu0 %v650
      %v852 = vpop.f32.mrb[0].mxu0
      %v853 = vadd.f32 %v529, %v852
      %v854 = vpop.f32.mrb[0].mxu0
      %855 = vmatprep.mubr.f32.mxu0 0.0
      %856 = vmatmul.mubr.f32.gmra.mrb[0].mxu0 %v653
      %v857 = vpop.f32.mrb[0].mxu0
      %v858 = vadd.f32 %v534, %v857
      %v859 = vpop.f32.mrb[0].mxu0
      %860 = vmatprep.mubr.f32.mxu0 0.0
      %861 = vmatmul.mubr.f32.gmra.mrb[0].mxu0 %v656
      %v862 = vpop.f32.mrb[0].mxu0
      %v863 = vadd.f32 %v539, %v862
      %v864 = vpop.f32.mrb[0].mxu0
      %865 = vmatprep.mubr.f32.mxu0 0.0
      %866 = vmatmul.mubr.f32.gmra.mrb[0].mxu0 %v659
      %v867 = vpop.f32.mrb[0].mxu0
      %v868 = vadd.f32 %v544, %v867
      %v869 = vpop.f32.mrb[0].mxu0
      %870 = vmatprep.mubr.f32.mxu0 0.0
      %871 = vmatmul.mubr.f32.gmra.mrb[0].mxu0 %v662
      %v872 = vpop.f32.mrb[0].mxu0
      %v873 = vadd.f32 %v549, %v872
      %v874 = vpop.f32.mrb[0].mxu0
      %875 = vmatprep.mubr.f32.mxu0 0.0
      %876 = vmatmul.mubr.f32.gmra.mrb[0].mxu0 %v665
      %v877 = vpop.f32.mrb[0].mxu0
      %v878 = vadd.f32 %v554, %v877
      %v879 = vpop.f32.mrb[0].mxu0
      %880 = vmatprep.mubr.f32.mxu0 0.0
      %881 = vmatmul.mubr.f32.gmra.mrb[0].mxu0 %v668
      %v882 = vpop.f32.mrb[0].mxu0
      %v883 = vadd.f32 %v559, %v882
      %v884 = vpop.f32.mrb[0].mxu0
      %885 = vmatprep.mubr.f32.mxu0 0.0
      %886 = vmatmul.mubr.f32.gmra.mrb[0].mxu0 %v671
      %v887 = vpop.f32.mrb[0].mxu0
      %v888 = vadd.f32 %v564, %v887
      %v889 = vpop.f32.mrb[0].mxu0
      %890 = vmatprep.mubr.f32.mxu0 0.0
      %891 = vmatmul.mubr.f32.gmra.mrb[0].mxu0 %v674
      %v892 = vpop.f32.mrb[0].mxu0
      %v893 = vadd.f32 %v569, %v892
      %v894 = vpop.f32.mrb[0].mxu0
      %895 = vmatprep.mubr.f32.mxu0 0.0
      %896 = vmatmul.mubr.f32.gmra.mrb[0].mxu0 %v677
      %v897 = vpop.f32.mrb[0].mxu0
      %v898 = vadd.f32 %v574, %v897
      %v899 = vpop.f32.mrb[0].mxu0
      %900 = vmatprep.mubr.f32.mxu0 0.0
      %901 = vmatmul.mubr.f32.gmra.mrb[0].mxu0 %v680
      %v902 = vpop.f32.mrb[0].mxu0
      %v903 = vadd.f32 %v579, %v902
      %v904 = vpop.f32.mrb[0].mxu0
      %905 = vmatprep.mubr.f32.mxu0 0.0
      %906 = vmatmul.mubr.f32.gmra.mrb[0].mxu0 %v683
      %v907 = vpop.f32.mrb[0].mxu0
      %v908 = vadd.f32 %v584, %v907
      %v909 = vpop.f32.mrb[0].mxu0
      %910 = vmatprep.mubr.f32.mxu0 0.0
      %911 = vmatmul.mubr.f32.gmra.mrb[0].mxu0 %v686
      %v912 = vpop.f32.mrb[0].mxu0
      %v913 = vadd.f32 %v589, %v912
      %v914 = vpop.f32.mrb[0].mxu0
      %915 = vdwg.mxu0
      %v916 = vld [vmem:[%s198 + $0x2] sm:$0xff]
      %v917 = vld [vmem:[%s198 + $0xa] sm:$0xff]
      %v918 = vld [vmem:[%s198 + $0x1a] sm:$0xff]
      %v919 = vld [vmem:[%s198 + $0x22] sm:$0xff]
      %v920 = vld [vmem:[%s198 + $0x32] sm:$0xff]
      %v921 = vld [vmem:[%s198 + $0x3a] sm:$0xff]
      %v922 = vld [vmem:[%s198 + $0x4a] sm:$0xff]
      %v923 = vld [vmem:[%s198 + $0x52] sm:$0xff]
      %v924 = vld [vmem:[%s198 + $0x62] sm:$0xff]
      %v925 = vld [vmem:[%s198 + $0x6a] sm:$0xff]
      %v926 = vld [vmem:[%s198 + $0x7a] sm:$0xff]
      %v927 = vld [vmem:[%s198 + $0x82] sm:$0xff]
      %v928 = vld [vmem:[%s198 + $0x92] sm:$0xff]
      %v929 = vld [vmem:[%s198 + $0x9a] sm:$0xff]
      %v930 = vld [vmem:[%s198 + $0xaa] sm:$0xff]
      %v931 = vld [vmem:[%s198 + $0xb2] sm:$0xff]
      %v932 = vld [vmem:[%s198 + $0xc2] sm:$0xff]
      %v933 = vld [vmem:[%s198 + $0xca] sm:$0xff]
      %v934 = vld [vmem:[%s198 + $0xda] sm:$0xff]
      %v935 = vld [vmem:[%s198 + $0xe2] sm:$0xff]
      %v936 = vld [vmem:[%s198 + $0xf2] sm:$0xff]
      %v937 = vld [vmem:[%s198 + $0xfa] sm:$0xff]
      %v938 = vld [vmem:[%s198 + $0x10a] sm:$0xff]
      %v939 = vld [vmem:[%s198 + $0x112] sm:$0xff]
      %v940 = vld [vmem:[%s198 + $0x122] sm:$0xff]
      %v941 = vld [vmem:[%s198 + $0x12a] sm:$0xff]
      %v942 = vld [vmem:[%s198 + $0x13a] sm:$0xff]
      %v943 = vld [vmem:[%s198 + $0x142] sm:$0xff]
      %v944 = vld [vmem:[%s198 + $0x152] sm:$0xff]
      %v945 = vld [vmem:[%s198 + $0x15a] sm:$0xff]
      %v946 = vld [vmem:[%s198 + $0x16a] sm:$0xff]
      %v947 = vld [vmem:[%s198 + $0x172] sm:$0xff]
      %s948 = scalar_lea.vmem %s1, 8
      %v949 = vld [vmem:[%s948] sm:$0xf]
      %v951 = vsel %vm266, %v916, 0
      %v954 = vsel %vm266, %v917, 0
      %v957 = vsel %vm266, %v918, 0
      %v960 = vsel %vm266, %v919, 0
      %v963 = vsel %vm266, %v920, 0
      %v966 = vsel %vm266, %v921, 0
      %v969 = vsel %vm266, %v922, 0
      %v972 = vsel %vm266, %v923, 0
      %v975 = vsel %vm266, %v924, 0
      %v978 = vsel %vm266, %v925, 0
      %v981 = vsel %vm266, %v926, 0
      %v984 = vsel %vm266, %v927, 0
      %v987 = vsel %vm266, %v928, 0
      %v990 = vsel %vm266, %v929, 0
      %v993 = vsel %vm266, %v930, 0
      %v996 = vsel %vm266, %v931, 0
      %v999 = vsel %vm266, %v932, 0
      %v1002 = vsel %vm266, %v933, 0
      %v1005 = vsel %vm266, %v934, 0
      %v1008 = vsel %vm266, %v935, 0
      %v1011 = vsel %vm266, %v936, 0
      %v1014 = vsel %vm266, %v937, 0
      %v1017 = vsel %vm266, %v938, 0
      %v1020 = vsel %vm266, %v939, 0
      %v1023 = vsel %vm266, %v940, 0
      %v1026 = vsel %vm266, %v941, 0
      %v1029 = vsel %vm266, %v942, 0
      %v1032 = vsel %vm266, %v943, 0
      %v1035 = vsel %vm266, %v944, 0
      %v1038 = vsel %vm266, %v945, 0
      %v1041 = vsel %vm266, %v946, 0
      %v1044 = vsel %vm266, %v947, 0
      %v1047 = vsel %vm363, %v949, 0
      %1049 = vmatprep.subr.mxu0 0.0
      %1050 = vmatpush1.msra.mxu0 %v1047
      %1051 = vmatprep.subr.mxu0 0.0
      %1052 = vmatpush1.msra.mxu0 0.0
      %1053 = vmatprep.subr.mxu0 0.0
      %1054 = vmatpush1.msra.mxu0 0.0
      %1055 = vmatprep.subr.mxu0 0.0
      %1056 = vmatpush1.msra.mxu0 0.0
      %1057 = vmatprep.subr.mxu0 0.0
      %1058 = vmatpush1.msra.mxu0 0.0
      %1059 = vmatprep.subr.mxu0 0.0
      %1060 = vmatpush1.msra.mxu0 0.0
      %1061 = vmatprep.subr.mxu0 0.0
      %1062 = vmatpush1.msra.mxu0 0.0
      %1063 = vmatprep.subr.mxu0 0.0
      %1064 = vmatpush1.msra.mxu0 0.0
      %1065 = vmatprep.subr.mxu0 0.0
      %1066 = vmatpush1.msra.mxu0 0.0
      %1067 = vmatprep.subr.mxu0 0.0
      %1068 = vmatpush1.msra.mxu0 0.0
      %1069 = vmatprep.subr.mxu0 0.0
      %1070 = vmatpush1.msra.mxu0 0.0
      %1071 = vmatprep.subr.mxu0 0.0
      %1072 = vmatpush1.msra.mxu0 0.0
      %1073 = vmatprep.subr.mxu0 0.0
      %1074 = vmatpush1.msra.mxu0 0.0
      %1075 = vmatprep.subr.mxu0 0.0
      %1076 = vmatpush1.msra.mxu0 0.0
      %1077 = vmatprep.subr.mxu0 0.0
      %1078 = vmatpush1.msra.mxu0 0.0
      %1079 = vmatprep.subr.mxu0 0.0
      %1080 = vmatpush1.msra.mxu0 0.0
      %1081 = vmatprep.subr.mxu0 0.0
      %1082 = vmatpush1.msra.mxu0 0.0
      %1083 = vmatprep.subr.mxu0 0.0
      %1084 = vmatpush1.msra.mxu0 0.0
      %1085 = vmatprep.subr.mxu0 0.0
      %1086 = vmatpush1.msra.mxu0 0.0
      %1087 = vmatprep.subr.mxu0 0.0
      %1088 = vmatpush1.msra.mxu0 0.0
      %1089 = vmatprep.subr.mxu0 0.0
      %1090 = vmatpush1.msra.mxu0 0.0
      %1091 = vmatprep.subr.mxu0 0.0
      %1092 = vmatpush1.msra.mxu0 0.0
      %1093 = vmatprep.subr.mxu0 0.0
      %1094 = vmatpush1.msra.mxu0 0.0
      %1095 = vmatprep.subr.mxu0 0.0
      %1096 = vmatpush1.msra.mxu0 0.0
      %1097 = vmatprep.subr.mxu0 0.0
      %1098 = vmatpush1.msra.mxu0 0.0
      %1099 = vmatprep.subr.mxu0 0.0
      %1100 = vmatpush1.msra.mxu0 0.0
      %1101 = vmatprep.subr.mxu0 0.0
      %1102 = vmatpush1.msra.mxu0 0.0
      %1103 = vmatprep.subr.mxu0 0.0
      %1104 = vmatpush1.msra.mxu0 0.0
      %1105 = vmatprep.subr.mxu0 0.0
      %1106 = vmatpush1.msra.mxu0 0.0
      %1107 = vmatprep.subr.mxu0 0.0
      %1108 = vmatpush1.msra.mxu0 0.0
      %1109 = vmatprep.subr.mxu0 0.0
      %1110 = vmatpush1.msra.mxu0 0.0
      %1111 = vmatprep.subr.mxu0 0.0
      %1112 = vmatpush1.msra.mxu0 0.0
      %1113 = vmatprep.mubr.f32.mxu0 0.0
      %1114 = vmatmul.mubr.f32.gmra.mrb[0].mxu0 %v951
      %v1115 = vpop.f32.mrb[0].mxu0
      %v1116 = vadd.f32 0.0, %v1115
      %v1117 = vpop.f32.mrb[0].mxu0
      %1118 = vmatprep.mubr.f32.mxu0 0.0
      %1119 = vmatmul.mubr.f32.gmra.mrb[0].mxu0 %v954
      %v1120 = vpop.f32.mrb[0].mxu0
      %v1121 = vadd.f32 0.0, %v1120
      %v1122 = vpop.f32.mrb[0].mxu0
      %1123 = vmatprep.mubr.f32.mxu0 0.0
      %1124 = vmatmul.mubr.f32.gmra.mrb[0].mxu0 %v957
      %v1125 = vpop.f32.mrb[0].mxu0
      %v1126 = vadd.f32 0.0, %v1125
      %v1127 = vpop.f32.mrb[0].mxu0
      %1128 = vmatprep.mubr.f32.mxu0 0.0
      %1129 = vmatmul.mubr.f32.gmra.mrb[0].mxu0 %v960
      %v1130 = vpop.f32.mrb[0].mxu0
      %v1131 = vadd.f32 0.0, %v1130
      %v1132 = vpop.f32.mrb[0].mxu0
      %1133 = vmatprep.mubr.f32.mxu0 0.0
      %1134 = vmatmul.mubr.f32.gmra.mrb[0].mxu0 %v963
      %v1135 = vpop.f32.mrb[0].mxu0
      %v1136 = vadd.f32 0.0, %v1135
      %v1137 = vpop.f32.mrb[0].mxu0
      %1138 = vmatprep.mubr.f32.mxu0 0.0
      %1139 = vmatmul.mubr.f32.gmra.mrb[0].mxu0 %v966
      %v1140 = vpop.f32.mrb[0].mxu0
      %v1141 = vadd.f32 0.0, %v1140
      %v1142 = vpop.f32.mrb[0].mxu0
      %1143 = vmatprep.mubr.f32.mxu0 0.0
      %1144 = vmatmul.mubr.f32.gmra.mrb[0].mxu0 %v969
      %v1145 = vpop.f32.mrb[0].mxu0
      %v1146 = vadd.f32 0.0, %v1145
      %v1147 = vpop.f32.mrb[0].mxu0
      %1148 = vmatprep.mubr.f32.mxu0 0.0
      %1149 = vmatmul.mubr.f32.gmra.mrb[0].mxu0 %v972
      %v1150 = vpop.f32.mrb[0].mxu0
      %v1151 = vadd.f32 0.0, %v1150
      %v1152 = vpop.f32.mrb[0].mxu0
      %1153 = vmatprep.mubr.f32.mxu0 0.0
      %1154 = vmatmul.mubr.f32.gmra.mrb[0].mxu0 %v975
      %v1155 = vpop.f32.mrb[0].mxu0
      %v1156 = vadd.f32 0.0, %v1155
      %v1157 = vpop.f32.mrb[0].mxu0
      %1158 = vmatprep.mubr.f32.mxu0 0.0
      %1159 = vmatmul.mubr.f32.gmra.mrb[0].mxu0 %v978
      %v1160 = vpop.f32.mrb[0].mxu0
      %v1161 = vadd.f32 0.0, %v1160
      %v1162 = vpop.f32.mrb[0].mxu0
      %1163 = vmatprep.mubr.f32.mxu0 0.0
      %1164 = vmatmul.mubr.f32.gmra.mrb[0].mxu0 %v981
      %v1165 = vpop.f32.mrb[0].mxu0
      %v1166 = vadd.f32 0.0, %v1165
      %v1167 = vpop.f32.mrb[0].mxu0
      %1168 = vmatprep.mubr.f32.mxu0 0.0
      %1169 = vmatmul.mubr.f32.gmra.mrb[0].mxu0 %v984
      %v1170 = vpop.f32.mrb[0].mxu0
      %v1171 = vadd.f32 0.0, %v1170
      %v1172 = vpop.f32.mrb[0].mxu0
      %1173 = vmatprep.mubr.f32.mxu0 0.0
      %1174 = vmatmul.mubr.f32.gmra.mrb[0].mxu0 %v987
      %v1175 = vpop.f32.mrb[0].mxu0
      %v1176 = vadd.f32 0.0, %v1175
      %v1177 = vpop.f32.mrb[0].mxu0
      %1178 = vmatprep.mubr.f32.mxu0 0.0
      %1179 = vmatmul.mubr.f32.gmra.mrb[0].mxu0 %v990
      %v1180 = vpop.f32.mrb[0].mxu0
      %v1181 = vadd.f32 0.0, %v1180
      %v1182 = vpop.f32.mrb[0].mxu0
      %1183 = vmatprep.mubr.f32.mxu0 0.0
      %1184 = vmatmul.mubr.f32.gmra.mrb[0].mxu0 %v993
      %v1185 = vpop.f32.mrb[0].mxu0
      %v1186 = vadd.f32 0.0, %v1185
      %v1187 = vpop.f32.mrb[0].mxu0
      %1188 = vmatprep.mubr.f32.mxu0 0.0
      %1189 = vmatmul.mubr.f32.gmra.mrb[0].mxu0 %v996
      %v1190 = vpop.f32.mrb[0].mxu0
      %v1191 = vadd.f32 0.0, %v1190
      %v1192 = vpop.f32.mrb[0].mxu0
      %1193 = vmatprep.mubr.f32.mxu0 0.0
      %1194 = vmatmul.mubr.f32.gmra.mrb[0].mxu0 %v999
      %v1195 = vpop.f32.mrb[0].mxu0
      %v1196 = vadd.f32 0.0, %v1195
      %v1197 = vpop.f32.mrb[0].mxu0
      %1198 = vmatprep.mubr.f32.mxu0 0.0
      %1199 = vmatmul.mubr.f32.gmra.mrb[0].mxu0 %v1002
      %v1200 = vpop.f32.mrb[0].mxu0
      %v1201 = vadd.f32 0.0, %v1200
      %v1202 = vpop.f32.mrb[0].mxu0
      %1203 = vmatprep.mubr.f32.mxu0 0.0
      %1204 = vmatmul.mubr.f32.gmra.mrb[0].mxu0 %v1005
      %v1205 = vpop.f32.mrb[0].mxu0
      %v1206 = vadd.f32 0.0, %v1205
      %v1207 = vpop.f32.mrb[0].mxu0
      %1208 = vmatprep.mubr.f32.mxu0 0.0
      %1209 = vmatmul.mubr.f32.gmra.mrb[0].mxu0 %v1008
      %v1210 = vpop.f32.mrb[0].mxu0
      %v1211 = vadd.f32 0.0, %v1210
      %v1212 = vpop.f32.mrb[0].mxu0
      %1213 = vmatprep.mubr.f32.mxu0 0.0
      %1214 = vmatmul.mubr.f32.gmra.mrb[0].mxu0 %v1011
      %v1215 = vpop.f32.mrb[0].mxu0
      %v1216 = vadd.f32 0.0, %v1215
      %v1217 = vpop.f32.mrb[0].mxu0
      %1218 = vmatprep.mubr.f32.mxu0 0.0
      %1219 = vmatmul.mubr.f32.gmra.mrb[0].mxu0 %v1014
      %v1220 = vpop.f32.mrb[0].mxu0
      %v1221 = vadd.f32 0.0, %v1220
      %v1222 = vpop.f32.mrb[0].mxu0
      %1223 = vmatprep.mubr.f32.mxu0 0.0
      %1224 = vmatmul.mubr.f32.gmra.mrb[0].mxu0 %v1017
      %v1225 = vpop.f32.mrb[0].mxu0
      %v1226 = vadd.f32 0.0, %v1225
      %v1227 = vpop.f32.mrb[0].mxu0
      %1228 = vmatprep.mubr.f32.mxu0 0.0
      %1229 = vmatmul.mubr.f32.gmra.mrb[0].mxu0 %v1020
      %v1230 = vpop.f32.mrb[0].mxu0
      %v1231 = vadd.f32 0.0, %v1230
      %v1232 = vpop.f32.mrb[0].mxu0
      %1233 = vmatprep.mubr.f32.mxu0 0.0
      %1234 = vmatmul.mubr.f32.gmra.mrb[0].mxu0 %v1023
      %v1235 = vpop.f32.mrb[0].mxu0
      %v1236 = vadd.f32 0.0, %v1235
      %v1237 = vpop.f32.mrb[0].mxu0
      %1238 = vmatprep.mubr.f32.mxu0 0.0
      %1239 = vmatmul.mubr.f32.gmra.mrb[0].mxu0 %v1026
      %v1240 = vpop.f32.mrb[0].mxu0
      %v1241 = vadd.f32 0.0, %v1240
      %v1242 = vpop.f32.mrb[0].mxu0
      %1243 = vmatprep.mubr.f32.mxu0 0.0
      %1244 = vmatmul.mubr.f32.gmra.mrb[0].mxu0 %v1029
      %v1245 = vpop.f32.mrb[0].mxu0
      %v1246 = vadd.f32 0.0, %v1245
      %v1247 = vpop.f32.mrb[0].mxu0
      %1248 = vmatprep.mubr.f32.mxu0 0.0
      %1249 = vmatmul.mubr.f32.gmra.mrb[0].mxu0 %v1032
      %v1250 = vpop.f32.mrb[0].mxu0
      %v1251 = vadd.f32 0.0, %v1250
      %v1252 = vpop.f32.mrb[0].mxu0
      %1253 = vmatprep.mubr.f32.mxu0 0.0
      %1254 = vmatmul.mubr.f32.gmra.mrb[0].mxu0 %v1035
      %v1255 = vpop.f32.mrb[0].mxu0
      %v1256 = vadd.f32 0.0, %v1255
      %v1257 = vpop.f32.mrb[0].mxu0
      %1258 = vmatprep.mubr.f32.mxu0 0.0
      %1259 = vmatmul.mubr.f32.gmra.mrb[0].mxu0 %v1038
      %v1260 = vpop.f32.mrb[0].mxu0
      %v1261 = vadd.f32 0.0, %v1260
      %v1262 = vpop.f32.mrb[0].mxu0
      %1263 = vmatprep.mubr.f32.mxu0 0.0
      %1264 = vmatmul.mubr.f32.gmra.mrb[0].mxu0 %v1041
      %v1265 = vpop.f32.mrb[0].mxu0
      %v1266 = vadd.f32 0.0, %v1265
      %v1267 = vpop.f32.mrb[0].mxu0
      %1268 = vmatprep.mubr.f32.mxu0 0.0
      %1269 = vmatmul.mubr.f32.gmra.mrb[0].mxu0 %v1044
      %v1270 = vpop.f32.mrb[0].mxu0
      %v1271 = vadd.f32 0.0, %v1270
      %v1272 = vpop.f32.mrb[0].mxu0
      %1273 = vdwg.mxu0
      %v1274 = vadd.f32 %v758, %v1116
      %v1275 = vadd.f32 %v763, %v1121
      %v1276 = vadd.f32 %v768, %v1126
      %v1277 = vadd.f32 %v773, %v1131
      %v1278 = vadd.f32 %v778, %v1136
      %v1279 = vadd.f32 %v783, %v1141
      %v1280 = vadd.f32 %v788, %v1146
      %v1281 = vadd.f32 %v793, %v1151
      %v1282 = vadd.f32 %v798, %v1156
      %v1283 = vadd.f32 %v803, %v1161
      %v1284 = vadd.f32 %v808, %v1166
      %v1285 = vadd.f32 %v813, %v1171
      %v1286 = vadd.f32 %v818, %v1176
      %v1287 = vadd.f32 %v823, %v1181
      %v1288 = vadd.f32 %v828, %v1186
      %v1289 = vadd.f32 %v833, %v1191
      %v1290 = vadd.f32 %v838, %v1196
      %v1291 = vadd.f32 %v843, %v1201
      %v1292 = vadd.f32 %v848, %v1206
      %v1293 = vadd.f32 %v853, %v1211
      %v1294 = vadd.f32 %v858, %v1216
      %v1295 = vadd.f32 %v863, %v1221
      %v1296 = vadd.f32 %v868, %v1226
      %v1297 = vadd.f32 %v873, %v1231
      %v1298 = vadd.f32 %v878, %v1236
      %v1299 = vadd.f32 %v883, %v1241
      %v1300 = vadd.f32 %v888, %v1246
      %v1301 = vadd.f32 %v893, %v1251
      %v1302 = vadd.f32 %v898, %v1256
      %v1303 = vadd.f32 %v903, %v1261
      %v1304 = vadd.f32 %v908, %v1266
      %v1305 = vadd.f32 %v913, %v1271
      %s1306 = sadd.s32 %s196, 1
      %s1307 = smul.u32 %s1306, 24
      %s1308 = scalar_lea.vmem %s184, %s1307
      %v1309 = vld [vmem:[%s1308] sm:$0xff]
      %v1310 = vld [vmem:[%s1308 + $0x8] sm:$0xff]
      %v1311 = vld [vmem:[%s1308 + $0x18] sm:$0xff]
      %v1312 = vld [vmem:[%s1308 + $0x20] sm:$0xff]
      %v1313 = vld [vmem:[%s1308 + $0x30] sm:$0xff]
      %v1314 = vld [vmem:[%s1308 + $0x38] sm:$0xff]
      %v1315 = vld [vmem:[%s1308 + $0x48] sm:$0xff]
      %v1316 = vld [vmem:[%s1308 + $0x50] sm:$0xff]
      %v1317 = vld [vmem:[%s1308 + $0x60] sm:$0xff]
      %v1318 = vld [vmem:[%s1308 + $0x68] sm:$0xff]
      %v1319 = vld [vmem:[%s1308 + $0x78] sm:$0xff]
      %v1320 = vld [vmem:[%s1308 + $0x80] sm:$0xff]
      %v1321 = vld [vmem:[%s1308 + $0x90] sm:$0xff]
      %v1322 = vld [vmem:[%s1308 + $0x98] sm:$0xff]
      %v1323 = vld [vmem:[%s1308 + $0xa8] sm:$0xff]
      %v1324 = vld [vmem:[%s1308 + $0xb0] sm:$0xff]
      %v1325 = vld [vmem:[%s1308 + $0xc0] sm:$0xff]
      %v1326 = vld [vmem:[%s1308 + $0xc8] sm:$0xff]
      %v1327 = vld [vmem:[%s1308 + $0xd8] sm:$0xff]
      %v1328 = vld [vmem:[%s1308 + $0xe0] sm:$0xff]
      %v1329 = vld [vmem:[%s1308 + $0xf0] sm:$0xff]
      %v1330 = vld [vmem:[%s1308 + $0xf8] sm:$0xff]
      %v1331 = vld [vmem:[%s1308 + $0x108] sm:$0xff]
      %v1332 = vld [vmem:[%s1308 + $0x110] sm:$0xff]
      %v1333 = vld [vmem:[%s1308 + $0x120] sm:$0xff]
      %v1334 = vld [vmem:[%s1308 + $0x128] sm:$0xff]
      %v1335 = vld [vmem:[%s1308 + $0x138] sm:$0xff]
      %v1336 = vld [vmem:[%s1308 + $0x140] sm:$0xff]
      %v1337 = vld [vmem:[%s1308 + $0x150] sm:$0xff]
      %v1338 = vld [vmem:[%s1308 + $0x158] sm:$0xff]
      %v1339 = vld [vmem:[%s1308 + $0x168] sm:$0xff]
      %v1340 = vld [vmem:[%s1308 + $0x170] sm:$0xff]
      %s1341 = scalar_lea.vmem %s1, 12
      %v1342 = vld [vmem:[%s1341] sm:$0xf]
      %v1344 = vsel %vm266, %v1309, 0
      %v1347 = vsel %vm266, %v1310, 0
      %v1350 = vsel %vm266, %v1311, 0
      %v1353 = vsel %vm266, %v1312, 0
      %v1356 = vsel %vm266, %v1313, 0
      %v1359 = vsel %vm266, %v1314, 0
      %v1362 = vsel %vm266, %v1315, 0
      %v1365 = vsel %vm266, %v1316, 0
      %v1368 = vsel %vm266, %v1317, 0
      %v1371 = vsel %vm266, %v1318, 0
      %v1374 = vsel %vm266, %v1319, 0
      %v1377 = vsel %vm266, %v1320, 0
      %v1380 = vsel %vm266, %v1321, 0
      %v1383 = vsel %vm266, %v1322, 0
      %v1386 = vsel %vm266, %v1323, 0
      %v1389 = vsel %vm266, %v1324, 0
      %v1392 = vsel %vm266, %v1325, 0
      %v1395 = vsel %vm266, %v1326, 0
      %v1398 = vsel %vm266, %v1327, 0
      %v1401 = vsel %vm266, %v1328, 0
      %v1404 = vsel %vm266, %v1329, 0
      %v1407 = vsel %vm266, %v1330, 0
      %v1410 = vsel %vm266, %v1331, 0
      %v1413 = vsel %vm266, %v1332, 0
      %v1416 = vsel %vm266, %v1333, 0
      %v1419 = vsel %vm266, %v1334, 0
      %v1422 = vsel %vm266, %v1335, 0
      %v1425 = vsel %vm266, %v1336, 0
      %v1428 = vsel %vm266, %v1337, 0
      %v1431 = vsel %vm266, %v1338, 0
      %v1434 = vsel %vm266, %v1339, 0
      %v1437 = vsel %vm266, %v1340, 0
      %v1440 = vsel %vm363, %v1342, 0
      %1442 = vmatprep.subr.mxu0 0.0
      %1443 = vmatpush1.msra.mxu0 %v1440
      %1444 = vmatprep.subr.mxu0 0.0
      %1445 = vmatpush1.msra.mxu0 0.0
      %1446 = vmatprep.subr.mxu0 0.0
      %1447 = vmatpush1.msra.mxu0 0.0
      %1448 = vmatprep.subr.mxu0 0.0
      %1449 = vmatpush1.msra.mxu0 0.0
      %1450 = vmatprep.subr.mxu0 0.0
      %1451 = vmatpush1.msra.mxu0 0.0
      %1452 = vmatprep.subr.mxu0 0.0
      %1453 = vmatpush1.msra.mxu0 0.0
      %1454 = vmatprep.subr.mxu0 0.0
      %1455 = vmatpush1.msra.mxu0 0.0
      %1456 = vmatprep.subr.mxu0 0.0
      %1457 = vmatpush1.msra.mxu0 0.0
      %1458 = vmatprep.subr.mxu0 0.0
      %1459 = vmatpush1.msra.mxu0 0.0
      %1460 = vmatprep.subr.mxu0 0.0
      %1461 = vmatpush1.msra.mxu0 0.0
      %1462 = vmatprep.subr.mxu0 0.0
      %1463 = vmatpush1.msra.mxu0 0.0
      %1464 = vmatprep.subr.mxu0 0.0
      %1465 = vmatpush1.msra.mxu0 0.0
      %1466 = vmatprep.subr.mxu0 0.0
      %1467 = vmatpush1.msra.mxu0 0.0
      %1468 = vmatprep.subr.mxu0 0.0
      %1469 = vmatpush1.msra.mxu0 0.0
      %1470 = vmatprep.subr.mxu0 0.0
      %1471 = vmatpush1.msra.mxu0 0.0
      %1472 = vmatprep.subr.mxu0 0.0
      %1473 = vmatpush1.msra.mxu0 0.0
      %1474 = vmatprep.subr.mxu0 0.0
      %1475 = vmatpush1.msra.mxu0 0.0
      %1476 = vmatprep.subr.mxu0 0.0
      %1477 = vmatpush1.msra.mxu0 0.0
      %1478 = vmatprep.subr.mxu0 0.0
      %1479 = vmatpush1.msra.mxu0 0.0
      %1480 = vmatprep.subr.mxu0 0.0
      %1481 = vmatpush1.msra.mxu0 0.0
      %1482 = vmatprep.subr.mxu0 0.0
      %1483 = vmatpush1.msra.mxu0 0.0
      %1484 = vmatprep.subr.mxu0 0.0
      %1485 = vmatpush1.msra.mxu0 0.0
      %1486 = vmatprep.subr.mxu0 0.0
      %1487 = vmatpush1.msra.mxu0 0.0
      %1488 = vmatprep.subr.mxu0 0.0
      %1489 = vmatpush1.msra.mxu0 0.0
      %1490 = vmatprep.subr.mxu0 0.0
      %1491 = vmatpush1.msra.mxu0 0.0
      %1492 = vmatprep.subr.mxu0 0.0
      %1493 = vmatpush1.msra.mxu0 0.0
      %1494 = vmatprep.subr.mxu0 0.0
      %1495 = vmatpush1.msra.mxu0 0.0
      %1496 = vmatprep.subr.mxu0 0.0
      %1497 = vmatpush1.msra.mxu0 0.0
      %1498 = vmatprep.subr.mxu0 0.0
      %1499 = vmatpush1.msra.mxu0 0.0
      %1500 = vmatprep.subr.mxu0 0.0
      %1501 = vmatpush1.msra.mxu0 0.0
      %1502 = vmatprep.subr.mxu0 0.0
      %1503 = vmatpush1.msra.mxu0 0.0
      %1504 = vmatprep.subr.mxu0 0.0
      %1505 = vmatpush1.msra.mxu0 0.0
      %1506 = vmatprep.mubr.f32.mxu0 0.0
      %1507 = vmatmul.mubr.f32.gmra.mrb[0].mxu0 %v1344
      %v1508 = vpop.f32.mrb[0].mxu0
      %v1509 = vadd.f32 0.0, %v1508
      %v1510 = vpop.f32.mrb[0].mxu0
      %1511 = vmatprep.mubr.f32.mxu0 0.0
      %1512 = vmatmul.mubr.f32.gmra.mrb[0].mxu0 %v1347
      %v1513 = vpop.f32.mrb[0].mxu0
      %v1514 = vadd.f32 0.0, %v1513
      %v1515 = vpop.f32.mrb[0].mxu0
      %1516 = vmatprep.mubr.f32.mxu0 0.0
      %1517 = vmatmul.mubr.f32.gmra.mrb[0].mxu0 %v1350
      %v1518 = vpop.f32.mrb[0].mxu0
      %v1519 = vadd.f32 0.0, %v1518
      %v1520 = vpop.f32.mrb[0].mxu0
      %1521 = vmatprep.mubr.f32.mxu0 0.0
      %1522 = vmatmul.mubr.f32.gmra.mrb[0].mxu0 %v1353
      %v1523 = vpop.f32.mrb[0].mxu0
      %v1524 = vadd.f32 0.0, %v1523
      %v1525 = vpop.f32.mrb[0].mxu0
      %1526 = vmatprep.mubr.f32.mxu0 0.0
      %1527 = vmatmul.mubr.f32.gmra.mrb[0].mxu0 %v1356
      %v1528 = vpop.f32.mrb[0].mxu0
      %v1529 = vadd.f32 0.0, %v1528
      %v1530 = vpop.f32.mrb[0].mxu0
      %1531 = vmatprep.mubr.f32.mxu0 0.0
      %1532 = vmatmul.mubr.f32.gmra.mrb[0].mxu0 %v1359
      %v1533 = vpop.f32.mrb[0].mxu0
      %v1534 = vadd.f32 0.0, %v1533
      %v1535 = vpop.f32.mrb[0].mxu0
      %1536 = vmatprep.mubr.f32.mxu0 0.0
      %1537 = vmatmul.mubr.f32.gmra.mrb[0].mxu0 %v1362
      %v1538 = vpop.f32.mrb[0].mxu0
      %v1539 = vadd.f32 0.0, %v1538
      %v1540 = vpop.f32.mrb[0].mxu0
      %1541 = vmatprep.mubr.f32.mxu0 0.0
      %1542 = vmatmul.mubr.f32.gmra.mrb[0].mxu0 %v1365
      %v1543 = vpop.f32.mrb[0].mxu0
      %v1544 = vadd.f32 0.0, %v1543
      %v1545 = vpop.f32.mrb[0].mxu0
      %1546 = vmatprep.mubr.f32.mxu0 0.0
      %1547 = vmatmul.mubr.f32.gmra.mrb[0].mxu0 %v1368
      %v1548 = vpop.f32.mrb[0].mxu0
      %v1549 = vadd.f32 0.0, %v1548
      %v1550 = vpop.f32.mrb[0].mxu0
      %1551 = vmatprep.mubr.f32.mxu0 0.0
      %1552 = vmatmul.mubr.f32.gmra.mrb[0].mxu0 %v1371
      %v1553 = vpop.f32.mrb[0].mxu0
      %v1554 = vadd.f32 0.0, %v1553
      %v1555 = vpop.f32.mrb[0].mxu0
      %1556 = vmatprep.mubr.f32.mxu0 0.0
      %1557 = vmatmul.mubr.f32.gmra.mrb[0].mxu0 %v1374
      %v1558 = vpop.f32.mrb[0].mxu0
      %v1559 = vadd.f32 0.0, %v1558
      %v1560 = vpop.f32.mrb[0].mxu0
      %1561 = vmatprep.mubr.f32.mxu0 0.0
      %1562 = vmatmul.mubr.f32.gmra.mrb[0].mxu0 %v1377
      %v1563 = vpop.f32.mrb[0].mxu0
      %v1564 = vadd.f32 0.0, %v1563
      %v1565 = vpop.f32.mrb[0].mxu0
      %1566 = vmatprep.mubr.f32.mxu0 0.0
      %1567 = vmatmul.mubr.f32.gmra.mrb[0].mxu0 %v1380
      %v1568 = vpop.f32.mrb[0].mxu0
      %v1569 = vadd.f32 0.0, %v1568
      %v1570 = vpop.f32.mrb[0].mxu0
      %1571 = vmatprep.mubr.f32.mxu0 0.0
      %1572 = vmatmul.mubr.f32.gmra.mrb[0].mxu0 %v1383
      %v1573 = vpop.f32.mrb[0].mxu0
      %v1574 = vadd.f32 0.0, %v1573
      %v1575 = vpop.f32.mrb[0].mxu0
      %1576 = vmatprep.mubr.f32.mxu0 0.0
      %1577 = vmatmul.mubr.f32.gmra.mrb[0].mxu0 %v1386
      %v1578 = vpop.f32.mrb[0].mxu0
      %v1579 = vadd.f32 0.0, %v1578
      %v1580 = vpop.f32.mrb[0].mxu0
      %1581 = vmatprep.mubr.f32.mxu0 0.0
      %1582 = vmatmul.mubr.f32.gmra.mrb[0].mxu0 %v1389
      %v1583 = vpop.f32.mrb[0].mxu0
      %v1584 = vadd.f32 0.0, %v1583
      %v1585 = vpop.f32.mrb[0].mxu0
      %1586 = vmatprep.mubr.f32.mxu0 0.0
      %1587 = vmatmul.mubr.f32.gmra.mrb[0].mxu0 %v1392
      %v1588 = vpop.f32.mrb[0].mxu0
      %v1589 = vadd.f32 0.0, %v1588
      %v1590 = vpop.f32.mrb[0].mxu0
      %1591 = vmatprep.mubr.f32.mxu0 0.0
      %1592 = vmatmul.mubr.f32.gmra.mrb[0].mxu0 %v1395
      %v1593 = vpop.f32.mrb[0].mxu0
      %v1594 = vadd.f32 0.0, %v1593
      %v1595 = vpop.f32.mrb[0].mxu0
      %1596 = vmatprep.mubr.f32.mxu0 0.0
      %1597 = vmatmul.mubr.f32.gmra.mrb[0].mxu0 %v1398
      %v1598 = vpop.f32.mrb[0].mxu0
      %v1599 = vadd.f32 0.0, %v1598
      %v1600 = vpop.f32.mrb[0].mxu0
      %1601 = vmatprep.mubr.f32.mxu0 0.0
      %1602 = vmatmul.mubr.f32.gmra.mrb[0].mxu0 %v1401
      %v1603 = vpop.f32.mrb[0].mxu0
      %v1604 = vadd.f32 0.0, %v1603
      %v1605 = vpop.f32.mrb[0].mxu0
      %1606 = vmatprep.mubr.f32.mxu0 0.0
      %1607 = vmatmul.mubr.f32.gmra.mrb[0].mxu0 %v1404
      %v1608 = vpop.f32.mrb[0].mxu0
      %v1609 = vadd.f32 0.0, %v1608
      %v1610 = vpop.f32.mrb[0].mxu0
      %1611 = vmatprep.mubr.f32.mxu0 0.0
      %1612 = vmatmul.mubr.f32.gmra.mrb[0].mxu0 %v1407
      %v1613 = vpop.f32.mrb[0].mxu0
      %v1614 = vadd.f32 0.0, %v1613
      %v1615 = vpop.f32.mrb[0].mxu0
      %1616 = vmatprep.mubr.f32.mxu0 0.0
      %1617 = vmatmul.mubr.f32.gmra.mrb[0].mxu0 %v1410
      %v1618 = vpop.f32.mrb[0].mxu0
      %v1619 = vadd.f32 0.0, %v1618
      %v1620 = vpop.f32.mrb[0].mxu0
      %1621 = vmatprep.mubr.f32.mxu0 0.0
      %1622 = vmatmul.mubr.f32.gmra.mrb[0].mxu0 %v1413
      %v1623 = vpop.f32.mrb[0].mxu0
      %v1624 = vadd.f32 0.0, %v1623
      %v1625 = vpop.f32.mrb[0].mxu0
      %1626 = vmatprep.mubr.f32.mxu0 0.0
      %1627 = vmatmul.mubr.f32.gmra.mrb[0].mxu0 %v1416
      %v1628 = vpop.f32.mrb[0].mxu0
      %v1629 = vadd.f32 0.0, %v1628
      %v1630 = vpop.f32.mrb[0].mxu0
      %1631 = vmatprep.mubr.f32.mxu0 0.0
      %1632 = vmatmul.mubr.f32.gmra.mrb[0].mxu0 %v1419
      %v1633 = vpop.f32.mrb[0].mxu0
      %v1634 = vadd.f32 0.0, %v1633
      %v1635 = vpop.f32.mrb[0].mxu0
      %1636 = vmatprep.mubr.f32.mxu0 0.0
      %1637 = vmatmul.mubr.f32.gmra.mrb[0].mxu0 %v1422
      %v1638 = vpop.f32.mrb[0].mxu0
      %v1639 = vadd.f32 0.0, %v1638
      %v1640 = vpop.f32.mrb[0].mxu0
      %1641 = vmatprep.mubr.f32.mxu0 0.0
      %1642 = vmatmul.mubr.f32.gmra.mrb[0].mxu0 %v1425
      %v1643 = vpop.f32.mrb[0].mxu0
      %v1644 = vadd.f32 0.0, %v1643
      %v1645 = vpop.f32.mrb[0].mxu0
      %1646 = vmatprep.mubr.f32.mxu0 0.0
      %1647 = vmatmul.mubr.f32.gmra.mrb[0].mxu0 %v1428
      %v1648 = vpop.f32.mrb[0].mxu0
      %v1649 = vadd.f32 0.0, %v1648
      %v1650 = vpop.f32.mrb[0].mxu0
      %1651 = vmatprep.mubr.f32.mxu0 0.0
      %1652 = vmatmul.mubr.f32.gmra.mrb[0].mxu0 %v1431
      %v1653 = vpop.f32.mrb[0].mxu0
      %v1654 = vadd.f32 0.0, %v1653
      %v1655 = vpop.f32.mrb[0].mxu0
      %1656 = vmatprep.mubr.f32.mxu0 0.0
      %1657 = vmatmul.mubr.f32.gmra.mrb[0].mxu0 %v1434
      %v1658 = vpop.f32.mrb[0].mxu0
      %v1659 = vadd.f32 0.0, %v1658
      %v1660 = vpop.f32.mrb[0].mxu0
      %1661 = vmatprep.mubr.f32.mxu0 0.0
      %1662 = vmatmul.mubr.f32.gmra.mrb[0].mxu0 %v1437
      %v1663 = vpop.f32.mrb[0].mxu0
      %v1664 = vadd.f32 0.0, %v1663
      %v1665 = vpop.f32.mrb[0].mxu0
      %1666 = vdwg.mxu0
      %v1667 = vadd.f32 %v1274, %v1509
      %v1668 = vadd.f32 %v1275, %v1514
      %v1669 = vadd.f32 %v1276, %v1519
      %v1670 = vadd.f32 %v1277, %v1524
      %v1671 = vadd.f32 %v1278, %v1529
      %v1672 = vadd.f32 %v1279, %v1534
      %v1673 = vadd.f32 %v1280, %v1539
      %v1674 = vadd.f32 %v1281, %v1544
      %v1675 = vadd.f32 %v1282, %v1549
      %v1676 = vadd.f32 %v1283, %v1554
      %v1677 = vadd.f32 %v1284, %v1559
      %v1678 = vadd.f32 %v1285, %v1564
      %v1679 = vadd.f32 %v1286, %v1569
      %v1680 = vadd.f32 %v1287, %v1574
      %v1681 = vadd.f32 %v1288, %v1579
      %v1682 = vadd.f32 %v1289, %v1584
      %v1683 = vadd.f32 %v1290, %v1589
      %v1684 = vadd.f32 %v1291, %v1594
      %v1685 = vadd.f32 %v1292, %v1599
      %v1686 = vadd.f32 %v1293, %v1604
      %v1687 = vadd.f32 %v1294, %v1609
      %v1688 = vadd.f32 %v1295, %v1614
      %v1689 = vadd.f32 %v1296, %v1619
      %v1690 = vadd.f32 %v1297, %v1624
      %v1691 = vadd.f32 %v1298, %v1629
      %v1692 = vadd.f32 %v1299, %v1634
      %v1693 = vadd.f32 %v1300, %v1639
      %v1694 = vadd.f32 %v1301, %v1644
      %v1695 = vadd.f32 %v1302, %v1649
      %v1696 = vadd.f32 %v1303, %v1654
      %v1697 = vadd.f32 %v1304, %v1659
      %v1698 = vadd.f32 %v1305, %v1664
      %v1699 = vld [vmem:[%s1308 + $0x1] sm:$0xff]
      %v1700 = vld [vmem:[%s1308 + $0x9] sm:$0xff]
      %v1701 = vld [vmem:[%s1308 + $0x19] sm:$0xff]
      %v1702 = vld [vmem:[%s1308 + $0x21] sm:$0xff]
      %v1703 = vld [vmem:[%s1308 + $0x31] sm:$0xff]
      %v1704 = vld [vmem:[%s1308 + $0x39] sm:$0xff]
      %v1705 = vld [vmem:[%s1308 + $0x49] sm:$0xff]
      %v1706 = vld [vmem:[%s1308 + $0x51] sm:$0xff]
      %v1707 = vld [vmem:[%s1308 + $0x61] sm:$0xff]
      %v1708 = vld [vmem:[%s1308 + $0x69] sm:$0xff]
      %v1709 = vld [vmem:[%s1308 + $0x79] sm:$0xff]
      %v1710 = vld [vmem:[%s1308 + $0x81] sm:$0xff]
      %v1711 = vld [vmem:[%s1308 + $0x91] sm:$0xff]
      %v1712 = vld [vmem:[%s1308 + $0x99] sm:$0xff]
      %v1713 = vld [vmem:[%s1308 + $0xa9] sm:$0xff]
      %v1714 = vld [vmem:[%s1308 + $0xb1] sm:$0xff]
      %v1715 = vld [vmem:[%s1308 + $0xc1] sm:$0xff]
      %v1716 = vld [vmem:[%s1308 + $0xc9] sm:$0xff]
      %v1717 = vld [vmem:[%s1308 + $0xd9] sm:$0xff]
      %v1718 = vld [vmem:[%s1308 + $0xe1] sm:$0xff]
      %v1719 = vld [vmem:[%s1308 + $0xf1] sm:$0xff]
      %v1720 = vld [vmem:[%s1308 + $0xf9] sm:$0xff]
      %v1721 = vld [vmem:[%s1308 + $0x109] sm:$0xff]
      %v1722 = vld [vmem:[%s1308 + $0x111] sm:$0xff]
      %v1723 = vld [vmem:[%s1308 + $0x121] sm:$0xff]
      %v1724 = vld [vmem:[%s1308 + $0x129] sm:$0xff]
      %v1725 = vld [vmem:[%s1308 + $0x139] sm:$0xff]
      %v1726 = vld [vmem:[%s1308 + $0x141] sm:$0xff]
      %v1727 = vld [vmem:[%s1308 + $0x151] sm:$0xff]
      %v1728 = vld [vmem:[%s1308 + $0x159] sm:$0xff]
      %v1729 = vld [vmem:[%s1308 + $0x169] sm:$0xff]
      %v1730 = vld [vmem:[%s1308 + $0x171] sm:$0xff]
      %s1731 = scalar_lea.vmem %s1, 16
      %v1732 = vld [vmem:[%s1731] sm:$0xf]
      %v1734 = vsel %vm266, %v1699, 0
      %v1737 = vsel %vm266, %v1700, 0
      %v1740 = vsel %vm266, %v1701, 0
      %v1743 = vsel %vm266, %v1702, 0
      %v1746 = vsel %vm266, %v1703, 0
      %v1749 = vsel %vm266, %v1704, 0
      %v1752 = vsel %vm266, %v1705, 0
      %v1755 = vsel %vm266, %v1706, 0
      %v1758 = vsel %vm266, %v1707, 0
      %v1761 = vsel %vm266, %v1708, 0
      %v1764 = vsel %vm266, %v1709, 0
      %v1767 = vsel %vm266, %v1710, 0
      %v1770 = vsel %vm266, %v1711, 0
      %v1773 = vsel %vm266, %v1712, 0
      %v1776 = vsel %vm266, %v1713, 0
      %v1779 = vsel %vm266, %v1714, 0
      %v1782 = vsel %vm266, %v1715, 0
      %v1785 = vsel %vm266, %v1716, 0
      %v1788 = vsel %vm266, %v1717, 0
      %v1791 = vsel %vm266, %v1718, 0
      %v1794 = vsel %vm266, %v1719, 0
      %v1797 = vsel %vm266, %v1720, 0
      %v1800 = vsel %vm266, %v1721, 0
      %v1803 = vsel %vm266, %v1722, 0
      %v1806 = vsel %vm266, %v1723, 0
      %v1809 = vsel %vm266, %v1724, 0
      %v1812 = vsel %vm266, %v1725, 0
      %v1815 = vsel %vm266, %v1726, 0
      %v1818 = vsel %vm266, %v1727, 0
      %v1821 = vsel %vm266, %v1728, 0
      %v1824 = vsel %vm266, %v1729, 0
      %v1827 = vsel %vm266, %v1730, 0
      %v1830 = vsel %vm363, %v1732, 0
      %1832 = vmatprep.subr.mxu0 0.0
      %1833 = vmatpush1.msra.mxu0 %v1830
      %1834 = vmatprep.subr.mxu0 0.0
      %1835 = vmatpush1.msra.mxu0 0.0
      %1836 = vmatprep.subr.mxu0 0.0
      %1837 = vmatpush1.msra.mxu0 0.0
      %1838 = vmatprep.subr.mxu0 0.0
      %1839 = vmatpush1.msra.mxu0 0.0
      %1840 = vmatprep.subr.mxu0 0.0
      %1841 = vmatpush1.msra.mxu0 0.0
      %1842 = vmatprep.subr.mxu0 0.0
      %1843 = vmatpush1.msra.mxu0 0.0
      %1844 = vmatprep.subr.mxu0 0.0
      %1845 = vmatpush1.msra.mxu0 0.0
      %1846 = vmatprep.subr.mxu0 0.0
      %1847 = vmatpush1.msra.mxu0 0.0
      %1848 = vmatprep.subr.mxu0 0.0
      %1849 = vmatpush1.msra.mxu0 0.0
      %1850 = vmatprep.subr.mxu0 0.0
      %1851 = vmatpush1.msra.mxu0 0.0
      %1852 = vmatprep.subr.mxu0 0.0
      %1853 = vmatpush1.msra.mxu0 0.0
      %1854 = vmatprep.subr.mxu0 0.0
      %1855 = vmatpush1.msra.mxu0 0.0
      %1856 = vmatprep.subr.mxu0 0.0
      %1857 = vmatpush1.msra.mxu0 0.0
      %1858 = vmatprep.subr.mxu0 0.0
      %1859 = vmatpush1.msra.mxu0 0.0
      %1860 = vmatprep.subr.mxu0 0.0
      %1861 = vmatpush1.msra.mxu0 0.0
      %1862 = vmatprep.subr.mxu0 0.0
      %1863 = vmatpush1.msra.mxu0 0.0
      %1864 = vmatprep.subr.mxu0 0.0
      %1865 = vmatpush1.msra.mxu0 0.0
      %1866 = vmatprep.subr.mxu0 0.0
      %1867 = vmatpush1.msra.mxu0 0.0
      %1868 = vmatprep.subr.mxu0 0.0
      %1869 = vmatpush1.msra.mxu0 0.0
      %1870 = vmatprep.subr.mxu0 0.0
      %1871 = vmatpush1.msra.mxu0 0.0
      %1872 = vmatprep.subr.mxu0 0.0
      %1873 = vmatpush1.msra.mxu0 0.0
      %1874 = vmatprep.subr.mxu0 0.0
      %1875 = vmatpush1.msra.mxu0 0.0
      %1876 = vmatprep.subr.mxu0 0.0
      %1877 = vmatpush1.msra.mxu0 0.0
      %1878 = vmatprep.subr.mxu0 0.0
      %1879 = vmatpush1.msra.mxu0 0.0
      %1880 = vmatprep.subr.mxu0 0.0
      %1881 = vmatpush1.msra.mxu0 0.0
      %1882 = vmatprep.subr.mxu0 0.0
      %1883 = vmatpush1.msra.mxu0 0.0
      %1884 = vmatprep.subr.mxu0 0.0
      %1885 = vmatpush1.msra.mxu0 0.0
      %1886 = vmatprep.subr.mxu0 0.0
      %1887 = vmatpush1.msra.mxu0 0.0
      %1888 = vmatprep.subr.mxu0 0.0
      %1889 = vmatpush1.msra.mxu0 0.0
      %1890 = vmatprep.subr.mxu0 0.0
      %1891 = vmatpush1.msra.mxu0 0.0
      %1892 = vmatprep.subr.mxu0 0.0
      %1893 = vmatpush1.msra.mxu0 0.0
      %1894 = vmatprep.subr.mxu0 0.0
      %1895 = vmatpush1.msra.mxu0 0.0
      %1896 = vmatprep.mubr.f32.mxu0 0.0
      %1897 = vmatmul.mubr.f32.gmra.mrb[0].mxu0 %v1734
      %v1898 = vpop.f32.mrb[0].mxu0
      %v1899 = vadd.f32 0.0, %v1898
      %v1900 = vpop.f32.mrb[0].mxu0
      %1901 = vmatprep.mubr.f32.mxu0 0.0
      %1902 = vmatmul.mubr.f32.gmra.mrb[0].mxu0 %v1737
      %v1903 = vpop.f32.mrb[0].mxu0
      %v1904 = vadd.f32 0.0, %v1903
      %v1905 = vpop.f32.mrb[0].mxu0
      %1906 = vmatprep.mubr.f32.mxu0 0.0
      %1907 = vmatmul.mubr.f32.gmra.mrb[0].mxu0 %v1740
      %v1908 = vpop.f32.mrb[0].mxu0
      %v1909 = vadd.f32 0.0, %v1908
      %v1910 = vpop.f32.mrb[0].mxu0
      %1911 = vmatprep.mubr.f32.mxu0 0.0
      %1912 = vmatmul.mubr.f32.gmra.mrb[0].mxu0 %v1743
      %v1913 = vpop.f32.mrb[0].mxu0
      %v1914 = vadd.f32 0.0, %v1913
      %v1915 = vpop.f32.mrb[0].mxu0
      %1916 = vmatprep.mubr.f32.mxu0 0.0
      %1917 = vmatmul.mubr.f32.gmra.mrb[0].mxu0 %v1746
      %v1918 = vpop.f32.mrb[0].mxu0
      %v1919 = vadd.f32 0.0, %v1918
      %v1920 = vpop.f32.mrb[0].mxu0
      %1921 = vmatprep.mubr.f32.mxu0 0.0
      %1922 = vmatmul.mubr.f32.gmra.mrb[0].mxu0 %v1749
      %v1923 = vpop.f32.mrb[0].mxu0
      %v1924 = vadd.f32 0.0, %v1923
      %v1925 = vpop.f32.mrb[0].mxu0
      %1926 = vmatprep.mubr.f32.mxu0 0.0
      %1927 = vmatmul.mubr.f32.gmra.mrb[0].mxu0 %v1752
      %v1928 = vpop.f32.mrb[0].mxu0
      %v1929 = vadd.f32 0.0, %v1928
      %v1930 = vpop.f32.mrb[0].mxu0
      %1931 = vmatprep.mubr.f32.mxu0 0.0
      %1932 = vmatmul.mubr.f32.gmra.mrb[0].mxu0 %v1755
      %v1933 = vpop.f32.mrb[0].mxu0
      %v1934 = vadd.f32 0.0, %v1933
      %v1935 = vpop.f32.mrb[0].mxu0
      %1936 = vmatprep.mubr.f32.mxu0 0.0
      %1937 = vmatmul.mubr.f32.gmra.mrb[0].mxu0 %v1758
      %v1938 = vpop.f32.mrb[0].mxu0
      %v1939 = vadd.f32 0.0, %v1938
      %v1940 = vpop.f32.mrb[0].mxu0
      %1941 = vmatprep.mubr.f32.mxu0 0.0
      %1942 = vmatmul.mubr.f32.gmra.mrb[0].mxu0 %v1761
      %v1943 = vpop.f32.mrb[0].mxu0
      %v1944 = vadd.f32 0.0, %v1943
      %v1945 = vpop.f32.mrb[0].mxu0
      %1946 = vmatprep.mubr.f32.mxu0 0.0
      %1947 = vmatmul.mubr.f32.gmra.mrb[0].mxu0 %v1764
      %v1948 = vpop.f32.mrb[0].mxu0
      %v1949 = vadd.f32 0.0, %v1948
      %v1950 = vpop.f32.mrb[0].mxu0
      %1951 = vmatprep.mubr.f32.mxu0 0.0
      %1952 = vmatmul.mubr.f32.gmra.mrb[0].mxu0 %v1767
      %v1953 = vpop.f32.mrb[0].mxu0
      %v1954 = vadd.f32 0.0, %v1953
      %v1955 = vpop.f32.mrb[0].mxu0
      %1956 = vmatprep.mubr.f32.mxu0 0.0
      %1957 = vmatmul.mubr.f32.gmra.mrb[0].mxu0 %v1770
      %v1958 = vpop.f32.mrb[0].mxu0
      %v1959 = vadd.f32 0.0, %v1958
      %v1960 = vpop.f32.mrb[0].mxu0
      %1961 = vmatprep.mubr.f32.mxu0 0.0
      %1962 = vmatmul.mubr.f32.gmra.mrb[0].mxu0 %v1773
      %v1963 = vpop.f32.mrb[0].mxu0
      %v1964 = vadd.f32 0.0, %v1963
      %v1965 = vpop.f32.mrb[0].mxu0
      %1966 = vmatprep.mubr.f32.mxu0 0.0
      %1967 = vmatmul.mubr.f32.gmra.mrb[0].mxu0 %v1776
      %v1968 = vpop.f32.mrb[0].mxu0
      %v1969 = vadd.f32 0.0, %v1968
      %v1970 = vpop.f32.mrb[0].mxu0
      %1971 = vmatprep.mubr.f32.mxu0 0.0
      %1972 = vmatmul.mubr.f32.gmra.mrb[0].mxu0 %v1779
      %v1973 = vpop.f32.mrb[0].mxu0
      %v1974 = vadd.f32 0.0, %v1973
      %v1975 = vpop.f32.mrb[0].mxu0
      %1976 = vmatprep.mubr.f32.mxu0 0.0
      %1977 = vmatmul.mubr.f32.gmra.mrb[0].mxu0 %v1782
      %v1978 = vpop.f32.mrb[0].mxu0
      %v1979 = vadd.f32 0.0, %v1978
      %v1980 = vpop.f32.mrb[0].mxu0
      %1981 = vmatprep.mubr.f32.mxu0 0.0
      %1982 = vmatmul.mubr.f32.gmra.mrb[0].mxu0 %v1785
      %v1983 = vpop.f32.mrb[0].mxu0
      %v1984 = vadd.f32 0.0, %v1983
      %v1985 = vpop.f32.mrb[0].mxu0
      %1986 = vmatprep.mubr.f32.mxu0 0.0
      %1987 = vmatmul.mubr.f32.gmra.mrb[0].mxu0 %v1788
      %v1988 = vpop.f32.mrb[0].mxu0
      %v1989 = vadd.f32 0.0, %v1988
      %v1990 = vpop.f32.mrb[0].mxu0
      %1991 = vmatprep.mubr.f32.mxu0 0.0
      %1992 = vmatmul.mubr.f32.gmra.mrb[0].mxu0 %v1791
      %v1993 = vpop.f32.mrb[0].mxu0
      %v1994 = vadd.f32 0.0, %v1993
      %v1995 = vpop.f32.mrb[0].mxu0
      %1996 = vmatprep.mubr.f32.mxu0 0.0
      %1997 = vmatmul.mubr.f32.gmra.mrb[0].mxu0 %v1794
      %v1998 = vpop.f32.mrb[0].mxu0
      %v1999 = vadd.f32 0.0, %v1998
      %v2000 = vpop.f32.mrb[0].mxu0
      %2001 = vmatprep.mubr.f32.mxu0 0.0
      %2002 = vmatmul.mubr.f32.gmra.mrb[0].mxu0 %v1797
      %v2003 = vpop.f32.mrb[0].mxu0
      %v2004 = vadd.f32 0.0, %v2003
      %v2005 = vpop.f32.mrb[0].mxu0
      %2006 = vmatprep.mubr.f32.mxu0 0.0
      %2007 = vmatmul.mubr.f32.gmra.mrb[0].mxu0 %v1800
      %v2008 = vpop.f32.mrb[0].mxu0
      %v2009 = vadd.f32 0.0, %v2008
      %v2010 = vpop.f32.mrb[0].mxu0
      %2011 = vmatprep.mubr.f32.mxu0 0.0
      %2012 = vmatmul.mubr.f32.gmra.mrb[0].mxu0 %v1803
      %v2013 = vpop.f32.mrb[0].mxu0
      %v2014 = vadd.f32 0.0, %v2013
      %v2015 = vpop.f32.mrb[0].mxu0
      %2016 = vmatprep.mubr.f32.mxu0 0.0
      %2017 = vmatmul.mubr.f32.gmra.mrb[0].mxu0 %v1806
      %v2018 = vpop.f32.mrb[0].mxu0
      %v2019 = vadd.f32 0.0, %v2018
      %v2020 = vpop.f32.mrb[0].mxu0
      %2021 = vmatprep.mubr.f32.mxu0 0.0
      %2022 = vmatmul.mubr.f32.gmra.mrb[0].mxu0 %v1809
      %v2023 = vpop.f32.mrb[0].mxu0
      %v2024 = vadd.f32 0.0, %v2023
      %v2025 = vpop.f32.mrb[0].mxu0
      %2026 = vmatprep.mubr.f32.mxu0 0.0
      %2027 = vmatmul.mubr.f32.gmra.mrb[0].mxu0 %v1812
      %v2028 = vpop.f32.mrb[0].mxu0
      %v2029 = vadd.f32 0.0, %v2028
      %v2030 = vpop.f32.mrb[0].mxu0
      %2031 = vmatprep.mubr.f32.mxu0 0.0
      %2032 = vmatmul.mubr.f32.gmra.mrb[0].mxu0 %v1815
      %v2033 = vpop.f32.mrb[0].mxu0
      %v2034 = vadd.f32 0.0, %v2033
      %v2035 = vpop.f32.mrb[0].mxu0
      %2036 = vmatprep.mubr.f32.mxu0 0.0
      %2037 = vmatmul.mubr.f32.gmra.mrb[0].mxu0 %v1818
      %v2038 = vpop.f32.mrb[0].mxu0
      %v2039 = vadd.f32 0.0, %v2038
      %v2040 = vpop.f32.mrb[0].mxu0
      %2041 = vmatprep.mubr.f32.mxu0 0.0
      %2042 = vmatmul.mubr.f32.gmra.mrb[0].mxu0 %v1821
      %v2043 = vpop.f32.mrb[0].mxu0
      %v2044 = vadd.f32 0.0, %v2043
      %v2045 = vpop.f32.mrb[0].mxu0
      %2046 = vmatprep.mubr.f32.mxu0 0.0
      %2047 = vmatmul.mubr.f32.gmra.mrb[0].mxu0 %v1824
      %v2048 = vpop.f32.mrb[0].mxu0
      %v2049 = vadd.f32 0.0, %v2048
      %v2050 = vpop.f32.mrb[0].mxu0
      %2051 = vmatprep.mubr.f32.mxu0 0.0
      %2052 = vmatmul.mubr.f32.gmra.mrb[0].mxu0 %v1827
      %v2053 = vpop.f32.mrb[0].mxu0
      %v2054 = vadd.f32 0.0, %v2053
      %v2055 = vpop.f32.mrb[0].mxu0
      %2056 = vdwg.mxu0
      %v2057 = vadd.f32 %v1667, %v1899
      %v2058 = vadd.f32 %v1668, %v1904
      %v2059 = vadd.f32 %v1669, %v1909
      %v2060 = vadd.f32 %v1670, %v1914
      %v2061 = vadd.f32 %v1671, %v1919
      %v2062 = vadd.f32 %v1672, %v1924
      %v2063 = vadd.f32 %v1673, %v1929
      %v2064 = vadd.f32 %v1674, %v1934
      %v2065 = vadd.f32 %v1675, %v1939
      %v2066 = vadd.f32 %v1676, %v1944
      %v2067 = vadd.f32 %v1677, %v1949
      %v2068 = vadd.f32 %v1678, %v1954
      %v2069 = vadd.f32 %v1679, %v1959
      %v2070 = vadd.f32 %v1680, %v1964
      %v2071 = vadd.f32 %v1681, %v1969
      %v2072 = vadd.f32 %v1682, %v1974
      %v2073 = vadd.f32 %v1683, %v1979
      %v2074 = vadd.f32 %v1684, %v1984
      %v2075 = vadd.f32 %v1685, %v1989
      %v2076 = vadd.f32 %v1686, %v1994
      %v2077 = vadd.f32 %v1687, %v1999
      %v2078 = vadd.f32 %v1688, %v2004
      %v2079 = vadd.f32 %v1689, %v2009
      %v2080 = vadd.f32 %v1690, %v2014
      %v2081 = vadd.f32 %v1691, %v2019
      %v2082 = vadd.f32 %v1692, %v2024
      %v2083 = vadd.f32 %v1693, %v2029
      %v2084 = vadd.f32 %v1694, %v2034
      %v2085 = vadd.f32 %v1695, %v2039
      %v2086 = vadd.f32 %v1696, %v2044
      %v2087 = vadd.f32 %v1697, %v2049
      %v2088 = vadd.f32 %v1698, %v2054
      %v2089 = vld [vmem:[%s1308 + $0x2] sm:$0xff]
      %v2090 = vld [vmem:[%s1308 + $0xa] sm:$0xff]
      %v2091 = vld [vmem:[%s1308 + $0x1a] sm:$0xff]
      %v2092 = vld [vmem:[%s1308 + $0x22] sm:$0xff]
      %v2093 = vld [vmem:[%s1308 + $0x32] sm:$0xff]
      %v2094 = vld [vmem:[%s1308 + $0x3a] sm:$0xff]
      %v2095 = vld [vmem:[%s1308 + $0x4a] sm:$0xff]
      %v2096 = vld [vmem:[%s1308 + $0x52] sm:$0xff]
      %v2097 = vld [vmem:[%s1308 + $0x62] sm:$0xff]
      %v2098 = vld [vmem:[%s1308 + $0x6a] sm:$0xff]
      %v2099 = vld [vmem:[%s1308 + $0x7a] sm:$0xff]
      %v2100 = vld [vmem:[%s1308 + $0x82] sm:$0xff]
      %v2101 = vld [vmem:[%s1308 + $0x92] sm:$0xff]
      %v2102 = vld [vmem:[%s1308 + $0x9a] sm:$0xff]
      %v2103 = vld [vmem:[%s1308 + $0xaa] sm:$0xff]
      %v2104 = vld [vmem:[%s1308 + $0xb2] sm:$0xff]
      %v2105 = vld [vmem:[%s1308 + $0xc2] sm:$0xff]
      %v2106 = vld [vmem:[%s1308 + $0xca] sm:$0xff]
      %v2107 = vld [vmem:[%s1308 + $0xda] sm:$0xff]
      %v2108 = vld [vmem:[%s1308 + $0xe2] sm:$0xff]
      %v2109 = vld [vmem:[%s1308 + $0xf2] sm:$0xff]
      %v2110 = vld [vmem:[%s1308 + $0xfa] sm:$0xff]
      %v2111 = vld [vmem:[%s1308 + $0x10a] sm:$0xff]
      %v2112 = vld [vmem:[%s1308 + $0x112] sm:$0xff]
      %v2113 = vld [vmem:[%s1308 + $0x122] sm:$0xff]
      %v2114 = vld [vmem:[%s1308 + $0x12a] sm:$0xff]
      %v2115 = vld [vmem:[%s1308 + $0x13a] sm:$0xff]
      %v2116 = vld [vmem:[%s1308 + $0x142] sm:$0xff]
      %v2117 = vld [vmem:[%s1308 + $0x152] sm:$0xff]
      %v2118 = vld [vmem:[%s1308 + $0x15a] sm:$0xff]
      %v2119 = vld [vmem:[%s1308 + $0x16a] sm:$0xff]
      %v2120 = vld [vmem:[%s1308 + $0x172] sm:$0xff]
      %s2121 = scalar_lea.vmem %s1, 20
      %v2122 = vld [vmem:[%s2121] sm:$0xf]
      %v2124 = vsel %vm266, %v2089, 0
      %v2127 = vsel %vm266, %v2090, 0
      %v2130 = vsel %vm266, %v2091, 0
      %v2133 = vsel %vm266, %v2092, 0
      %v2136 = vsel %vm266, %v2093, 0
      %v2139 = vsel %vm266, %v2094, 0
      %v2142 = vsel %vm266, %v2095, 0
      %v2145 = vsel %vm266, %v2096, 0
      %v2148 = vsel %vm266, %v2097, 0
      %v2151 = vsel %vm266, %v2098, 0
      %v2154 = vsel %vm266, %v2099, 0
      %v2157 = vsel %vm266, %v2100, 0
      %v2160 = vsel %vm266, %v2101, 0
      %v2163 = vsel %vm266, %v2102, 0
      %v2166 = vsel %vm266, %v2103, 0
      %v2169 = vsel %vm266, %v2104, 0
      %v2172 = vsel %vm266, %v2105, 0
      %v2175 = vsel %vm266, %v2106, 0
      %v2178 = vsel %vm266, %v2107, 0
      %v2181 = vsel %vm266, %v2108, 0
      %v2184 = vsel %vm266, %v2109, 0
      %v2187 = vsel %vm266, %v2110, 0
      %v2190 = vsel %vm266, %v2111, 0
      %v2193 = vsel %vm266, %v2112, 0
      %v2196 = vsel %vm266, %v2113, 0
      %v2199 = vsel %vm266, %v2114, 0
      %v2202 = vsel %vm266, %v2115, 0
      %v2205 = vsel %vm266, %v2116, 0
      %v2208 = vsel %vm266, %v2117, 0
      %v2211 = vsel %vm266, %v2118, 0
      %v2214 = vsel %vm266, %v2119, 0
      %v2217 = vsel %vm266, %v2120, 0
      %v2220 = vsel %vm363, %v2122, 0
      %2222 = vmatprep.subr.mxu0 0.0
      %2223 = vmatpush1.msra.mxu0 %v2220
      %2224 = vmatprep.subr.mxu0 0.0
      %2225 = vmatpush1.msra.mxu0 0.0
      %2226 = vmatprep.subr.mxu0 0.0
      %2227 = vmatpush1.msra.mxu0 0.0
      %2228 = vmatprep.subr.mxu0 0.0
      %2229 = vmatpush1.msra.mxu0 0.0
      %2230 = vmatprep.subr.mxu0 0.0
      %2231 = vmatpush1.msra.mxu0 0.0
      %2232 = vmatprep.subr.mxu0 0.0
      %2233 = vmatpush1.msra.mxu0 0.0
      %2234 = vmatprep.subr.mxu0 0.0
      %2235 = vmatpush1.msra.mxu0 0.0
      %2236 = vmatprep.subr.mxu0 0.0
      %2237 = vmatpush1.msra.mxu0 0.0
      %2238 = vmatprep.subr.mxu0 0.0
      %2239 = vmatpush1.msra.mxu0 0.0
      %2240 = vmatprep.subr.mxu0 0.0
      %2241 = vmatpush1.msra.mxu0 0.0
      %2242 = vmatprep.subr.mxu0 0.0
      %2243 = vmatpush1.msra.mxu0 0.0
      %2244 = vmatprep.subr.mxu0 0.0
      %2245 = vmatpush1.msra.mxu0 0.0
      %2246 = vmatprep.subr.mxu0 0.0
      %2247 = vmatpush1.msra.mxu0 0.0
      %2248 = vmatprep.subr.mxu0 0.0
      %2249 = vmatpush1.msra.mxu0 0.0
      %2250 = vmatprep.subr.mxu0 0.0
      %2251 = vmatpush1.msra.mxu0 0.0
      %2252 = vmatprep.subr.mxu0 0.0
      %2253 = vmatpush1.msra.mxu0 0.0
      %2254 = vmatprep.subr.mxu0 0.0
      %2255 = vmatpush1.msra.mxu0 0.0
      %2256 = vmatprep.subr.mxu0 0.0
      %2257 = vmatpush1.msra.mxu0 0.0
      %2258 = vmatprep.subr.mxu0 0.0
      %2259 = vmatpush1.msra.mxu0 0.0
      %2260 = vmatprep.subr.mxu0 0.0
      %2261 = vmatpush1.msra.mxu0 0.0
      %2262 = vmatprep.subr.mxu0 0.0
      %2263 = vmatpush1.msra.mxu0 0.0
      %2264 = vmatprep.subr.mxu0 0.0
      %2265 = vmatpush1.msra.mxu0 0.0
      %2266 = vmatprep.subr.mxu0 0.0
      %2267 = vmatpush1.msra.mxu0 0.0
      %2268 = vmatprep.subr.mxu0 0.0
      %2269 = vmatpush1.msra.mxu0 0.0
      %2270 = vmatprep.subr.mxu0 0.0
      %2271 = vmatpush1.msra.mxu0 0.0
      %2272 = vmatprep.subr.mxu0 0.0
      %2273 = vmatpush1.msra.mxu0 0.0
      %2274 = vmatprep.subr.mxu0 0.0
      %2275 = vmatpush1.msra.mxu0 0.0
      %2276 = vmatprep.subr.mxu0 0.0
      %2277 = vmatpush1.msra.mxu0 0.0
      %2278 = vmatprep.subr.mxu0 0.0
      %2279 = vmatpush1.msra.mxu0 0.0
      %2280 = vmatprep.subr.mxu0 0.0
      %2281 = vmatpush1.msra.mxu0 0.0
      %2282 = vmatprep.subr.mxu0 0.0
      %2283 = vmatpush1.msra.mxu0 0.0
      %2284 = vmatprep.subr.mxu0 0.0
      %2285 = vmatpush1.msra.mxu0 0.0
      %2286 = vmatprep.mubr.f32.mxu0 0.0
      %2287 = vmatmul.mubr.f32.gmra.mrb[0].mxu0 %v2124
      %v2288 = vpop.f32.mrb[0].mxu0
      %v2289 = vadd.f32 0.0, %v2288
      %v2290 = vpop.f32.mrb[0].mxu0
      %2291 = vmatprep.mubr.f32.mxu0 0.0
      %2292 = vmatmul.mubr.f32.gmra.mrb[0].mxu0 %v2127
      %v2293 = vpop.f32.mrb[0].mxu0
      %v2294 = vadd.f32 0.0, %v2293
      %v2295 = vpop.f32.mrb[0].mxu0
      %2296 = vmatprep.mubr.f32.mxu0 0.0
      %2297 = vmatmul.mubr.f32.gmra.mrb[0].mxu0 %v2130
      %v2298 = vpop.f32.mrb[0].mxu0
      %v2299 = vadd.f32 0.0, %v2298
      %v2300 = vpop.f32.mrb[0].mxu0
      %2301 = vmatprep.mubr.f32.mxu0 0.0
      %2302 = vmatmul.mubr.f32.gmra.mrb[0].mxu0 %v2133
      %v2303 = vpop.f32.mrb[0].mxu0
      %v2304 = vadd.f32 0.0, %v2303
      %v2305 = vpop.f32.mrb[0].mxu0
      %2306 = vmatprep.mubr.f32.mxu0 0.0
      %2307 = vmatmul.mubr.f32.gmra.mrb[0].mxu0 %v2136
      %v2308 = vpop.f32.mrb[0].mxu0
      %v2309 = vadd.f32 0.0, %v2308
      %v2310 = vpop.f32.mrb[0].mxu0
      %2311 = vmatprep.mubr.f32.mxu0 0.0
      %2312 = vmatmul.mubr.f32.gmra.mrb[0].mxu0 %v2139
      %v2313 = vpop.f32.mrb[0].mxu0
      %v2314 = vadd.f32 0.0, %v2313
      %v2315 = vpop.f32.mrb[0].mxu0
      %2316 = vmatprep.mubr.f32.mxu0 0.0
      %2317 = vmatmul.mubr.f32.gmra.mrb[0].mxu0 %v2142
      %v2318 = vpop.f32.mrb[0].mxu0
      %v2319 = vadd.f32 0.0, %v2318
      %v2320 = vpop.f32.mrb[0].mxu0
      %2321 = vmatprep.mubr.f32.mxu0 0.0
      %2322 = vmatmul.mubr.f32.gmra.mrb[0].mxu0 %v2145
      %v2323 = vpop.f32.mrb[0].mxu0
      %v2324 = vadd.f32 0.0, %v2323
      %v2325 = vpop.f32.mrb[0].mxu0
      %2326 = vmatprep.mubr.f32.mxu0 0.0
      %2327 = vmatmul.mubr.f32.gmra.mrb[0].mxu0 %v2148
      %v2328 = vpop.f32.mrb[0].mxu0
      %v2329 = vadd.f32 0.0, %v2328
      %v2330 = vpop.f32.mrb[0].mxu0
      %2331 = vmatprep.mubr.f32.mxu0 0.0
      %2332 = vmatmul.mubr.f32.gmra.mrb[0].mxu0 %v2151
      %v2333 = vpop.f32.mrb[0].mxu0
      %v2334 = vadd.f32 0.0, %v2333
      %v2335 = vpop.f32.mrb[0].mxu0
      %2336 = vmatprep.mubr.f32.mxu0 0.0
      %2337 = vmatmul.mubr.f32.gmra.mrb[0].mxu0 %v2154
      %v2338 = vpop.f32.mrb[0].mxu0
      %v2339 = vadd.f32 0.0, %v2338
      %v2340 = vpop.f32.mrb[0].mxu0
      %2341 = vmatprep.mubr.f32.mxu0 0.0
      %2342 = vmatmul.mubr.f32.gmra.mrb[0].mxu0 %v2157
      %v2343 = vpop.f32.mrb[0].mxu0
      %v2344 = vadd.f32 0.0, %v2343
      %v2345 = vpop.f32.mrb[0].mxu0
      %2346 = vmatprep.mubr.f32.mxu0 0.0
      %2347 = vmatmul.mubr.f32.gmra.mrb[0].mxu0 %v2160
      %v2348 = vpop.f32.mrb[0].mxu0
      %v2349 = vadd.f32 0.0, %v2348
      %v2350 = vpop.f32.mrb[0].mxu0
      %2351 = vmatprep.mubr.f32.mxu0 0.0
      %2352 = vmatmul.mubr.f32.gmra.mrb[0].mxu0 %v2163
      %v2353 = vpop.f32.mrb[0].mxu0
      %v2354 = vadd.f32 0.0, %v2353
      %v2355 = vpop.f32.mrb[0].mxu0
      %2356 = vmatprep.mubr.f32.mxu0 0.0
      %2357 = vmatmul.mubr.f32.gmra.mrb[0].mxu0 %v2166
      %v2358 = vpop.f32.mrb[0].mxu0
      %v2359 = vadd.f32 0.0, %v2358
      %v2360 = vpop.f32.mrb[0].mxu0
      %2361 = vmatprep.mubr.f32.mxu0 0.0
      %2362 = vmatmul.mubr.f32.gmra.mrb[0].mxu0 %v2169
      %v2363 = vpop.f32.mrb[0].mxu0
      %v2364 = vadd.f32 0.0, %v2363
      %v2365 = vpop.f32.mrb[0].mxu0
      %2366 = vmatprep.mubr.f32.mxu0 0.0
      %2367 = vmatmul.mubr.f32.gmra.mrb[0].mxu0 %v2172
      %v2368 = vpop.f32.mrb[0].mxu0
      %v2369 = vadd.f32 0.0, %v2368
      %v2370 = vpop.f32.mrb[0].mxu0
      %2371 = vmatprep.mubr.f32.mxu0 0.0
      %2372 = vmatmul.mubr.f32.gmra.mrb[0].mxu0 %v2175
      %v2373 = vpop.f32.mrb[0].mxu0
      %v2374 = vadd.f32 0.0, %v2373
      %v2375 = vpop.f32.mrb[0].mxu0
      %2376 = vmatprep.mubr.f32.mxu0 0.0
      %2377 = vmatmul.mubr.f32.gmra.mrb[0].mxu0 %v2178
      %v2378 = vpop.f32.mrb[0].mxu0
      %v2379 = vadd.f32 0.0, %v2378
      %v2380 = vpop.f32.mrb[0].mxu0
      %2381 = vmatprep.mubr.f32.mxu0 0.0
      %2382 = vmatmul.mubr.f32.gmra.mrb[0].mxu0 %v2181
      %v2383 = vpop.f32.mrb[0].mxu0
      %v2384 = vadd.f32 0.0, %v2383
      %v2385 = vpop.f32.mrb[0].mxu0
      %2386 = vmatprep.mubr.f32.mxu0 0.0
      %2387 = vmatmul.mubr.f32.gmra.mrb[0].mxu0 %v2184
      %v2388 = vpop.f32.mrb[0].mxu0
      %v2389 = vadd.f32 0.0, %v2388
      %v2390 = vpop.f32.mrb[0].mxu0
      %2391 = vmatprep.mubr.f32.mxu0 0.0
      %2392 = vmatmul.mubr.f32.gmra.mrb[0].mxu0 %v2187
      %v2393 = vpop.f32.mrb[0].mxu0
      %v2394 = vadd.f32 0.0, %v2393
      %v2395 = vpop.f32.mrb[0].mxu0
      %2396 = vmatprep.mubr.f32.mxu0 0.0
      %2397 = vmatmul.mubr.f32.gmra.mrb[0].mxu0 %v2190
      %v2398 = vpop.f32.mrb[0].mxu0
      %v2399 = vadd.f32 0.0, %v2398
      %v2400 = vpop.f32.mrb[0].mxu0
      %2401 = vmatprep.mubr.f32.mxu0 0.0
      %2402 = vmatmul.mubr.f32.gmra.mrb[0].mxu0 %v2193
      %v2403 = vpop.f32.mrb[0].mxu0
      %v2404 = vadd.f32 0.0, %v2403
      %v2405 = vpop.f32.mrb[0].mxu0
      %2406 = vmatprep.mubr.f32.mxu0 0.0
      %2407 = vmatmul.mubr.f32.gmra.mrb[0].mxu0 %v2196
      %v2408 = vpop.f32.mrb[0].mxu0
      %v2409 = vadd.f32 0.0, %v2408
      %v2410 = vpop.f32.mrb[0].mxu0
      %2411 = vmatprep.mubr.f32.mxu0 0.0
      %2412 = vmatmul.mubr.f32.gmra.mrb[0].mxu0 %v2199
      %v2413 = vpop.f32.mrb[0].mxu0
      %v2414 = vadd.f32 0.0, %v2413
      %v2415 = vpop.f32.mrb[0].mxu0
      %2416 = vmatprep.mubr.f32.mxu0 0.0
      %2417 = vmatmul.mubr.f32.gmra.mrb[0].mxu0 %v2202
      %v2418 = vpop.f32.mrb[0].mxu0
      %v2419 = vadd.f32 0.0, %v2418
      %v2420 = vpop.f32.mrb[0].mxu0
      %2421 = vmatprep.mubr.f32.mxu0 0.0
      %2422 = vmatmul.mubr.f32.gmra.mrb[0].mxu0 %v2205
      %v2423 = vpop.f32.mrb[0].mxu0
      %v2424 = vadd.f32 0.0, %v2423
      %v2425 = vpop.f32.mrb[0].mxu0
      %2426 = vmatprep.mubr.f32.mxu0 0.0
      %2427 = vmatmul.mubr.f32.gmra.mrb[0].mxu0 %v2208
      %v2428 = vpop.f32.mrb[0].mxu0
      %v2429 = vadd.f32 0.0, %v2428
      %v2430 = vpop.f32.mrb[0].mxu0
      %2431 = vmatprep.mubr.f32.mxu0 0.0
      %2432 = vmatmul.mubr.f32.gmra.mrb[0].mxu0 %v2211
      %v2433 = vpop.f32.mrb[0].mxu0
      %v2434 = vadd.f32 0.0, %v2433
      %v2435 = vpop.f32.mrb[0].mxu0
      %2436 = vmatprep.mubr.f32.mxu0 0.0
      %2437 = vmatmul.mubr.f32.gmra.mrb[0].mxu0 %v2214
      %v2438 = vpop.f32.mrb[0].mxu0
      %v2439 = vadd.f32 0.0, %v2438
      %v2440 = vpop.f32.mrb[0].mxu0
      %2441 = vmatprep.mubr.f32.mxu0 0.0
      %2442 = vmatmul.mubr.f32.gmra.mrb[0].mxu0 %v2217
      %v2443 = vpop.f32.mrb[0].mxu0
      %v2444 = vadd.f32 0.0, %v2443
      %v2445 = vpop.f32.mrb[0].mxu0
      %2446 = vdwg.mxu0
      %v2447 = vadd.f32 %v2057, %v2289
      %v2448 = vadd.f32 %v2058, %v2294
      %v2449 = vadd.f32 %v2059, %v2299
      %v2450 = vadd.f32 %v2060, %v2304
      %v2451 = vadd.f32 %v2061, %v2309
      %v2452 = vadd.f32 %v2062, %v2314
      %v2453 = vadd.f32 %v2063, %v2319
      %v2454 = vadd.f32 %v2064, %v2324
      %v2455 = vadd.f32 %v2065, %v2329
      %v2456 = vadd.f32 %v2066, %v2334
      %v2457 = vadd.f32 %v2067, %v2339
      %v2458 = vadd.f32 %v2068, %v2344
      %v2459 = vadd.f32 %v2069, %v2349
      %v2460 = vadd.f32 %v2070, %v2354
      %v2461 = vadd.f32 %v2071, %v2359
      %v2462 = vadd.f32 %v2072, %v2364
      %v2463 = vadd.f32 %v2073, %v2369
      %v2464 = vadd.f32 %v2074, %v2374
      %v2465 = vadd.f32 %v2075, %v2379
      %v2466 = vadd.f32 %v2076, %v2384
      %v2467 = vadd.f32 %v2077, %v2389
      %v2468 = vadd.f32 %v2078, %v2394
      %v2469 = vadd.f32 %v2079, %v2399
      %v2470 = vadd.f32 %v2080, %v2404
      %v2471 = vadd.f32 %v2081, %v2409
      %v2472 = vadd.f32 %v2082, %v2414
      %v2473 = vadd.f32 %v2083, %v2419
      %v2474 = vadd.f32 %v2084, %v2424
      %v2475 = vadd.f32 %v2085, %v2429
      %v2476 = vadd.f32 %v2086, %v2434
      %v2477 = vadd.f32 %v2087, %v2439
      %v2478 = vadd.f32 %v2088, %v2444
      %s2479 = sadd.s32 %s196, 2
      %s2480 = smul.u32 %s2479, 24
      %s2481 = scalar_lea.vmem %s184, %s2480
      %v2482 = vld [vmem:[%s2481] sm:$0xff]
      %v2483 = vld [vmem:[%s2481 + $0x8] sm:$0xff]
      %v2484 = vld [vmem:[%s2481 + $0x18] sm:$0xff]
      %v2485 = vld [vmem:[%s2481 + $0x20] sm:$0xff]
      %v2486 = vld [vmem:[%s2481 + $0x30] sm:$0xff]
      %v2487 = vld [vmem:[%s2481 + $0x38] sm:$0xff]
      %v2488 = vld [vmem:[%s2481 + $0x48] sm:$0xff]
      %v2489 = vld [vmem:[%s2481 + $0x50] sm:$0xff]
      %v2490 = vld [vmem:[%s2481 + $0x60] sm:$0xff]
      %v2491 = vld [vmem:[%s2481 + $0x68] sm:$0xff]
      %v2492 = vld [vmem:[%s2481 + $0x78] sm:$0xff]
      %v2493 = vld [vmem:[%s2481 + $0x80] sm:$0xff]
      %v2494 = vld [vmem:[%s2481 + $0x90] sm:$0xff]
      %v2495 = vld [vmem:[%s2481 + $0x98] sm:$0xff]
      %v2496 = vld [vmem:[%s2481 + $0xa8] sm:$0xff]
      %v2497 = vld [vmem:[%s2481 + $0xb0] sm:$0xff]
      %v2498 = vld [vmem:[%s2481 + $0xc0] sm:$0xff]
      %v2499 = vld [vmem:[%s2481 + $0xc8] sm:$0xff]
      %v2500 = vld [vmem:[%s2481 + $0xd8] sm:$0xff]
      %v2501 = vld [vmem:[%s2481 + $0xe0] sm:$0xff]
      %v2502 = vld [vmem:[%s2481 + $0xf0] sm:$0xff]
      %v2503 = vld [vmem:[%s2481 + $0xf8] sm:$0xff]
      %v2504 = vld [vmem:[%s2481 + $0x108] sm:$0xff]
      %v2505 = vld [vmem:[%s2481 + $0x110] sm:$0xff]
      %v2506 = vld [vmem:[%s2481 + $0x120] sm:$0xff]
      %v2507 = vld [vmem:[%s2481 + $0x128] sm:$0xff]
      %v2508 = vld [vmem:[%s2481 + $0x138] sm:$0xff]
      %v2509 = vld [vmem:[%s2481 + $0x140] sm:$0xff]
      %v2510 = vld [vmem:[%s2481 + $0x150] sm:$0xff]
      %v2511 = vld [vmem:[%s2481 + $0x158] sm:$0xff]
      %v2512 = vld [vmem:[%s2481 + $0x168] sm:$0xff]
      %v2513 = vld [vmem:[%s2481 + $0x170] sm:$0xff]
      %s2514 = scalar_lea.vmem %s1, 24
      %v2515 = vld [vmem:[%s2514] sm:$0xf]
      %v2517 = vsel %vm266, %v2482, 0
      %v2520 = vsel %vm266, %v2483, 0
      %v2523 = vsel %vm266, %v2484, 0
      %v2526 = vsel %vm266, %v2485, 0
      %v2529 = vsel %vm266, %v2486, 0
      %v2532 = vsel %vm266, %v2487, 0
      %v2535 = vsel %vm266, %v2488, 0
      %v2538 = vsel %vm266, %v2489, 0
      %v2541 = vsel %vm266, %v2490, 0
      %v2544 = vsel %vm266, %v2491, 0
      %v2547 = vsel %vm266, %v2492, 0
      %v2550 = vsel %vm266, %v2493, 0
      %v2553 = vsel %vm266, %v2494, 0
      %v2556 = vsel %vm266, %v2495, 0
      %v2559 = vsel %vm266, %v2496, 0
      %v2562 = vsel %vm266, %v2497, 0
      %v2565 = vsel %vm266, %v2498, 0
      %v2568 = vsel %vm266, %v2499, 0
      %v2571 = vsel %vm266, %v2500, 0
      %v2574 = vsel %vm266, %v2501, 0
      %v2577 = vsel %vm266, %v2502, 0
      %v2580 = vsel %vm266, %v2503, 0
      %v2583 = vsel %vm266, %v2504, 0
      %v2586 = vsel %vm266, %v2505, 0
      %v2589 = vsel %vm266, %v2506, 0
      %v2592 = vsel %vm266, %v2507, 0
      %v2595 = vsel %vm266, %v2508, 0
      %v2598 = vsel %vm266, %v2509, 0
      %v2601 = vsel %vm266, %v2510, 0
      %v2604 = vsel %vm266, %v2511, 0
      %v2607 = vsel %vm266, %v2512, 0
      %v2610 = vsel %vm266, %v2513, 0
      %v2613 = vsel %vm363, %v2515, 0
      %2615 = vmatprep.subr.mxu0 0.0
      %2616 = vmatpush1.msra.mxu0 %v2613
      %2617 = vmatprep.subr.mxu0 0.0
      %2618 = vmatpush1.msra.mxu0 0.0
      %2619 = vmatprep.subr.mxu0 0.0
      %2620 = vmatpush1.msra.mxu0 0.0
      %2621 = vmatprep.subr.mxu0 0.0
      %2622 = vmatpush1.msra.mxu0 0.0
      %2623 = vmatprep.subr.mxu0 0.0
      %2624 = vmatpush1.msra.mxu0 0.0
      %2625 = vmatprep.subr.mxu0 0.0
      %2626 = vmatpush1.msra.mxu0 0.0
      %2627 = vmatprep.subr.mxu0 0.0
      %2628 = vmatpush1.msra.mxu0 0.0
      %2629 = vmatprep.subr.mxu0 0.0
      %2630 = vmatpush1.msra.mxu0 0.0
      %2631 = vmatprep.subr.mxu0 0.0
      %2632 = vmatpush1.msra.mxu0 0.0
      %2633 = vmatprep.subr.mxu0 0.0
      %2634 = vmatpush1.msra.mxu0 0.0
      %2635 = vmatprep.subr.mxu0 0.0
      %2636 = vmatpush1.msra.mxu0 0.0
      %2637 = vmatprep.subr.mxu0 0.0
      %2638 = vmatpush1.msra.mxu0 0.0
      %2639 = vmatprep.subr.mxu0 0.0
      %2640 = vmatpush1.msra.mxu0 0.0
      %2641 = vmatprep.subr.mxu0 0.0
      %2642 = vmatpush1.msra.mxu0 0.0
      %2643 = vmatprep.subr.mxu0 0.0
      %2644 = vmatpush1.msra.mxu0 0.0
      %2645 = vmatprep.subr.mxu0 0.0
      %2646 = vmatpush1.msra.mxu0 0.0
      %2647 = vmatprep.subr.mxu0 0.0
      %2648 = vmatpush1.msra.mxu0 0.0
      %2649 = vmatprep.subr.mxu0 0.0
      %2650 = vmatpush1.msra.mxu0 0.0
      %2651 = vmatprep.subr.mxu0 0.0
      %2652 = vmatpush1.msra.mxu0 0.0
      %2653 = vmatprep.subr.mxu0 0.0
      %2654 = vmatpush1.msra.mxu0 0.0
      %2655 = vmatprep.subr.mxu0 0.0
      %2656 = vmatpush1.msra.mxu0 0.0
      %2657 = vmatprep.subr.mxu0 0.0
      %2658 = vmatpush1.msra.mxu0 0.0
      %2659 = vmatprep.subr.mxu0 0.0
      %2660 = vmatpush1.msra.mxu0 0.0
      %2661 = vmatprep.subr.mxu0 0.0
      %2662 = vmatpush1.msra.mxu0 0.0
      %2663 = vmatprep.subr.mxu0 0.0
      %2664 = vmatpush1.msra.mxu0 0.0
      %2665 = vmatprep.subr.mxu0 0.0
      %2666 = vmatpush1.msra.mxu0 0.0
      %2667 = vmatprep.subr.mxu0 0.0
      %2668 = vmatpush1.msra.mxu0 0.0
      %2669 = vmatprep.subr.mxu0 0.0
      %2670 = vmatpush1.msra.mxu0 0.0
      %2671 = vmatprep.subr.mxu0 0.0
      %2672 = vmatpush1.msra.mxu0 0.0
      %2673 = vmatprep.subr.mxu0 0.0
      %2674 = vmatpush1.msra.mxu0 0.0
      %2675 = vmatprep.subr.mxu0 0.0
      %2676 = vmatpush1.msra.mxu0 0.0
      %2677 = vmatprep.subr.mxu0 0.0
      %2678 = vmatpush1.msra.mxu0 0.0
      %2679 = vmatprep.mubr.f32.mxu0 0.0
      %2680 = vmatmul.mubr.f32.gmra.mrb[0].mxu0 %v2517
      %v2681 = vpop.f32.mrb[0].mxu0
      %v2682 = vadd.f32 0.0, %v2681
      %v2683 = vpop.f32.mrb[0].mxu0
      %2684 = vmatprep.mubr.f32.mxu0 0.0
      %2685 = vmatmul.mubr.f32.gmra.mrb[0].mxu0 %v2520
      %v2686 = vpop.f32.mrb[0].mxu0
      %v2687 = vadd.f32 0.0, %v2686
      %v2688 = vpop.f32.mrb[0].mxu0
      %2689 = vmatprep.mubr.f32.mxu0 0.0
      %2690 = vmatmul.mubr.f32.gmra.mrb[0].mxu0 %v2523
      %v2691 = vpop.f32.mrb[0].mxu0
      %v2692 = vadd.f32 0.0, %v2691
      %v2693 = vpop.f32.mrb[0].mxu0
      %2694 = vmatprep.mubr.f32.mxu0 0.0
      %2695 = vmatmul.mubr.f32.gmra.mrb[0].mxu0 %v2526
      %v2696 = vpop.f32.mrb[0].mxu0
      %v2697 = vadd.f32 0.0, %v2696
      %v2698 = vpop.f32.mrb[0].mxu0
      %2699 = vmatprep.mubr.f32.mxu0 0.0
      %2700 = vmatmul.mubr.f32.gmra.mrb[0].mxu0 %v2529
      %v2701 = vpop.f32.mrb[0].mxu0
      %v2702 = vadd.f32 0.0, %v2701
      %v2703 = vpop.f32.mrb[0].mxu0
      %2704 = vmatprep.mubr.f32.mxu0 0.0
      %2705 = vmatmul.mubr.f32.gmra.mrb[0].mxu0 %v2532
      %v2706 = vpop.f32.mrb[0].mxu0
      %v2707 = vadd.f32 0.0, %v2706
      %v2708 = vpop.f32.mrb[0].mxu0
      %2709 = vmatprep.mubr.f32.mxu0 0.0
      %2710 = vmatmul.mubr.f32.gmra.mrb[0].mxu0 %v2535
      %v2711 = vpop.f32.mrb[0].mxu0
      %v2712 = vadd.f32 0.0, %v2711
      %v2713 = vpop.f32.mrb[0].mxu0
      %2714 = vmatprep.mubr.f32.mxu0 0.0
      %2715 = vmatmul.mubr.f32.gmra.mrb[0].mxu0 %v2538
      %v2716 = vpop.f32.mrb[0].mxu0
      %v2717 = vadd.f32 0.0, %v2716
      %v2718 = vpop.f32.mrb[0].mxu0
      %2719 = vmatprep.mubr.f32.mxu0 0.0
      %2720 = vmatmul.mubr.f32.gmra.mrb[0].mxu0 %v2541
      %v2721 = vpop.f32.mrb[0].mxu0
      %v2722 = vadd.f32 0.0, %v2721
      %v2723 = vpop.f32.mrb[0].mxu0
      %2724 = vmatprep.mubr.f32.mxu0 0.0
      %2725 = vmatmul.mubr.f32.gmra.mrb[0].mxu0 %v2544
      %v2726 = vpop.f32.mrb[0].mxu0
      %v2727 = vadd.f32 0.0, %v2726
      %v2728 = vpop.f32.mrb[0].mxu0
      %2729 = vmatprep.mubr.f32.mxu0 0.0
      %2730 = vmatmul.mubr.f32.gmra.mrb[0].mxu0 %v2547
      %v2731 = vpop.f32.mrb[0].mxu0
      %v2732 = vadd.f32 0.0, %v2731
      %v2733 = vpop.f32.mrb[0].mxu0
      %2734 = vmatprep.mubr.f32.mxu0 0.0
      %2735 = vmatmul.mubr.f32.gmra.mrb[0].mxu0 %v2550
      %v2736 = vpop.f32.mrb[0].mxu0
      %v2737 = vadd.f32 0.0, %v2736
      %v2738 = vpop.f32.mrb[0].mxu0
      %2739 = vmatprep.mubr.f32.mxu0 0.0
      %2740 = vmatmul.mubr.f32.gmra.mrb[0].mxu0 %v2553
      %v2741 = vpop.f32.mrb[0].mxu0
      %v2742 = vadd.f32 0.0, %v2741
      %v2743 = vpop.f32.mrb[0].mxu0
      %2744 = vmatprep.mubr.f32.mxu0 0.0
      %2745 = vmatmul.mubr.f32.gmra.mrb[0].mxu0 %v2556
      %v2746 = vpop.f32.mrb[0].mxu0
      %v2747 = vadd.f32 0.0, %v2746
      %v2748 = vpop.f32.mrb[0].mxu0
      %2749 = vmatprep.mubr.f32.mxu0 0.0
      %2750 = vmatmul.mubr.f32.gmra.mrb[0].mxu0 %v2559
      %v2751 = vpop.f32.mrb[0].mxu0
      %v2752 = vadd.f32 0.0, %v2751
      %v2753 = vpop.f32.mrb[0].mxu0
      %2754 = vmatprep.mubr.f32.mxu0 0.0
      %2755 = vmatmul.mubr.f32.gmra.mrb[0].mxu0 %v2562
      %v2756 = vpop.f32.mrb[0].mxu0
      %v2757 = vadd.f32 0.0, %v2756
      %v2758 = vpop.f32.mrb[0].mxu0
      %2759 = vmatprep.mubr.f32.mxu0 0.0
      %2760 = vmatmul.mubr.f32.gmra.mrb[0].mxu0 %v2565
      %v2761 = vpop.f32.mrb[0].mxu0
      %v2762 = vadd.f32 0.0, %v2761
      %v2763 = vpop.f32.mrb[0].mxu0
      %2764 = vmatprep.mubr.f32.mxu0 0.0
      %2765 = vmatmul.mubr.f32.gmra.mrb[0].mxu0 %v2568
      %v2766 = vpop.f32.mrb[0].mxu0
      %v2767 = vadd.f32 0.0, %v2766
      %v2768 = vpop.f32.mrb[0].mxu0
      %2769 = vmatprep.mubr.f32.mxu0 0.0
      %2770 = vmatmul.mubr.f32.gmra.mrb[0].mxu0 %v2571
      %v2771 = vpop.f32.mrb[0].mxu0
      %v2772 = vadd.f32 0.0, %v2771
      %v2773 = vpop.f32.mrb[0].mxu0
      %2774 = vmatprep.mubr.f32.mxu0 0.0
      %2775 = vmatmul.mubr.f32.gmra.mrb[0].mxu0 %v2574
      %v2776 = vpop.f32.mrb[0].mxu0
      %v2777 = vadd.f32 0.0, %v2776
      %v2778 = vpop.f32.mrb[0].mxu0
      %2779 = vmatprep.mubr.f32.mxu0 0.0
      %2780 = vmatmul.mubr.f32.gmra.mrb[0].mxu0 %v2577
      %v2781 = vpop.f32.mrb[0].mxu0
      %v2782 = vadd.f32 0.0, %v2781
      %v2783 = vpop.f32.mrb[0].mxu0
      %2784 = vmatprep.mubr.f32.mxu0 0.0
      %2785 = vmatmul.mubr.f32.gmra.mrb[0].mxu0 %v2580
      %v2786 = vpop.f32.mrb[0].mxu0
      %v2787 = vadd.f32 0.0, %v2786
      %v2788 = vpop.f32.mrb[0].mxu0
      %2789 = vmatprep.mubr.f32.mxu0 0.0
      %2790 = vmatmul.mubr.f32.gmra.mrb[0].mxu0 %v2583
      %v2791 = vpop.f32.mrb[0].mxu0
      %v2792 = vadd.f32 0.0, %v2791
      %v2793 = vpop.f32.mrb[0].mxu0
      %2794 = vmatprep.mubr.f32.mxu0 0.0
      %2795 = vmatmul.mubr.f32.gmra.mrb[0].mxu0 %v2586
      %v2796 = vpop.f32.mrb[0].mxu0
      %v2797 = vadd.f32 0.0, %v2796
      %v2798 = vpop.f32.mrb[0].mxu0
      %2799 = vmatprep.mubr.f32.mxu0 0.0
      %2800 = vmatmul.mubr.f32.gmra.mrb[0].mxu0 %v2589
      %v2801 = vpop.f32.mrb[0].mxu0
      %v2802 = vadd.f32 0.0, %v2801
      %v2803 = vpop.f32.mrb[0].mxu0
      %2804 = vmatprep.mubr.f32.mxu0 0.0
      %2805 = vmatmul.mubr.f32.gmra.mrb[0].mxu0 %v2592
      %v2806 = vpop.f32.mrb[0].mxu0
      %v2807 = vadd.f32 0.0, %v2806
      %v2808 = vpop.f32.mrb[0].mxu0
      %2809 = vmatprep.mubr.f32.mxu0 0.0
      %2810 = vmatmul.mubr.f32.gmra.mrb[0].mxu0 %v2595
      %v2811 = vpop.f32.mrb[0].mxu0
      %v2812 = vadd.f32 0.0, %v2811
      %v2813 = vpop.f32.mrb[0].mxu0
      %2814 = vmatprep.mubr.f32.mxu0 0.0
      %2815 = vmatmul.mubr.f32.gmra.mrb[0].mxu0 %v2598
      %v2816 = vpop.f32.mrb[0].mxu0
      %v2817 = vadd.f32 0.0, %v2816
      %v2818 = vpop.f32.mrb[0].mxu0
      %2819 = vmatprep.mubr.f32.mxu0 0.0
      %2820 = vmatmul.mubr.f32.gmra.mrb[0].mxu0 %v2601
      %v2821 = vpop.f32.mrb[0].mxu0
      %v2822 = vadd.f32 0.0, %v2821
      %v2823 = vpop.f32.mrb[0].mxu0
      %2824 = vmatprep.mubr.f32.mxu0 0.0
      %2825 = vmatmul.mubr.f32.gmra.mrb[0].mxu0 %v2604
      %v2826 = vpop.f32.mrb[0].mxu0
      %v2827 = vadd.f32 0.0, %v2826
      %v2828 = vpop.f32.mrb[0].mxu0
      %2829 = vmatprep.mubr.f32.mxu0 0.0
      %2830 = vmatmul.mubr.f32.gmra.mrb[0].mxu0 %v2607
      %v2831 = vpop.f32.mrb[0].mxu0
      %v2832 = vadd.f32 0.0, %v2831
      %v2833 = vpop.f32.mrb[0].mxu0
      %2834 = vmatprep.mubr.f32.mxu0 0.0
      %2835 = vmatmul.mubr.f32.gmra.mrb[0].mxu0 %v2610
      %v2836 = vpop.f32.mrb[0].mxu0
      %v2837 = vadd.f32 0.0, %v2836
      %v2838 = vpop.f32.mrb[0].mxu0
      %2839 = vdwg.mxu0
      %v2840 = vadd.f32 %v2447, %v2682
      %v2841 = vadd.f32 %v2448, %v2687
      %v2842 = vadd.f32 %v2449, %v2692
      %v2843 = vadd.f32 %v2450, %v2697
      %v2844 = vadd.f32 %v2451, %v2702
      %v2845 = vadd.f32 %v2452, %v2707
      %v2846 = vadd.f32 %v2453, %v2712
      %v2847 = vadd.f32 %v2454, %v2717
      %v2848 = vadd.f32 %v2455, %v2722
      %v2849 = vadd.f32 %v2456, %v2727
      %v2850 = vadd.f32 %v2457, %v2732
      %v2851 = vadd.f32 %v2458, %v2737
      %v2852 = vadd.f32 %v2459, %v2742
      %v2853 = vadd.f32 %v2460, %v2747
      %v2854 = vadd.f32 %v2461, %v2752
      %v2855 = vadd.f32 %v2462, %v2757
      %v2856 = vadd.f32 %v2463, %v2762
      %v2857 = vadd.f32 %v2464, %v2767
      %v2858 = vadd.f32 %v2465, %v2772
      %v2859 = vadd.f32 %v2466, %v2777
      %v2860 = vadd.f32 %v2467, %v2782
      %v2861 = vadd.f32 %v2468, %v2787
      %v2862 = vadd.f32 %v2469, %v2792
      %v2863 = vadd.f32 %v2470, %v2797
      %v2864 = vadd.f32 %v2471, %v2802
      %v2865 = vadd.f32 %v2472, %v2807
      %v2866 = vadd.f32 %v2473, %v2812
      %v2867 = vadd.f32 %v2474, %v2817
      %v2868 = vadd.f32 %v2475, %v2822
      %v2869 = vadd.f32 %v2476, %v2827
      %v2870 = vadd.f32 %v2477, %v2832
      %v2871 = vadd.f32 %v2478, %v2837
      %v2872 = vld [vmem:[%s2481 + $0x1] sm:$0xff]
      %v2873 = vld [vmem:[%s2481 + $0x9] sm:$0xff]
      %v2874 = vld [vmem:[%s2481 + $0x19] sm:$0xff]
      %v2875 = vld [vmem:[%s2481 + $0x21] sm:$0xff]
      %v2876 = vld [vmem:[%s2481 + $0x31] sm:$0xff]
      %v2877 = vld [vmem:[%s2481 + $0x39] sm:$0xff]
      %v2878 = vld [vmem:[%s2481 + $0x49] sm:$0xff]
      %v2879 = vld [vmem:[%s2481 + $0x51] sm:$0xff]
      %v2880 = vld [vmem:[%s2481 + $0x61] sm:$0xff]
      %v2881 = vld [vmem:[%s2481 + $0x69] sm:$0xff]
      %v2882 = vld [vmem:[%s2481 + $0x79] sm:$0xff]
      %v2883 = vld [vmem:[%s2481 + $0x81] sm:$0xff]
      %v2884 = vld [vmem:[%s2481 + $0x91] sm:$0xff]
      %v2885 = vld [vmem:[%s2481 + $0x99] sm:$0xff]
      %v2886 = vld [vmem:[%s2481 + $0xa9] sm:$0xff]
      %v2887 = vld [vmem:[%s2481 + $0xb1] sm:$0xff]
      %v2888 = vld [vmem:[%s2481 + $0xc1] sm:$0xff]
      %v2889 = vld [vmem:[%s2481 + $0xc9] sm:$0xff]
      %v2890 = vld [vmem:[%s2481 + $0xd9] sm:$0xff]
      %v2891 = vld [vmem:[%s2481 + $0xe1] sm:$0xff]
      %v2892 = vld [vmem:[%s2481 + $0xf1] sm:$0xff]
      %v2893 = vld [vmem:[%s2481 + $0xf9] sm:$0xff]
      %v2894 = vld [vmem:[%s2481 + $0x109] sm:$0xff]
      %v2895 = vld [vmem:[%s2481 + $0x111] sm:$0xff]
      %v2896 = vld [vmem:[%s2481 + $0x121] sm:$0xff]
      %v2897 = vld [vmem:[%s2481 + $0x129] sm:$0xff]
      %v2898 = vld [vmem:[%s2481 + $0x139] sm:$0xff]
      %v2899 = vld [vmem:[%s2481 + $0x141] sm:$0xff]
      %v2900 = vld [vmem:[%s2481 + $0x151] sm:$0xff]
      %v2901 = vld [vmem:[%s2481 + $0x159] sm:$0xff]
      %v2902 = vld [vmem:[%s2481 + $0x169] sm:$0xff]
      %v2903 = vld [vmem:[%s2481 + $0x171] sm:$0xff]
      %s2904 = scalar_lea.vmem %s1, 28
      %v2905 = vld [vmem:[%s2904] sm:$0xf]
      %v2907 = vsel %vm266, %v2872, 0
      %v2910 = vsel %vm266, %v2873, 0
      %v2913 = vsel %vm266, %v2874, 0
      %v2916 = vsel %vm266, %v2875, 0
      %v2919 = vsel %vm266, %v2876, 0
      %v2922 = vsel %vm266, %v2877, 0
      %v2925 = vsel %vm266, %v2878, 0
      %v2928 = vsel %vm266, %v2879, 0
      %v2931 = vsel %vm266, %v2880, 0
      %v2934 = vsel %vm266, %v2881, 0
      %v2937 = vsel %vm266, %v2882, 0
      %v2940 = vsel %vm266, %v2883, 0
      %v2943 = vsel %vm266, %v2884, 0
      %v2946 = vsel %vm266, %v2885, 0
      %v2949 = vsel %vm266, %v2886, 0
      %v2952 = vsel %vm266, %v2887, 0
      %v2955 = vsel %vm266, %v2888, 0
      %v2958 = vsel %vm266, %v2889, 0
      %v2961 = vsel %vm266, %v2890, 0
      %v2964 = vsel %vm266, %v2891, 0
      %v2967 = vsel %vm266, %v2892, 0
      %v2970 = vsel %vm266, %v2893, 0
      %v2973 = vsel %vm266, %v2894, 0
      %v2976 = vsel %vm266, %v2895, 0
      %v2979 = vsel %vm266, %v2896, 0
      %v2982 = vsel %vm266, %v2897, 0
      %v2985 = vsel %vm266, %v2898, 0
      %v2988 = vsel %vm266, %v2899, 0
      %v2991 = vsel %vm266, %v2900, 0
      %v2994 = vsel %vm266, %v2901, 0
      %v2997 = vsel %vm266, %v2902, 0
      %v3000 = vsel %vm266, %v2903, 0
      %v3003 = vsel %vm363, %v2905, 0
      %3005 = vmatprep.subr.mxu0 0.0
      %3006 = vmatpush1.msra.mxu0 %v3003
      %3007 = vmatprep.subr.mxu0 0.0
      %3008 = vmatpush1.msra.mxu0 0.0
      %3009 = vmatprep.subr.mxu0 0.0
      %3010 = vmatpush1.msra.mxu0 0.0
      %3011 = vmatprep.subr.mxu0 0.0
      %3012 = vmatpush1.msra.mxu0 0.0
      %3013 = vmatprep.subr.mxu0 0.0
      %3014 = vmatpush1.msra.mxu0 0.0
      %3015 = vmatprep.subr.mxu0 0.0
      %3016 = vmatpush1.msra.mxu0 0.0
      %3017 = vmatprep.subr.mxu0 0.0
      %3018 = vmatpush1.msra.mxu0 0.0
      %3019 = vmatprep.subr.mxu0 0.0
      %3020 = vmatpush1.msra.mxu0 0.0
      %3021 = vmatprep.subr.mxu0 0.0
      %3022 = vmatpush1.msra.mxu0 0.0
      %3023 = vmatprep.subr.mxu0 0.0
      %3024 = vmatpush1.msra.mxu0 0.0
      %3025 = vmatprep.subr.mxu0 0.0
      %3026 = vmatpush1.msra.mxu0 0.0
      %3027 = vmatprep.subr.mxu0 0.0
      %3028 = vmatpush1.msra.mxu0 0.0
      %3029 = vmatprep.subr.mxu0 0.0
      %3030 = vmatpush1.msra.mxu0 0.0
      %3031 = vmatprep.subr.mxu0 0.0
      %3032 = vmatpush1.msra.mxu0 0.0
      %3033 = vmatprep.subr.mxu0 0.0
      %3034 = vmatpush1.msra.mxu0 0.0
      %3035 = vmatprep.subr.mxu0 0.0
      %3036 = vmatpush1.msra.mxu0 0.0
      %3037 = vmatprep.subr.mxu0 0.0
      %3038 = vmatpush1.msra.mxu0 0.0
      %3039 = vmatprep.subr.mxu0 0.0
      %3040 = vmatpush1.msra.mxu0 0.0
      %3041 = vmatprep.subr.mxu0 0.0
      %3042 = vmatpush1.msra.mxu0 0.0
      %3043 = vmatprep.subr.mxu0 0.0
      %3044 = vmatpush1.msra.mxu0 0.0
      %3045 = vmatprep.subr.mxu0 0.0
      %3046 = vmatpush1.msra.mxu0 0.0
      %3047 = vmatprep.subr.mxu0 0.0
      %3048 = vmatpush1.msra.mxu0 0.0
      %3049 = vmatprep.subr.mxu0 0.0
      %3050 = vmatpush1.msra.mxu0 0.0
      %3051 = vmatprep.subr.mxu0 0.0
      %3052 = vmatpush1.msra.mxu0 0.0
      %3053 = vmatprep.subr.mxu0 0.0
      %3054 = vmatpush1.msra.mxu0 0.0
      %3055 = vmatprep.subr.mxu0 0.0
      %3056 = vmatpush1.msra.mxu0 0.0
      %3057 = vmatprep.subr.mxu0 0.0
      %3058 = vmatpush1.msra.mxu0 0.0
      %3059 = vmatprep.subr.mxu0 0.0
      %3060 = vmatpush1.msra.mxu0 0.0
      %3061 = vmatprep.subr.mxu0 0.0
      %3062 = vmatpush1.msra.mxu0 0.0
      %3063 = vmatprep.subr.mxu0 0.0
      %3064 = vmatpush1.msra.mxu0 0.0
      %3065 = vmatprep.subr.mxu0 0.0
      %3066 = vmatpush1.msra.mxu0 0.0
      %3067 = vmatprep.subr.mxu0 0.0
      %3068 = vmatpush1.msra.mxu0 0.0
      %3069 = vmatprep.mubr.f32.mxu0 0.0
      %3070 = vmatmul.mubr.f32.gmra.mrb[0].mxu0 %v2907
      %v3071 = vpop.f32.mrb[0].mxu0
      %v3072 = vadd.f32 0.0, %v3071
      %v3073 = vpop.f32.mrb[0].mxu0
      %3074 = vmatprep.mubr.f32.mxu0 0.0
      %3075 = vmatmul.mubr.f32.gmra.mrb[0].mxu0 %v2910
      %v3076 = vpop.f32.mrb[0].mxu0
      %v3077 = vadd.f32 0.0, %v3076
      %v3078 = vpop.f32.mrb[0].mxu0
      %3079 = vmatprep.mubr.f32.mxu0 0.0
      %3080 = vmatmul.mubr.f32.gmra.mrb[0].mxu0 %v2913
      %v3081 = vpop.f32.mrb[0].mxu0
      %v3082 = vadd.f32 0.0, %v3081
      %v3083 = vpop.f32.mrb[0].mxu0
      %3084 = vmatprep.mubr.f32.mxu0 0.0
      %3085 = vmatmul.mubr.f32.gmra.mrb[0].mxu0 %v2916
      %v3086 = vpop.f32.mrb[0].mxu0
      %v3087 = vadd.f32 0.0, %v3086
      %v3088 = vpop.f32.mrb[0].mxu0
      %3089 = vmatprep.mubr.f32.mxu0 0.0
      %3090 = vmatmul.mubr.f32.gmra.mrb[0].mxu0 %v2919
      %v3091 = vpop.f32.mrb[0].mxu0
      %v3092 = vadd.f32 0.0, %v3091
      %v3093 = vpop.f32.mrb[0].mxu0
      %3094 = vmatprep.mubr.f32.mxu0 0.0
      %3095 = vmatmul.mubr.f32.gmra.mrb[0].mxu0 %v2922
      %v3096 = vpop.f32.mrb[0].mxu0
      %v3097 = vadd.f32 0.0, %v3096
      %v3098 = vpop.f32.mrb[0].mxu0
      %3099 = vmatprep.mubr.f32.mxu0 0.0
      %3100 = vmatmul.mubr.f32.gmra.mrb[0].mxu0 %v2925
      %v3101 = vpop.f32.mrb[0].mxu0
      %v3102 = vadd.f32 0.0, %v3101
      %v3103 = vpop.f32.mrb[0].mxu0
      %3104 = vmatprep.mubr.f32.mxu0 0.0
      %3105 = vmatmul.mubr.f32.gmra.mrb[0].mxu0 %v2928
      %v3106 = vpop.f32.mrb[0].mxu0
      %v3107 = vadd.f32 0.0, %v3106
      %v3108 = vpop.f32.mrb[0].mxu0
      %3109 = vmatprep.mubr.f32.mxu0 0.0
      %3110 = vmatmul.mubr.f32.gmra.mrb[0].mxu0 %v2931
      %v3111 = vpop.f32.mrb[0].mxu0
      %v3112 = vadd.f32 0.0, %v3111
      %v3113 = vpop.f32.mrb[0].mxu0
      %3114 = vmatprep.mubr.f32.mxu0 0.0
      %3115 = vmatmul.mubr.f32.gmra.mrb[0].mxu0 %v2934
      %v3116 = vpop.f32.mrb[0].mxu0
      %v3117 = vadd.f32 0.0, %v3116
      %v3118 = vpop.f32.mrb[0].mxu0
      %3119 = vmatprep.mubr.f32.mxu0 0.0
      %3120 = vmatmul.mubr.f32.gmra.mrb[0].mxu0 %v2937
      %v3121 = vpop.f32.mrb[0].mxu0
      %v3122 = vadd.f32 0.0, %v3121
      %v3123 = vpop.f32.mrb[0].mxu0
      %3124 = vmatprep.mubr.f32.mxu0 0.0
      %3125 = vmatmul.mubr.f32.gmra.mrb[0].mxu0 %v2940
      %v3126 = vpop.f32.mrb[0].mxu0
      %v3127 = vadd.f32 0.0, %v3126
      %v3128 = vpop.f32.mrb[0].mxu0
      %3129 = vmatprep.mubr.f32.mxu0 0.0
      %3130 = vmatmul.mubr.f32.gmra.mrb[0].mxu0 %v2943
      %v3131 = vpop.f32.mrb[0].mxu0
      %v3132 = vadd.f32 0.0, %v3131
      %v3133 = vpop.f32.mrb[0].mxu0
      %3134 = vmatprep.mubr.f32.mxu0 0.0
      %3135 = vmatmul.mubr.f32.gmra.mrb[0].mxu0 %v2946
      %v3136 = vpop.f32.mrb[0].mxu0
      %v3137 = vadd.f32 0.0, %v3136
      %v3138 = vpop.f32.mrb[0].mxu0
      %3139 = vmatprep.mubr.f32.mxu0 0.0
      %3140 = vmatmul.mubr.f32.gmra.mrb[0].mxu0 %v2949
      %v3141 = vpop.f32.mrb[0].mxu0
      %v3142 = vadd.f32 0.0, %v3141
      %v3143 = vpop.f32.mrb[0].mxu0
      %3144 = vmatprep.mubr.f32.mxu0 0.0
      %3145 = vmatmul.mubr.f32.gmra.mrb[0].mxu0 %v2952
      %v3146 = vpop.f32.mrb[0].mxu0
      %v3147 = vadd.f32 0.0, %v3146
      %v3148 = vpop.f32.mrb[0].mxu0
      %3149 = vmatprep.mubr.f32.mxu0 0.0
      %3150 = vmatmul.mubr.f32.gmra.mrb[0].mxu0 %v2955
      %v3151 = vpop.f32.mrb[0].mxu0
      %v3152 = vadd.f32 0.0, %v3151
      %v3153 = vpop.f32.mrb[0].mxu0
      %3154 = vmatprep.mubr.f32.mxu0 0.0
      %3155 = vmatmul.mubr.f32.gmra.mrb[0].mxu0 %v2958
      %v3156 = vpop.f32.mrb[0].mxu0
      %v3157 = vadd.f32 0.0, %v3156
      %v3158 = vpop.f32.mrb[0].mxu0
      %3159 = vmatprep.mubr.f32.mxu0 0.0
      %3160 = vmatmul.mubr.f32.gmra.mrb[0].mxu0 %v2961
      %v3161 = vpop.f32.mrb[0].mxu0
      %v3162 = vadd.f32 0.0, %v3161
      %v3163 = vpop.f32.mrb[0].mxu0
      %3164 = vmatprep.mubr.f32.mxu0 0.0
      %3165 = vmatmul.mubr.f32.gmra.mrb[0].mxu0 %v2964
      %v3166 = vpop.f32.mrb[0].mxu0
      %v3167 = vadd.f32 0.0, %v3166
      %v3168 = vpop.f32.mrb[0].mxu0
      %3169 = vmatprep.mubr.f32.mxu0 0.0
      %3170 = vmatmul.mubr.f32.gmra.mrb[0].mxu0 %v2967
      %v3171 = vpop.f32.mrb[0].mxu0
      %v3172 = vadd.f32 0.0, %v3171
      %v3173 = vpop.f32.mrb[0].mxu0
      %3174 = vmatprep.mubr.f32.mxu0 0.0
      %3175 = vmatmul.mubr.f32.gmra.mrb[0].mxu0 %v2970
      %v3176 = vpop.f32.mrb[0].mxu0
      %v3177 = vadd.f32 0.0, %v3176
      %v3178 = vpop.f32.mrb[0].mxu0
      %3179 = vmatprep.mubr.f32.mxu0 0.0
      %3180 = vmatmul.mubr.f32.gmra.mrb[0].mxu0 %v2973
      %v3181 = vpop.f32.mrb[0].mxu0
      %v3182 = vadd.f32 0.0, %v3181
      %v3183 = vpop.f32.mrb[0].mxu0
      %3184 = vmatprep.mubr.f32.mxu0 0.0
      %3185 = vmatmul.mubr.f32.gmra.mrb[0].mxu0 %v2976
      %v3186 = vpop.f32.mrb[0].mxu0
      %v3187 = vadd.f32 0.0, %v3186
      %v3188 = vpop.f32.mrb[0].mxu0
      %3189 = vmatprep.mubr.f32.mxu0 0.0
      %3190 = vmatmul.mubr.f32.gmra.mrb[0].mxu0 %v2979
      %v3191 = vpop.f32.mrb[0].mxu0
      %v3192 = vadd.f32 0.0, %v3191
      %v3193 = vpop.f32.mrb[0].mxu0
      %3194 = vmatprep.mubr.f32.mxu0 0.0
      %3195 = vmatmul.mubr.f32.gmra.mrb[0].mxu0 %v2982
      %v3196 = vpop.f32.mrb[0].mxu0
      %v3197 = vadd.f32 0.0, %v3196
      %v3198 = vpop.f32.mrb[0].mxu0
      %3199 = vmatprep.mubr.f32.mxu0 0.0
      %3200 = vmatmul.mubr.f32.gmra.mrb[0].mxu0 %v2985
      %v3201 = vpop.f32.mrb[0].mxu0
      %v3202 = vadd.f32 0.0, %v3201
      %v3203 = vpop.f32.mrb[0].mxu0
      %3204 = vmatprep.mubr.f32.mxu0 0.0
      %3205 = vmatmul.mubr.f32.gmra.mrb[0].mxu0 %v2988
      %v3206 = vpop.f32.mrb[0].mxu0
      %v3207 = vadd.f32 0.0, %v3206
      %v3208 = vpop.f32.mrb[0].mxu0
      %3209 = vmatprep.mubr.f32.mxu0 0.0
      %3210 = vmatmul.mubr.f32.gmra.mrb[0].mxu0 %v2991
      %v3211 = vpop.f32.mrb[0].mxu0
      %v3212 = vadd.f32 0.0, %v3211
      %v3213 = vpop.f32.mrb[0].mxu0
      %3214 = vmatprep.mubr.f32.mxu0 0.0
      %3215 = vmatmul.mubr.f32.gmra.mrb[0].mxu0 %v2994
      %v3216 = vpop.f32.mrb[0].mxu0
      %v3217 = vadd.f32 0.0, %v3216
      %v3218 = vpop.f32.mrb[0].mxu0
      %3219 = vmatprep.mubr.f32.mxu0 0.0
      %3220 = vmatmul.mubr.f32.gmra.mrb[0].mxu0 %v2997
      %v3221 = vpop.f32.mrb[0].mxu0
      %v3222 = vadd.f32 0.0, %v3221
      %v3223 = vpop.f32.mrb[0].mxu0
      %3224 = vmatprep.mubr.f32.mxu0 0.0
      %3225 = vmatmul.mubr.f32.gmra.mrb[0].mxu0 %v3000
      %v3226 = vpop.f32.mrb[0].mxu0
      %v3227 = vadd.f32 0.0, %v3226
      %v3228 = vpop.f32.mrb[0].mxu0
      %3229 = vdwg.mxu0
      %v3230 = vadd.f32 %v2840, %v3072
      %v3231 = vadd.f32 %v2841, %v3077
      %v3232 = vadd.f32 %v2842, %v3082
      %v3233 = vadd.f32 %v2843, %v3087
      %v3234 = vadd.f32 %v2844, %v3092
      %v3235 = vadd.f32 %v2845, %v3097
      %v3236 = vadd.f32 %v2846, %v3102
      %v3237 = vadd.f32 %v2847, %v3107
      %v3238 = vadd.f32 %v2848, %v3112
      %v3239 = vadd.f32 %v2849, %v3117
      %v3240 = vadd.f32 %v2850, %v3122
      %v3241 = vadd.f32 %v2851, %v3127
      %v3242 = vadd.f32 %v2852, %v3132
      %v3243 = vadd.f32 %v2853, %v3137
      %v3244 = vadd.f32 %v2854, %v3142
      %v3245 = vadd.f32 %v2855, %v3147
      %v3246 = vadd.f32 %v2856, %v3152
      %v3247 = vadd.f32 %v2857, %v3157
      %v3248 = vadd.f32 %v2858, %v3162
      %v3249 = vadd.f32 %v2859, %v3167
      %v3250 = vadd.f32 %v2860, %v3172
      %v3251 = vadd.f32 %v2861, %v3177
      %v3252 = vadd.f32 %v2862, %v3182
      %v3253 = vadd.f32 %v2863, %v3187
      %v3254 = vadd.f32 %v2864, %v3192
      %v3255 = vadd.f32 %v2865, %v3197
      %v3256 = vadd.f32 %v2866, %v3202
      %v3257 = vadd.f32 %v2867, %v3207
      %v3258 = vadd.f32 %v2868, %v3212
      %v3259 = vadd.f32 %v2869, %v3217
      %v3260 = vadd.f32 %v2870, %v3222
      %v3261 = vadd.f32 %v2871, %v3227
      %v3262 = vld [vmem:[%s2481 + $0x2] sm:$0xff]
      %v3263 = vld [vmem:[%s2481 + $0xa] sm:$0xff]
      %v3264 = vld [vmem:[%s2481 + $0x1a] sm:$0xff]
      %v3265 = vld [vmem:[%s2481 + $0x22] sm:$0xff]
      %v3266 = vld [vmem:[%s2481 + $0x32] sm:$0xff]
      %v3267 = vld [vmem:[%s2481 + $0x3a] sm:$0xff]
      %v3268 = vld [vmem:[%s2481 + $0x4a] sm:$0xff]
      %v3269 = vld [vmem:[%s2481 + $0x52] sm:$0xff]
      %v3270 = vld [vmem:[%s2481 + $0x62] sm:$0xff]
      %v3271 = vld [vmem:[%s2481 + $0x6a] sm:$0xff]
      %v3272 = vld [vmem:[%s2481 + $0x7a] sm:$0xff]
      %v3273 = vld [vmem:[%s2481 + $0x82] sm:$0xff]
      %v3274 = vld [vmem:[%s2481 + $0x92] sm:$0xff]
      %v3275 = vld [vmem:[%s2481 + $0x9a] sm:$0xff]
      %v3276 = vld [vmem:[%s2481 + $0xaa] sm:$0xff]
      %v3277 = vld [vmem:[%s2481 + $0xb2] sm:$0xff]
      %v3278 = vld [vmem:[%s2481 + $0xc2] sm:$0xff]
      %v3279 = vld [vmem:[%s2481 + $0xca] sm:$0xff]
      %v3280 = vld [vmem:[%s2481 + $0xda] sm:$0xff]
      %v3281 = vld [vmem:[%s2481 + $0xe2] sm:$0xff]
      %v3282 = vld [vmem:[%s2481 + $0xf2] sm:$0xff]
      %v3283 = vld [vmem:[%s2481 + $0xfa] sm:$0xff]
      %v3284 = vld [vmem:[%s2481 + $0x10a] sm:$0xff]
      %v3285 = vld [vmem:[%s2481 + $0x112] sm:$0xff]
      %v3286 = vld [vmem:[%s2481 + $0x122] sm:$0xff]
      %v3287 = vld [vmem:[%s2481 + $0x12a] sm:$0xff]
      %v3288 = vld [vmem:[%s2481 + $0x13a] sm:$0xff]
      %v3289 = vld [vmem:[%s2481 + $0x142] sm:$0xff]
      %v3290 = vld [vmem:[%s2481 + $0x152] sm:$0xff]
      %v3291 = vld [vmem:[%s2481 + $0x15a] sm:$0xff]
      %v3292 = vld [vmem:[%s2481 + $0x16a] sm:$0xff]
      %v3293 = vld [vmem:[%s2481 + $0x172] sm:$0xff]
      %s3294 = scalar_lea.vmem %s1, 32
      %v3295 = vld [vmem:[%s3294] sm:$0xf]
      %v3297 = vsel %vm266, %v3262, 0
      %v3300 = vsel %vm266, %v3263, 0
      %v3303 = vsel %vm266, %v3264, 0
      %v3306 = vsel %vm266, %v3265, 0
      %v3309 = vsel %vm266, %v3266, 0
      %v3312 = vsel %vm266, %v3267, 0
      %v3315 = vsel %vm266, %v3268, 0
      %v3318 = vsel %vm266, %v3269, 0
      %v3321 = vsel %vm266, %v3270, 0
      %v3324 = vsel %vm266, %v3271, 0
      %v3327 = vsel %vm266, %v3272, 0
      %v3330 = vsel %vm266, %v3273, 0
      %v3333 = vsel %vm266, %v3274, 0
      %v3336 = vsel %vm266, %v3275, 0
      %v3339 = vsel %vm266, %v3276, 0
      %v3342 = vsel %vm266, %v3277, 0
      %v3345 = vsel %vm266, %v3278, 0
      %v3348 = vsel %vm266, %v3279, 0
      %v3351 = vsel %vm266, %v3280, 0
      %v3354 = vsel %vm266, %v3281, 0
      %v3357 = vsel %vm266, %v3282, 0
      %v3360 = vsel %vm266, %v3283, 0
      %v3363 = vsel %vm266, %v3284, 0
      %v3366 = vsel %vm266, %v3285, 0
      %v3369 = vsel %vm266, %v3286, 0
      %v3372 = vsel %vm266, %v3287, 0
      %v3375 = vsel %vm266, %v3288, 0
      %v3378 = vsel %vm266, %v3289, 0
      %v3381 = vsel %vm266, %v3290, 0
      %v3384 = vsel %vm266, %v3291, 0
      %v3387 = vsel %vm266, %v3292, 0
      %v3390 = vsel %vm266, %v3293, 0
      %v3393 = vsel %vm363, %v3295, 0
      %3395 = vmatprep.subr.mxu0 0.0
      %3396 = vmatpush1.msra.mxu0 %v3393
      %3397 = vmatprep.subr.mxu0 0.0
      %3398 = vmatpush1.msra.mxu0 0.0
      %3399 = vmatprep.subr.mxu0 0.0
      %3400 = vmatpush1.msra.mxu0 0.0
      %3401 = vmatprep.subr.mxu0 0.0
      %3402 = vmatpush1.msra.mxu0 0.0
      %3403 = vmatprep.subr.mxu0 0.0
      %3404 = vmatpush1.msra.mxu0 0.0
      %3405 = vmatprep.subr.mxu0 0.0
      %3406 = vmatpush1.msra.mxu0 0.0
      %3407 = vmatprep.subr.mxu0 0.0
      %3408 = vmatpush1.msra.mxu0 0.0
      %3409 = vmatprep.subr.mxu0 0.0
      %3410 = vmatpush1.msra.mxu0 0.0
      %3411 = vmatprep.subr.mxu0 0.0
      %3412 = vmatpush1.msra.mxu0 0.0
      %3413 = vmatprep.subr.mxu0 0.0
      %3414 = vmatpush1.msra.mxu0 0.0
      %3415 = vmatprep.subr.mxu0 0.0
      %3416 = vmatpush1.msra.mxu0 0.0
      %3417 = vmatprep.subr.mxu0 0.0
      %3418 = vmatpush1.msra.mxu0 0.0
      %3419 = vmatprep.subr.mxu0 0.0
      %3420 = vmatpush1.msra.mxu0 0.0
      %3421 = vmatprep.subr.mxu0 0.0
      %3422 = vmatpush1.msra.mxu0 0.0
      %3423 = vmatprep.subr.mxu0 0.0
      %3424 = vmatpush1.msra.mxu0 0.0
      %3425 = vmatprep.subr.mxu0 0.0
      %3426 = vmatpush1.msra.mxu0 0.0
      %3427 = vmatprep.subr.mxu0 0.0
      %3428 = vmatpush1.msra.mxu0 0.0
      %3429 = vmatprep.subr.mxu0 0.0
      %3430 = vmatpush1.msra.mxu0 0.0
      %3431 = vmatprep.subr.mxu0 0.0
      %3432 = vmatpush1.msra.mxu0 0.0
      %3433 = vmatprep.subr.mxu0 0.0
      %3434 = vmatpush1.msra.mxu0 0.0
      %3435 = vmatprep.subr.mxu0 0.0
      %3436 = vmatpush1.msra.mxu0 0.0
      %3437 = vmatprep.subr.mxu0 0.0
      %3438 = vmatpush1.msra.mxu0 0.0
      %3439 = vmatprep.subr.mxu0 0.0
      %3440 = vmatpush1.msra.mxu0 0.0
      %3441 = vmatprep.subr.mxu0 0.0
      %3442 = vmatpush1.msra.mxu0 0.0
      %3443 = vmatprep.subr.mxu0 0.0
      %3444 = vmatpush1.msra.mxu0 0.0
      %3445 = vmatprep.subr.mxu0 0.0
      %3446 = vmatpush1.msra.mxu0 0.0
      %3447 = vmatprep.subr.mxu0 0.0
      %3448 = vmatpush1.msra.mxu0 0.0
      %3449 = vmatprep.subr.mxu0 0.0
      %3450 = vmatpush1.msra.mxu0 0.0
      %3451 = vmatprep.subr.mxu0 0.0
      %3452 = vmatpush1.msra.mxu0 0.0
      %3453 = vmatprep.subr.mxu0 0.0
      %3454 = vmatpush1.msra.mxu0 0.0
      %3455 = vmatprep.subr.mxu0 0.0
      %3456 = vmatpush1.msra.mxu0 0.0
      %3457 = vmatprep.subr.mxu0 0.0
      %3458 = vmatpush1.msra.mxu0 0.0
      %3459 = vmatprep.mubr.f32.mxu0 0.0
      %3460 = vmatmul.mubr.f32.gmra.mrb[0].mxu0 %v3297
      %v3461 = vpop.f32.mrb[0].mxu0
      %v3462 = vadd.f32 0.0, %v3461
      %v3463 = vpop.f32.mrb[0].mxu0
      %3464 = vmatprep.mubr.f32.mxu0 0.0
      %3465 = vmatmul.mubr.f32.gmra.mrb[0].mxu0 %v3300
      %v3466 = vpop.f32.mrb[0].mxu0
      %v3467 = vadd.f32 0.0, %v3466
      %v3468 = vpop.f32.mrb[0].mxu0
      %3469 = vmatprep.mubr.f32.mxu0 0.0
      %3470 = vmatmul.mubr.f32.gmra.mrb[0].mxu0 %v3303
      %v3471 = vpop.f32.mrb[0].mxu0
      %v3472 = vadd.f32 0.0, %v3471
      %v3473 = vpop.f32.mrb[0].mxu0
      %3474 = vmatprep.mubr.f32.mxu0 0.0
      %3475 = vmatmul.mubr.f32.gmra.mrb[0].mxu0 %v3306
      %v3476 = vpop.f32.mrb[0].mxu0
      %v3477 = vadd.f32 0.0, %v3476
      %v3478 = vpop.f32.mrb[0].mxu0
      %3479 = vmatprep.mubr.f32.mxu0 0.0
      %3480 = vmatmul.mubr.f32.gmra.mrb[0].mxu0 %v3309
      %v3481 = vpop.f32.mrb[0].mxu0
      %v3482 = vadd.f32 0.0, %v3481
      %v3483 = vpop.f32.mrb[0].mxu0
      %3484 = vmatprep.mubr.f32.mxu0 0.0
      %3485 = vmatmul.mubr.f32.gmra.mrb[0].mxu0 %v3312
      %v3486 = vpop.f32.mrb[0].mxu0
      %v3487 = vadd.f32 0.0, %v3486
      %v3488 = vpop.f32.mrb[0].mxu0
      %3489 = vmatprep.mubr.f32.mxu0 0.0
      %3490 = vmatmul.mubr.f32.gmra.mrb[0].mxu0 %v3315
      %v3491 = vpop.f32.mrb[0].mxu0
      %v3492 = vadd.f32 0.0, %v3491
      %v3493 = vpop.f32.mrb[0].mxu0
      %3494 = vmatprep.mubr.f32.mxu0 0.0
      %3495 = vmatmul.mubr.f32.gmra.mrb[0].mxu0 %v3318
      %v3496 = vpop.f32.mrb[0].mxu0
      %v3497 = vadd.f32 0.0, %v3496
      %v3498 = vpop.f32.mrb[0].mxu0
      %3499 = vmatprep.mubr.f32.mxu0 0.0
      %3500 = vmatmul.mubr.f32.gmra.mrb[0].mxu0 %v3321
      %v3501 = vpop.f32.mrb[0].mxu0
      %v3502 = vadd.f32 0.0, %v3501
      %v3503 = vpop.f32.mrb[0].mxu0
      %3504 = vmatprep.mubr.f32.mxu0 0.0
      %3505 = vmatmul.mubr.f32.gmra.mrb[0].mxu0 %v3324
      %v3506 = vpop.f32.mrb[0].mxu0
      %v3507 = vadd.f32 0.0, %v3506
      %v3508 = vpop.f32.mrb[0].mxu0
      %3509 = vmatprep.mubr.f32.mxu0 0.0
      %3510 = vmatmul.mubr.f32.gmra.mrb[0].mxu0 %v3327
      %v3511 = vpop.f32.mrb[0].mxu0
      %v3512 = vadd.f32 0.0, %v3511
      %v3513 = vpop.f32.mrb[0].mxu0
      %3514 = vmatprep.mubr.f32.mxu0 0.0
      %3515 = vmatmul.mubr.f32.gmra.mrb[0].mxu0 %v3330
      %v3516 = vpop.f32.mrb[0].mxu0
      %v3517 = vadd.f32 0.0, %v3516
      %v3518 = vpop.f32.mrb[0].mxu0
      %3519 = vmatprep.mubr.f32.mxu0 0.0
      %3520 = vmatmul.mubr.f32.gmra.mrb[0].mxu0 %v3333
      %v3521 = vpop.f32.mrb[0].mxu0
      %v3522 = vadd.f32 0.0, %v3521
      %v3523 = vpop.f32.mrb[0].mxu0
      %3524 = vmatprep.mubr.f32.mxu0 0.0
      %3525 = vmatmul.mubr.f32.gmra.mrb[0].mxu0 %v3336
      %v3526 = vpop.f32.mrb[0].mxu0
      %v3527 = vadd.f32 0.0, %v3526
      %v3528 = vpop.f32.mrb[0].mxu0
      %3529 = vmatprep.mubr.f32.mxu0 0.0
      %3530 = vmatmul.mubr.f32.gmra.mrb[0].mxu0 %v3339
      %v3531 = vpop.f32.mrb[0].mxu0
      %v3532 = vadd.f32 0.0, %v3531
      %v3533 = vpop.f32.mrb[0].mxu0
      %3534 = vmatprep.mubr.f32.mxu0 0.0
      %3535 = vmatmul.mubr.f32.gmra.mrb[0].mxu0 %v3342
      %v3536 = vpop.f32.mrb[0].mxu0
      %v3537 = vadd.f32 0.0, %v3536
      %v3538 = vpop.f32.mrb[0].mxu0
      %3539 = vmatprep.mubr.f32.mxu0 0.0
      %3540 = vmatmul.mubr.f32.gmra.mrb[0].mxu0 %v3345
      %v3541 = vpop.f32.mrb[0].mxu0
      %v3542 = vadd.f32 0.0, %v3541
      %v3543 = vpop.f32.mrb[0].mxu0
      %3544 = vmatprep.mubr.f32.mxu0 0.0
      %3545 = vmatmul.mubr.f32.gmra.mrb[0].mxu0 %v3348
      %v3546 = vpop.f32.mrb[0].mxu0
      %v3547 = vadd.f32 0.0, %v3546
      %v3548 = vpop.f32.mrb[0].mxu0
      %3549 = vmatprep.mubr.f32.mxu0 0.0
      %3550 = vmatmul.mubr.f32.gmra.mrb[0].mxu0 %v3351
      %v3551 = vpop.f32.mrb[0].mxu0
      %v3552 = vadd.f32 0.0, %v3551
      %v3553 = vpop.f32.mrb[0].mxu0
      %3554 = vmatprep.mubr.f32.mxu0 0.0
      %3555 = vmatmul.mubr.f32.gmra.mrb[0].mxu0 %v3354
      %v3556 = vpop.f32.mrb[0].mxu0
      %v3557 = vadd.f32 0.0, %v3556
      %v3558 = vpop.f32.mrb[0].mxu0
      %3559 = vmatprep.mubr.f32.mxu0 0.0
      %3560 = vmatmul.mubr.f32.gmra.mrb[0].mxu0 %v3357
      %v3561 = vpop.f32.mrb[0].mxu0
      %v3562 = vadd.f32 0.0, %v3561
      %v3563 = vpop.f32.mrb[0].mxu0
      %3564 = vmatprep.mubr.f32.mxu0 0.0
      %3565 = vmatmul.mubr.f32.gmra.mrb[0].mxu0 %v3360
      %v3566 = vpop.f32.mrb[0].mxu0
      %v3567 = vadd.f32 0.0, %v3566
      %v3568 = vpop.f32.mrb[0].mxu0
      %3569 = vmatprep.mubr.f32.mxu0 0.0
      %3570 = vmatmul.mubr.f32.gmra.mrb[0].mxu0 %v3363
      %v3571 = vpop.f32.mrb[0].mxu0
      %v3572 = vadd.f32 0.0, %v3571
      %v3573 = vpop.f32.mrb[0].mxu0
      %3574 = vmatprep.mubr.f32.mxu0 0.0
      %3575 = vmatmul.mubr.f32.gmra.mrb[0].mxu0 %v3366
      %v3576 = vpop.f32.mrb[0].mxu0
      %v3577 = vadd.f32 0.0, %v3576
      %v3578 = vpop.f32.mrb[0].mxu0
      %3579 = vmatprep.mubr.f32.mxu0 0.0
      %3580 = vmatmul.mubr.f32.gmra.mrb[0].mxu0 %v3369
      %v3581 = vpop.f32.mrb[0].mxu0
      %v3582 = vadd.f32 0.0, %v3581
      %v3583 = vpop.f32.mrb[0].mxu0
      %3584 = vmatprep.mubr.f32.mxu0 0.0
      %3585 = vmatmul.mubr.f32.gmra.mrb[0].mxu0 %v3372
      %v3586 = vpop.f32.mrb[0].mxu0
      %v3587 = vadd.f32 0.0, %v3586
      %v3588 = vpop.f32.mrb[0].mxu0
      %3589 = vmatprep.mubr.f32.mxu0 0.0
      %3590 = vmatmul.mubr.f32.gmra.mrb[0].mxu0 %v3375
      %v3591 = vpop.f32.mrb[0].mxu0
      %v3592 = vadd.f32 0.0, %v3591
      %v3593 = vpop.f32.mrb[0].mxu0
      %3594 = vmatprep.mubr.f32.mxu0 0.0
      %3595 = vmatmul.mubr.f32.gmra.mrb[0].mxu0 %v3378
      %v3596 = vpop.f32.mrb[0].mxu0
      %v3597 = vadd.f32 0.0, %v3596
      %v3598 = vpop.f32.mrb[0].mxu0
      %3599 = vmatprep.mubr.f32.mxu0 0.0
      %3600 = vmatmul.mubr.f32.gmra.mrb[0].mxu0 %v3381
      %v3601 = vpop.f32.mrb[0].mxu0
      %v3602 = vadd.f32 0.0, %v3601
      %v3603 = vpop.f32.mrb[0].mxu0
      %3604 = vmatprep.mubr.f32.mxu0 0.0
      %3605 = vmatmul.mubr.f32.gmra.mrb[0].mxu0 %v3384
      %v3606 = vpop.f32.mrb[0].mxu0
      %v3607 = vadd.f32 0.0, %v3606
      %v3608 = vpop.f32.mrb[0].mxu0
      %3609 = vmatprep.mubr.f32.mxu0 0.0
      %3610 = vmatmul.mubr.f32.gmra.mrb[0].mxu0 %v3387
      %v3611 = vpop.f32.mrb[0].mxu0
      %v3612 = vadd.f32 0.0, %v3611
      %v3613 = vpop.f32.mrb[0].mxu0
      %3614 = vmatprep.mubr.f32.mxu0 0.0
      %3615 = vmatmul.mubr.f32.gmra.mrb[0].mxu0 %v3390
      %v3616 = vpop.f32.mrb[0].mxu0
      %v3617 = vadd.f32 0.0, %v3616
      %v3618 = vpop.f32.mrb[0].mxu0
      %3619 = vdwg.mxu0
      %v3620 = vadd.f32 %v3230, %v3462
      %v3621 = vadd.f32 %v3231, %v3467
      %v3622 = vadd.f32 %v3232, %v3472
      %v3623 = vadd.f32 %v3233, %v3477
      %v3624 = vadd.f32 %v3234, %v3482
      %v3625 = vadd.f32 %v3235, %v3487
      %v3626 = vadd.f32 %v3236, %v3492
      %v3627 = vadd.f32 %v3237, %v3497
      %v3628 = vadd.f32 %v3238, %v3502
      %v3629 = vadd.f32 %v3239, %v3507
      %v3630 = vadd.f32 %v3240, %v3512
      %v3631 = vadd.f32 %v3241, %v3517
      %v3632 = vadd.f32 %v3242, %v3522
      %v3633 = vadd.f32 %v3243, %v3527
      %v3634 = vadd.f32 %v3244, %v3532
      %v3635 = vadd.f32 %v3245, %v3537
      %v3636 = vadd.f32 %v3246, %v3542
      %v3637 = vadd.f32 %v3247, %v3547
      %v3638 = vadd.f32 %v3248, %v3552
      %v3639 = vadd.f32 %v3249, %v3557
      %v3640 = vadd.f32 %v3250, %v3562
      %v3641 = vadd.f32 %v3251, %v3567
      %v3642 = vadd.f32 %v3252, %v3572
      %v3643 = vadd.f32 %v3253, %v3577
      %v3644 = vadd.f32 %v3254, %v3582
      %v3645 = vadd.f32 %v3255, %v3587
      %v3646 = vadd.f32 %v3256, %v3592
      %v3647 = vadd.f32 %v3257, %v3597
      %v3648 = vadd.f32 %v3258, %v3602
      %v3649 = vadd.f32 %v3259, %v3607
      %v3650 = vadd.f32 %v3260, %v3612
      %v3651 = vadd.f32 %v3261, %v3617
      %v3652 = vld [vmem:[%s2] sm:$0x1]
      %v3654 = vlaneseq
      %v3655 = vshrl.u32 %v3654, 7
      %v3656 = vsub.s32 0, %v3655
      %v3657 = vrot.slane %v3652, %v3656
      %v3659 = vadd.f32 %v3620, %v3657
      %v3660 = vadd.f32 %v3621, %v3657
      %v3661 = vadd.f32 %v3622, %v3657
      %v3662 = vadd.f32 %v3623, %v3657
      %v3663 = vadd.f32 %v3624, %v3657
      %v3664 = vadd.f32 %v3625, %v3657
      %v3665 = vadd.f32 %v3626, %v3657
      %v3666 = vadd.f32 %v3627, %v3657
      %v3667 = vadd.f32 %v3628, %v3657
      %v3668 = vadd.f32 %v3629, %v3657
      %v3669 = vadd.f32 %v3630, %v3657
      %v3670 = vadd.f32 %v3631, %v3657
      %v3671 = vadd.f32 %v3632, %v3657
      %v3672 = vadd.f32 %v3633, %v3657
      %v3673 = vadd.f32 %v3634, %v3657
      %v3674 = vadd.f32 %v3635, %v3657
      %v3675 = vadd.f32 %v3636, %v3657
      %v3676 = vadd.f32 %v3637, %v3657
      %v3677 = vadd.f32 %v3638, %v3657
      %v3678 = vadd.f32 %v3639, %v3657
      %v3679 = vadd.f32 %v3640, %v3657
      %v3680 = vadd.f32 %v3641, %v3657
      %v3681 = vadd.f32 %v3642, %v3657
      %v3682 = vadd.f32 %v3643, %v3657
      %v3683 = vadd.f32 %v3644, %v3657
      %v3684 = vadd.f32 %v3645, %v3657
      %v3685 = vadd.f32 %v3646, %v3657
      %v3686 = vadd.f32 %v3647, %v3657
      %v3687 = vadd.f32 %v3648, %v3657
      %v3688 = vadd.f32 %v3649, %v3657
      %v3689 = vadd.f32 %v3650, %v3657
      %v3690 = vadd.f32 %v3651, %v3657
      %v3691 = vmax.f32 %v3659, 0.0
      %v3692 = vmax.f32 %v3660, 0.0
      %v3693 = vmax.f32 %v3661, 0.0
      %v3694 = vmax.f32 %v3662, 0.0
      %v3695 = vmax.f32 %v3663, 0.0
      %v3696 = vmax.f32 %v3664, 0.0
      %v3697 = vmax.f32 %v3665, 0.0
      %v3698 = vmax.f32 %v3666, 0.0
      %v3699 = vmax.f32 %v3667, 0.0
      %v3700 = vmax.f32 %v3668, 0.0
      %v3701 = vmax.f32 %v3669, 0.0
      %v3702 = vmax.f32 %v3670, 0.0
      %v3703 = vmax.f32 %v3671, 0.0
      %v3704 = vmax.f32 %v3672, 0.0
      %v3705 = vmax.f32 %v3673, 0.0
      %v3706 = vmax.f32 %v3674, 0.0
      %v3707 = vmax.f32 %v3675, 0.0
      %v3708 = vmax.f32 %v3676, 0.0
      %v3709 = vmax.f32 %v3677, 0.0
      %v3710 = vmax.f32 %v3678, 0.0
      %v3711 = vmax.f32 %v3679, 0.0
      %v3712 = vmax.f32 %v3680, 0.0
      %v3713 = vmax.f32 %v3681, 0.0
      %v3714 = vmax.f32 %v3682, 0.0
      %v3715 = vmax.f32 %v3683, 0.0
      %v3716 = vmax.f32 %v3684, 0.0
      %v3717 = vmax.f32 %v3685, 0.0
      %v3718 = vmax.f32 %v3686, 0.0
      %v3719 = vmax.f32 %v3687, 0.0
      %v3720 = vmax.f32 %v3688, 0.0
      %v3721 = vmax.f32 %v3689, 0.0
      %v3722 = vmax.f32 %v3690, 0.0
      %3723 = vst [vmem:[%s194] sm:$0xff] %v3691
      %3724 = vst [vmem:[%s194 + $0x8] sm:$0xff] %v3692
      %3725 = vst [vmem:[%s194 + $0x10] sm:$0xff] %v3693
      %3726 = vst [vmem:[%s194 + $0x18] sm:$0xff] %v3694
      %3727 = vst [vmem:[%s194 + $0x20] sm:$0xff] %v3695
      %3728 = vst [vmem:[%s194 + $0x28] sm:$0xff] %v3696
      %3729 = vst [vmem:[%s194 + $0x30] sm:$0xff] %v3697
      %3730 = vst [vmem:[%s194 + $0x38] sm:$0xff] %v3698
      %3731 = vst [vmem:[%s194 + $0x40] sm:$0xff] %v3699
      %3732 = vst [vmem:[%s194 + $0x48] sm:$0xff] %v3700
      %3733 = vst [vmem:[%s194 + $0x50] sm:$0xff] %v3701
      %3734 = vst [vmem:[%s194 + $0x58] sm:$0xff] %v3702
      %3735 = vst [vmem:[%s194 + $0x60] sm:$0xff] %v3703
      %3736 = vst [vmem:[%s194 + $0x68] sm:$0xff] %v3704
      %3737 = vst [vmem:[%s194 + $0x70] sm:$0xff] %v3705
      %3738 = vst [vmem:[%s194 + $0x78] sm:$0xff] %v3706
      %3739 = vst [vmem:[%s194 + $0x80] sm:$0xff] %v3707
      %3740 = vst [vmem:[%s194 + $0x88] sm:$0xff] %v3708
      %3741 = vst [vmem:[%s194 + $0x90] sm:$0xff] %v3709
      %3742 = vst [vmem:[%s194 + $0x98] sm:$0xff] %v3710
      %3743 = vst [vmem:[%s194 + $0xa0] sm:$0xff] %v3711
      %3744 = vst [vmem:[%s194 + $0xa8] sm:$0xff] %v3712
      %3745 = vst [vmem:[%s194 + $0xb0] sm:$0xff] %v3713
      %3746 = vst [vmem:[%s194 + $0xb8] sm:$0xff] %v3714
      %3747 = vst [vmem:[%s194 + $0xc0] sm:$0xff] %v3715
      %3748 = vst [vmem:[%s194 + $0xc8] sm:$0xff] %v3716
      %3749 = vst [vmem:[%s194 + $0xd0] sm:$0xff] %v3717
      %3750 = vst [vmem:[%s194 + $0xd8] sm:$0xff] %v3718
      %3751 = vst [vmem:[%s194 + $0xe0] sm:$0xff] %v3719
      %3752 = vst [vmem:[%s194 + $0xe8] sm:$0xff] %v3720
      %3753 = vst [vmem:[%s194 + $0xf0] sm:$0xff] %v3721
      %3754 = vst [vmem:[%s194 + $0xf8] sm:$0xff] %v3722
      %s3755 = smul.u32 16, %s19
      %p3756 = scmp.lt.s32.totalorder %s18, 1
      %s3757 = scalar_select %p3756, %s18, 1
      %p3758 = scmp.lt.s32.totalorder %s3755, 15
      %s3759 = scalar_select %p3758, %s3755, 15
      %s3760 = smul.addr %s3759, 2
      %s3761 = smul.addr %s3757, 32
      %s3762 = sadd.s32 %s3760, %s3761
      %s3763 = smul.addr %s3762, 8
      %s3764 = scalar_lea.vmem %s3, %s3763
      // Predicated region
      $region33: #{basic_conv2d.1} parent=31 // pred_check
        %p3765 = pneg %p114
      $region34: #{basic_conv2d.1} parent=31 // pred_check_branch
        %3767 = sbr.rel (%p3765) target = $region36
      $region35: #{basic_conv2d.1} parent=31 // pred_region
        %s3768 = smul.u32 16, %s19
      $region36: #{basic_conv2d.1} parent=31 // pred_fallthru
        _
    $region32: #{basic_conv2d.1} parent=5 // pred_fallthru
      _
    %p3769 = scmp.le.s32.totalorder 2, %s9
    // Predicated region
    $region37: #{basic_conv2d.1} parent=5 // pred_check
      %p3770 = pneg %p3769
    $region38: #{basic_conv2d.1} parent=5 // pred_check_branch
      %3772 = sbr.rel (%p3770) target = $region40
    $region39: #{basic_conv2d.1} parent=5 // pred_region
      %s3773 = ssub.s32 %s9, 2
      // Predicated region
      $region41: #{basic_conv2d.1} parent=39 // pred_check
        %p3774 = pneg %p120
      $region42: #{basic_conv2d.1} parent=39 // pred_check_branch
        %3776 = sbr.rel (%p3774) target = $region44
      $region43: #{basic_conv2d.1} parent=39 // pred_region
        %s3777 = smul.u32 16, %s21
        %p3778 = scmp.lt.s32.totalorder %s20, 1
        %s3779 = scalar_select %p3778, %s20, 1
        %p3780 = scmp.lt.s32.totalorder %s3777, 15
        %s3781 = scalar_select %p3780, %s3777, 15
        %s3782 = smul.addr %s3781, 2
        %s3783 = smul.addr %s3779, 32
        %s3784 = sadd.s32 %s3782, %s3783
        %s3785 = smul.addr %s3784, 8
        %s3786 = scalar_lea.vmem %s3, %s3785
      $region44: #{basic_conv2d.1} parent=39 // pred_fallthru
        _
    $region40: #{basic_conv2d.1} parent=5 // pred_fallthru
      _
  $region6: #{basic_conv2d.1} parent=0 // loop_footer
    %s13 = sadd.s32 1, %s9
  $region7: #{basic_conv2d.1} parent=0 // loop_footer_branch
    %8 = sbr.rel target = $region3
  $region8: #{basic_conv2d.1} parent=0 // loop_exit
    _

</llo_original>
